<compile_context>
chip_gen: v6e
topology: v6e:2x2x1
jax: 0.10.0
libtpu: 0.0.40
codegen_flags: <defaults>
</compile_context>

<pallas_src>
import functools

import jax
import jax.numpy as jnp
from jax import lax
from jax.experimental import pallas as pl
from jax.experimental.pallas import tpu as pltpu


# ----------------------------------------------------------------------------
# Fused conv + InstanceNorm (+ReLU / +residual / +sigmoid) Pallas kernel
# ----------------------------------------------------------------------------

def _fused_conv_kernel(x_ref, w_ref, b_ref, m_ref, *rest,
                       KH, Ho, stride, relu, has_residual, sigmoid, eps):
    """One batch element.

    stride == 1:  x_ref (1, Hp, Wp*Cin)
    stride == 2:  x_ref (1, 2, Hp2, Wp*Cin)   (row-parity phases, built in wrapper)
    w_ref  (KH, Wp*Cin, Wo*Cout)   banded-Toeplitz weights
    b_ref  (1, Wo*Cout)            bias replicated over the Wo positions
    m_ref  (Wo*Cout, Wo*Cout)      channel-averaging matrix (includes 1/(Ho*Wo))
    rest = ([res_ref (1, Ho, Wo*Cout)], o_ref (1, Ho, Wo*Cout))
    """
    if has_residual:
        res_ref, o_ref = rest
    else:
        (o_ref,) = rest

    # --- convolution: KH banded matmuls accumulated in f32 -------------------
    acc = None
    for kh in range(KH):                       # static unroll (KH = 3 or 7)
        if stride == 1:
            lhs = x_ref[0, pl.ds(kh, Ho), :]               # (Ho, Wp*Cin)
        else:  # stride == 2: row 2*i + kh lives in phase kh%2 at index i + kh//2
            lhs = x_ref[0, kh % 2, pl.ds(kh // 2, Ho), :]  # (Ho, Wp*Cin)
        part = jnp.dot(lhs, w_ref[kh], preferred_element_type=jnp.float32)
        acc = part if acc is None else acc + part
    y = acc + b_ref[...]                                   # (Ho, Wo*Cout)

    # --- InstanceNorm2d(affine=False), single pass over the tile -------------
    # Per-channel stats in the lane-grouped layout via the averaging matrix.
    ym = jnp.dot(y, m_ref[...], preferred_element_type=jnp.float32)       # (Ho, WoC)
    y2m = jnp.dot(y * y, m_ref[...], preferred_element_type=jnp.float32)  # (Ho, WoC)
    mean = jnp.sum(ym, axis=0, keepdims=True)       # per-channel mean, lane-replicated
    ex2 = jnp.sum(y2m, axis=0, keepdims=True)       # per-channel E[x^2]
    var = ex2 - mean * mean                         # biased variance (PyTorch IN)
    y = (y - mean) * lax.rsqrt(var + eps)

    if relu:
        y = jnp.maximum(y, 0.0)
    if has_residual:
        y = y + res_ref[0]
    if sigmoid:
        y = 1.0 / (1.0 + jnp.exp(-y))

    o_ref[0] = y.astype(o_ref.dtype)                # single lane-dense store


# ----------------------------------------------------------------------------
# Wrapper: layer prep (Toeplitz weights, padding, phase split) + pallas_call
# ----------------------------------------------------------------------------

def _toeplitz_weights(w, Wp, Wo, stride):
    """Dense (KH, KW, Cin, Cout) -> banded (KH, Wp*Cin, Wo*Cout).

    T[kh, p*Cin+ci, j*Cout+co] = w[kh, p - stride*j, ci, co]  if 0 <= p - stride*j < KW.
    """
    KH, KW, Cin, Cout = w.shape
    p = jnp.arange(Wp)[:, None]                     # (Wp, 1)
    j = jnp.arange(Wo)[None, :]                     # (1, Wo)
    kw = p - stride * j                             # (Wp, Wo)
    valid = (kw >= 0) & (kw < KW)
    kw_c = jnp.clip(kw, 0, KW - 1)
    wt = w[:, kw_c]                                 # (KH, Wp, Wo, Cin, Cout)
    wt = jnp.where(valid[None, :, :, None, None], wt, 0.0)
    wt = jnp.transpose(wt, (0, 1, 3, 2, 4))         # (KH, Wp, Cin, Wo, Cout)
    return wt.reshape(KH, Wp * Cin, Wo * Cout).astype(jnp.float32)


def fused_conv(x_nhwc, w, b, *, stride=1, pad=0, pad_mode="reflect",
               relu=False, residual=None, sigmoid=False, eps=1e-5):
    """Conv2d(pad, stride) + InstanceNorm [+ReLU] [+residual] [+sigmoid] as one Pallas call."""
    N = x_nhwc.shape[0]
    KH, KW, Cin, Cout = w.shape

    xp = x_nhwc
    if pad:
        xp = jnp.pad(xp, ((0, 0), (pad, pad), (pad, pad), (0, 0)), mode=pad_mode)
    _, Hp, Wp, _ = xp.shape
    Ho = (Hp - KH) // stride + 1
    Wo = (Wp - KW) // stride + 1
    WpC, WoC = Wp * Cin, Wo * Cout

    # Layer constants (tiny; pure layout / weight transforms, fused by XLA).
    wT = _toeplitz_weights(w, Wp, Wo, stride)                       # (KH, WpC, WoC)
    bias_full = jnp.tile(b.astype(jnp.float32), Wo).reshape(1, WoC)  # (1, WoC)
    m_avg = (jnp.tile(jnp.eye(Cout, dtype=jnp.float32), (Wo, Wo))
             / float(Ho * Wo))                                       # (WoC, WoC)

    x_flat = xp.reshape(N, Hp, WpC)                 # free row-major reshape
    if stride == 2:
        if Hp % 2:                                  # pad H to even for phase split
            x_flat = jnp.pad(x_flat, ((0, 0), (0, 1), (0, 0)))
        Hp2 = x_flat.shape[1] // 2
        x_in = jnp.stack([x_flat[:, 0::2, :], x_flat[:, 1::2, :]], axis=1)  # (N,2,Hp2,WpC)
        x_spec = pl.BlockSpec((1, 2, Hp2, WpC), lambda n: (n, 0, 0, 0))
    else:
        x_in = x_flat                                                        # (N,Hp,WpC)
        x_spec = pl.BlockSpec((1, Hp, WpC), lambda n: (n, 0, 0))

    in_specs = [
        x_spec,
        pl.BlockSpec((KH, WpC, WoC), lambda n: (0, 0, 0)),
        pl.BlockSpec((1, WoC), lambda n: (0, 0)),
        pl.BlockSpec((WoC, WoC), lambda n: (0, 0)),
    ]
    args = [x_in, wT, bias_full, m_avg]
    if residual is not None:
        args.append(residual.reshape(N, Ho, WoC))   # free reshape -> lane-dense residual
        in_specs.append(pl.BlockSpec((1, Ho, WoC), lambda n: (n, 0, 0)))

    kernel = functools.partial(
        _fused_conv_kernel, KH=KH, Ho=Ho, stride=stride, relu=relu,
        has_residual=residual is not None, sigmoid=sigmoid, eps=eps)

    out = pl.pallas_call(
        kernel,
        out_shape=jax.ShapeDtypeStruct((N, Ho, WoC), jnp.float32),
        grid=(N,),
        in_specs=in_specs,
        out_specs=pl.BlockSpec((1, Ho, WoC), lambda n: (n, 0, 0)),
        compiler_params=pltpu.CompilerParams(
            dimension_semantics=("parallel",)),      # v7x: shard batch over 2 TCs
    )(*args)
    return out.reshape(N, Ho, Wo, Cout)             # free reshape back to NHWC


# ----------------------------------------------------------------------------
# Parameters + forward pass (matches ResnetDiscriminator, n_downsampling<=2)
# ----------------------------------------------------------------------------

def init_params(key, input_nc, ngf, n_downsampling, n_blocks):
    def conv_p(k, kh, kw, cin, cout):
        kw_key, kb_key = jax.random.split(k)
        w = jax.random.normal(kw_key, (kh, kw, cin, cout), jnp.float32) / jnp.sqrt(kh * kw * cin)
        b = 0.01 * jax.random.normal(kb_key, (cout,), jnp.float32)
        return w, b

    keys = jax.random.split(key, 1 + n_downsampling + 2 * n_blocks)
    ki = iter(keys)
    params = {"stem": conv_p(next(ki), 7, 7, input_nc, ngf), "down": [], "blocks": []}
    for i in range(n_downsampling):
        cin = ngf * (2 ** i)
        params["down"].append(conv_p(next(ki), 3, 3, cin, cin * 2))
    dim = ngf * (2 ** n_downsampling)
    for _ in range(n_blocks):
        params["blocks"].append((conv_p(next(ki), 3, 3, dim, dim),
                                 conv_p(next(ki), 3, 3, dim, dim)))
    return params


def resnet_discriminator_forward(x_nchw, params, n_downsampling=2, n_blocks=3):
    """Forward matching ResnetDiscriminator(use_dropout=False, use_sigmoid=True,
    padding_type='reflect').  Input/output are NCHW like the PyTorch module."""
    x = jnp.transpose(x_nchw, (0, 2, 3, 1)).astype(jnp.float32)   # NCHW -> NHWC

    # Stem: ReflectionPad(3) -> Conv7x7 -> InstanceNorm -> ReLU  (one fused call)
    w, b = params["stem"]
    h = fused_conv(x, w, b, stride=1, pad=3, pad_mode="reflect", relu=True)

    # Downsampling: Conv3x3/s2/p1 -> InstanceNorm -> ReLU  (stride-2 computed directly)
    for i in range(n_downsampling):
        w, b = params["down"][i]
        h = fused_conv(h, w, b, stride=2, pad=1, pad_mode="constant", relu=True)

    # Resnet blocks: x + IN(Conv(pad(ReLU(IN(Conv(pad(x)))))));
    # final sigmoid fused into the last block's second conv.
    for i in range(n_blocks):
        (w1, b1), (w2, b2) = params["blocks"][i]
        y = fused_conv(h, w1, b1, stride=1, pad=1, pad_mode="reflect", relu=True)
        h = fused_conv(y, w2, b2, stride=1, pad=1, pad_mode="reflect",
                       relu=False, residual=h, sigmoid=(i == n_blocks - 1))

    if n_blocks == 0:
        # Degenerate config (not used here): standalone sigmoid as plain JAX glue.
        h = 1.0 / (1.0 + jnp.exp(-h))

    return jnp.transpose(h, (0, 3, 1, 2))           # NHWC -> NCHW


# ----------------------------------------------------------------------------
# Pure-JAX reference (correctness check)
# ----------------------------------------------------------------------------

def _ref_forward(x_nchw, params, n_downsampling=2, n_blocks=3):
    x = jnp.transpose(x_nchw, (0, 2, 3, 1)).astype(jnp.float32)

    def conv(x, w, b, pad, mode, stride=1):
        xp = jnp.pad(x, ((0, 0), (pad, pad), (pad, pad), (0, 0)), mode=mode) if pad else x
        y = lax.conv_general_dilated(xp, w, (stride, stride), "VALID",
                                     dimension_numbers=("NHWC", "HWIO", "NHWC"))
        return y + b

    def inorm(x, relu):
        m = jnp.mean(x, axis=(1, 2), keepdims=True)
        v = jnp.mean((x - m) ** 2, axis=(1, 2), keepdims=True)
        y = (x - m) / jnp.sqrt(v + 1e-5)
        return jnp.maximum(y, 0.0) if relu else y

    w, b = params["stem"]
    h = inorm(conv(x, w, b, 3, "reflect"), True)
    for i in range(n_downsampling):
        w, b = params["down"][i]
        h = inorm(conv(h, w, b, 1, "constant", stride=2), True)
    for i in range(n_blocks):
        (w1, b1), (w2, b2) = params["blocks"][i]
        y = inorm(conv(h, w1, b1, 1, "reflect"), True)
        y = inorm(conv(y, w2, b2, 1, "reflect"), False)
        h = h + y
    h = jax.nn.sigmoid(h)
    return jnp.transpose(h, (0, 3, 1, 2))


# ----------------------------------------------------------------------------
# Main
# ----------------------------------------------------------------------------

if __name__ == "__main__":
    # N=2, input_nc=4, 16x16, ngf=8, n_downsampling=2, n_blocks=3,
    # use_sigmoid=True, padding_type='reflect'.
    N, INPUT_NC, H, W = 2, 4, 16, 16
    NGF, N_DOWN, N_BLOCKS = 8, 2, 3

    key = jax.random.PRNGKey(0)
    k_x, k_p = jax.random.split(key)
    x = jax.random.normal(k_x, (N, INPUT_NC, H, W), jnp.float32)   # NCHW like PyTorch
    params = init_params(k_p, INPUT_NC, NGF, N_DOWN, N_BLOCKS)

    fwd = jax.jit(functools.partial(resnet_discriminator_forward,
                                    n_downsampling=N_DOWN, n_blocks=N_BLOCKS))
    out = fwd(x, params)
    out = jax.block_until_ready(out)

    ref = jax.block_until_ready(_ref_forward(x, params, N_DOWN, N_BLOCKS))
    assert out.shape == (N, NGF * (2 ** N_DOWN), H // 4, W // 4), out.shape
    max_err = float(jnp.max(jnp.abs(out - ref)))
    assert max_err < 1e-3, f"max abs error {max_err}"

    print("KERNEL_OK")
</pallas_src>

<mosaic_0001>
module attributes {stable_mosaic.version = 11 : i64} {
  func.func @_fused_conv_kernel(%arg0: i32, %arg1: memref<1x22x88xf32, #tpu.memory_space<vmem>>, %arg2: memref<7x88x128xf32, #tpu.memory_space<vmem>>, %arg3: memref<1x128xf32, #tpu.memory_space<vmem>>, %arg4: memref<128x128xf32, #tpu.memory_space<vmem>>, %arg5: memref<1x16x128xf32, #tpu.memory_space<vmem>>) attributes {dimension_semantics = [#tpu.dimension_semantics<parallel>], iteration_bounds = array<i64: 2>, scalar_prefetch = 0 : i64, scratch_operands = 0 : i64, tpu.core_type = #tpu.core_type<tc>, window_params = [{transform_indices = @transform_0, window_bounds = array<i64: 1, 22, 88>}, {pipeline_mode = #tpu.pipeline_mode<synchronous>, transform_indices = @transform_1, window_bounds = array<i64: 7, 88, 128>}, {pipeline_mode = #tpu.pipeline_mode<synchronous>, transform_indices = @transform_2, window_bounds = array<i64: 1, 128>}, {pipeline_mode = #tpu.pipeline_mode<synchronous>, transform_indices = @transform_3, window_bounds = array<i64: 128, 128>}, {transform_indices = @transform_4, window_bounds = array<i64: 1, 16, 128>}]} {
    %c0 = arith.constant 0 : index
    %c0_0 = arith.constant 0 : index
    %c0_1 = arith.constant 0 : index
    %0 = vector.load %arg1[%c0, %c0_0, %c0_1] : memref<1x22x88xf32, #tpu.memory_space<vmem>>, vector<1x16x88xf32>
    %1 = vector.shape_cast %0 : vector<1x16x88xf32> to vector<16x88xf32>
    %c0_2 = arith.constant 0 : index
    %c0_3 = arith.constant 0 : index
    %c0_4 = arith.constant 0 : index
    %2 = vector.load %arg2[%c0_2, %c0_3, %c0_4] : memref<7x88x128xf32, #tpu.memory_space<vmem>>, vector<1x88x128xf32>
    %3 = vector.shape_cast %2 : vector<1x88x128xf32> to vector<88x128xf32>
    %cst = arith.constant dense<0.000000e+00> : vector<16x128xf32>
    %4 = tpu.matmul %1, %3, %cst {dimension_numbers = #tpu.dot_dimension_numbers<[1], [0], [0], [1], [0, 0, 1, 1], [], []>} : vector<16x88xf32>, vector<88x128xf32>, vector<16x128xf32> -> vector<16x128xf32>
    %c0_5 = arith.constant 0 : index
    %c1 = arith.constant 1 : index
    %c0_6 = arith.constant 0 : index
    %5 = vector.load %arg1[%c0_5, %c1, %c0_6] : memref<1x22x88xf32, #tpu.memory_space<vmem>>, vector<1x16x88xf32>
    %6 = vector.shape_cast %5 : vector<1x16x88xf32> to vector<16x88xf32>
    %c1_7 = arith.constant 1 : index
    %c0_8 = arith.constant 0 : index
    %c0_9 = arith.constant 0 : index
    %7 = vector.load %arg2[%c1_7, %c0_8, %c0_9] : memref<7x88x128xf32, #tpu.memory_space<vmem>>, vector<1x88x128xf32>
    %8 = vector.shape_cast %7 : vector<1x88x128xf32> to vector<88x128xf32>
    %cst_10 = arith.constant dense<0.000000e+00> : vector<16x128xf32>
    %9 = tpu.matmul %6, %8, %cst_10 {dimension_numbers = #tpu.dot_dimension_numbers<[1], [0], [0], [1], [0, 0, 1, 1], [], []>} : vector<16x88xf32>, vector<88x128xf32>, vector<16x128xf32> -> vector<16x128xf32>
    %10 = arith.addf %4, %9 : vector<16x128xf32>
    %c0_11 = arith.constant 0 : index
    %c2 = arith.constant 2 : index
    %c0_12 = arith.constant 0 : index
    %11 = vector.load %arg1[%c0_11, %c2, %c0_12] : memref<1x22x88xf32, #tpu.memory_space<vmem>>, vector<1x16x88xf32>
    %12 = vector.shape_cast %11 : vector<1x16x88xf32> to vector<16x88xf32>
    %c2_13 = arith.constant 2 : index
    %c0_14 = arith.constant 0 : index
    %c0_15 = arith.constant 0 : index
    %13 = vector.load %arg2[%c2_13, %c0_14, %c0_15] : memref<7x88x128xf32, #tpu.memory_space<vmem>>, vector<1x88x128xf32>
    %14 = vector.shape_cast %13 : vector<1x88x128xf32> to vector<88x128xf32>
    %cst_16 = arith.constant dense<0.000000e+00> : vector<16x128xf32>
    %15 = tpu.matmul %12, %14, %cst_16 {dimension_numbers = #tpu.dot_dimension_numbers<[1], [0], [0], [1], [0, 0, 1, 1], [], []>} : vector<16x88xf32>, vector<88x128xf32>, vector<16x128xf32> -> vector<16x128xf32>
    %16 = arith.addf %10, %15 : vector<16x128xf32>
    %c0_17 = arith.constant 0 : index
    %c3 = arith.constant 3 : index
    %c0_18 = arith.constant 0 : index
    %17 = vector.load %arg1[%c0_17, %c3, %c0_18] : memref<1x22x88xf32, #tpu.memory_space<vmem>>, vector<1x16x88xf32>
    %18 = vector.shape_cast %17 : vector<1x16x88xf32> to vector<16x88xf32>
    %c3_19 = arith.constant 3 : index
    %c0_20 = arith.constant 0 : index
    %c0_21 = arith.constant 0 : index
    %19 = vector.load %arg2[%c3_19, %c0_20, %c0_21] : memref<7x88x128xf32, #tpu.memory_space<vmem>>, vector<1x88x128xf32>
    %20 = vector.shape_cast %19 : vector<1x88x128xf32> to vector<88x128xf32>
    %cst_22 = arith.constant dense<0.000000e+00> : vector<16x128xf32>
    %21 = tpu.matmul %18, %20, %cst_22 {dimension_numbers = #tpu.dot_dimension_numbers<[1], [0], [0], [1], [0, 0, 1, 1], [], []>} : vector<16x88xf32>, vector<88x128xf32>, vector<16x128xf32> -> vector<16x128xf32>
    %22 = arith.addf %16, %21 : vector<16x128xf32>
    %c0_23 = arith.constant 0 : index
    %c4 = arith.constant 4 : index
    %c0_24 = arith.constant 0 : index
    %23 = vector.load %arg1[%c0_23, %c4, %c0_24] : memref<1x22x88xf32, #tpu.memory_space<vmem>>, vector<1x16x88xf32>
    %24 = vector.shape_cast %23 : vector<1x16x88xf32> to vector<16x88xf32>
    %c4_25 = arith.constant 4 : index
    %c0_26 = arith.constant 0 : index
    %c0_27 = arith.constant 0 : index
    %25 = vector.load %arg2[%c4_25, %c0_26, %c0_27] : memref<7x88x128xf32, #tpu.memory_space<vmem>>, vector<1x88x128xf32>
    %26 = vector.shape_cast %25 : vector<1x88x128xf32> to vector<88x128xf32>
    %cst_28 = arith.constant dense<0.000000e+00> : vector<16x128xf32>
    %27 = tpu.matmul %24, %26, %cst_28 {dimension_numbers = #tpu.dot_dimension_numbers<[1], [0], [0], [1], [0, 0, 1, 1], [], []>} : vector<16x88xf32>, vector<88x128xf32>, vector<16x128xf32> -> vector<16x128xf32>
    %28 = arith.addf %22, %27 : vector<16x128xf32>
    %c0_29 = arith.constant 0 : index
    %c5 = arith.constant 5 : index
    %c0_30 = arith.constant 0 : index
    %29 = vector.load %arg1[%c0_29, %c5, %c0_30] : memref<1x22x88xf32, #tpu.memory_space<vmem>>, vector<1x16x88xf32>
    %30 = vector.shape_cast %29 : vector<1x16x88xf32> to vector<16x88xf32>
    %c5_31 = arith.constant 5 : index
    %c0_32 = arith.constant 0 : index
    %c0_33 = arith.constant 0 : index
    %31 = vector.load %arg2[%c5_31, %c0_32, %c0_33] : memref<7x88x128xf32, #tpu.memory_space<vmem>>, vector<1x88x128xf32>
    %32 = vector.shape_cast %31 : vector<1x88x128xf32> to vector<88x128xf32>
    %cst_34 = arith.constant dense<0.000000e+00> : vector<16x128xf32>
    %33 = tpu.matmul %30, %32, %cst_34 {dimension_numbers = #tpu.dot_dimension_numbers<[1], [0], [0], [1], [0, 0, 1, 1], [], []>} : vector<16x88xf32>, vector<88x128xf32>, vector<16x128xf32> -> vector<16x128xf32>
    %34 = arith.addf %28, %33 : vector<16x128xf32>
    %c0_35 = arith.constant 0 : index
    %c6 = arith.constant 6 : index
    %c0_36 = arith.constant 0 : index
    %35 = vector.load %arg1[%c0_35, %c6, %c0_36] : memref<1x22x88xf32, #tpu.memory_space<vmem>>, vector<1x16x88xf32>
    %36 = vector.shape_cast %35 : vector<1x16x88xf32> to vector<16x88xf32>
    %c6_37 = arith.constant 6 : index
    %c0_38 = arith.constant 0 : index
    %c0_39 = arith.constant 0 : index
    %37 = vector.load %arg2[%c6_37, %c0_38, %c0_39] : memref<7x88x128xf32, #tpu.memory_space<vmem>>, vector<1x88x128xf32>
    %38 = vector.shape_cast %37 : vector<1x88x128xf32> to vector<88x128xf32>
    %cst_40 = arith.constant dense<0.000000e+00> : vector<16x128xf32>
    %39 = tpu.matmul %36, %38, %cst_40 {dimension_numbers = #tpu.dot_dimension_numbers<[1], [0], [0], [1], [0, 0, 1, 1], [], []>} : vector<16x88xf32>, vector<88x128xf32>, vector<16x128xf32> -> vector<16x128xf32>
    %40 = arith.addf %34, %39 : vector<16x128xf32>
    %c0_41 = arith.constant 0 : index
    %c0_42 = arith.constant 0 : index
    %41 = vector.load %arg3[%c0_41, %c0_42] : memref<1x128xf32, #tpu.memory_space<vmem>>, vector<1x128xf32>
    %42 = vector.broadcast %41 : vector<1x128xf32> to vector<16x128xf32>
    %43 = arith.addf %40, %42 : vector<16x128xf32>
    %c0_43 = arith.constant 0 : index
    %c0_44 = arith.constant 0 : index
    %44 = vector.load %arg4[%c0_43, %c0_44] : memref<128x128xf32, #tpu.memory_space<vmem>>, vector<128x128xf32>
    %cst_45 = arith.constant dense<0.000000e+00> : vector<16x128xf32>
    %45 = tpu.matmul %43, %44, %cst_45 {dimension_numbers = #tpu.dot_dimension_numbers<[1], [0], [0], [1], [0, 0, 1, 1], [], []>} : vector<16x128xf32>, vector<128x128xf32>, vector<16x128xf32> -> vector<16x128xf32>
    %46 = arith.mulf %43, %43 : vector<16x128xf32>
    %c0_46 = arith.constant 0 : index
    %c0_47 = arith.constant 0 : index
    %47 = vector.load %arg4[%c0_46, %c0_47] : memref<128x128xf32, #tpu.memory_space<vmem>>, vector<128x128xf32>
    %cst_48 = arith.constant dense<0.000000e+00> : vector<16x128xf32>
    %48 = tpu.matmul %46, %47, %cst_48 {dimension_numbers = #tpu.dot_dimension_numbers<[1], [0], [0], [1], [0, 0, 1, 1], [], []>} : vector<16x128xf32>, vector<128x128xf32>, vector<16x128xf32> -> vector<16x128xf32>
    %cst_49 = arith.constant dense<0.000000e+00> : vector<128xf32>
    %49 = vector.multi_reduction <add>, %45, %cst_49 [0] : vector<16x128xf32> to vector<128xf32>
    %50 = vector.shape_cast %49 : vector<128xf32> to vector<1x128xf32>
    %cst_50 = arith.constant dense<0.000000e+00> : vector<128xf32>
    %51 = vector.multi_reduction <add>, %48, %cst_50 [0] : vector<16x128xf32> to vector<128xf32>
    %52 = vector.shape_cast %51 : vector<128xf32> to vector<1x128xf32>
    %53 = arith.mulf %50, %50 : vector<1x128xf32>
    %54 = arith.subf %52, %53 : vector<1x128xf32>
    %55 = vector.broadcast %50 : vector<1x128xf32> to vector<16x128xf32>
    %56 = arith.subf %43, %55 : vector<16x128xf32>
    %cst_51 = arith.constant 9.99999974E-6 : f32
    %57 = vector.broadcast %cst_51 : f32 to vector<1x128xf32>
    %58 = arith.addf %54, %57 : vector<1x128xf32>
    %59 = math.rsqrt %58 : vector<1x128xf32>
    %60 = vector.broadcast %59 : vector<1x128xf32> to vector<16x128xf32>
    %61 = arith.mulf %56, %60 : vector<16x128xf32>
    %cst_52 = arith.constant 0.000000e+00 : f32
    %62 = vector.broadcast %cst_52 : f32 to vector<16x128xf32>
    %63 = arith.maximumf %61, %62 : vector<16x128xf32>
    %c0_53 = arith.constant 0 : index
    %c0_54 = arith.constant 0 : index
    %c0_55 = arith.constant 0 : index
    %64 = vector.load %arg5[%c0_53, %c0_54, %c0_55] : memref<1x16x128xf32, #tpu.memory_space<vmem>>, vector<1x16x128xf32>
    %65 = vector.shape_cast %64 : vector<1x16x128xf32> to vector<16x128xf32>
    %66 = vector.shape_cast %63 : vector<16x128xf32> to vector<1x16x128xf32>
    tpu.vector_store %arg5[%c0_53, %c0_54, %c0_55], %66 {strides = array<i32>} : memref<1x16x128xf32, #tpu.memory_space<vmem>>, vector<1x16x128xf32>,
    return
  }
  func.func @transform_0(%arg0: i32) -> (i32, i32, i32) {
    %c0_i32 = arith.constant 0 : i32
    %c0_i32_0 = arith.constant 0 : i32
    %c0_i32_1 = arith.constant 0 : i32
    return %arg0, %c0_i32, %c0_i32_0 : i32, i32, i32
  }
  func.func @transform_1(%arg0: i32) -> (i32, i32, i32) {
    %c0_i32 = arith.constant 0 : i32
    %c0_i32_0 = arith.constant 0 : i32
    %c0_i32_1 = arith.constant 0 : i32
    %c0_i32_2 = arith.constant 0 : i32
    return %c0_i32, %c0_i32_0, %c0_i32_1 : i32, i32, i32
  }
  func.func @transform_2(%arg0: i32) -> (i32, i32) {
    %c0_i32 = arith.constant 0 : i32
    %c0_i32_0 = arith.constant 0 : i32
    %c0_i32_1 = arith.constant 0 : i32
    return %c0_i32, %c0_i32_0 : i32, i32
  }
  func.func @transform_3(%arg0: i32) -> (i32, i32) {
    %c0_i32 = arith.constant 0 : i32
    %c0_i32_0 = arith.constant 0 : i32
    %c0_i32_1 = arith.constant 0 : i32
    return %c0_i32, %c0_i32_0 : i32, i32
  }
  func.func @transform_4(%arg0: i32) -> (i32, i32, i32) {
    %c0_i32 = arith.constant 0 : i32
    %c0_i32_0 = arith.constant 0 : i32
    %c0_i32_1 = arith.constant 0 : i32
    return %arg0, %c0_i32, %c0_i32_0 : i32, i32, i32
  }
}

module attributes {stable_mosaic.version = 11 : i64} {
  func.func @_fused_conv_kernel(%arg0: i32, %arg1: memref<1x2x9x144xf32, #tpu.memory_space<vmem>>, %arg2: memref<3x144x128xf32, #tpu.memory_space<vmem>>, %arg3: memref<1x128xf32, #tpu.memory_space<vmem>>, %arg4: memref<128x128xf32, #tpu.memory_space<vmem>>, %arg5: memref<1x8x128xf32, #tpu.memory_space<vmem>>) attributes {dimension_semantics = [#tpu.dimension_semantics<parallel>], iteration_bounds = array<i64: 2>, scalar_prefetch = 0 : i64, scratch_operands = 0 : i64, tpu.core_type = #tpu.core_type<tc>, window_params = [{transform_indices = @transform_0, window_bounds = array<i64: 1, 2, 9, 144>}, {pipeline_mode = #tpu.pipeline_mode<synchronous>, transform_indices = @transform_1, window_bounds = array<i64: 3, 144, 128>}, {pipeline_mode = #tpu.pipeline_mode<synchronous>, transform_indices = @transform_2, window_bounds = array<i64: 1, 128>}, {pipeline_mode = #tpu.pipeline_mode<synchronous>, transform_indices = @transform_3, window_bounds = array<i64: 128, 128>}, {transform_indices = @transform_4, window_bounds = array<i64: 1, 8, 128>}]} {
    %c0 = arith.constant 0 : index
    %c0_0 = arith.constant 0 : index
    %c0_1 = arith.constant 0 : index
    %c0_2 = arith.constant 0 : index
    %0 = vector.load %arg1[%c0, %c0_0, %c0_1, %c0_2] : memref<1x2x9x144xf32, #tpu.memory_space<vmem>>, vector<1x1x8x144xf32>
    %1 = vector.shape_cast %0 : vector<1x1x8x144xf32> to vector<8x144xf32>
    %c0_3 = arith.constant 0 : index
    %c0_4 = arith.constant 0 : index
    %c0_5 = arith.constant 0 : index
    %2 = vector.load %arg2[%c0_3, %c0_4, %c0_5] : memref<3x144x128xf32, #tpu.memory_space<vmem>>, vector<1x144x128xf32>
    %3 = vector.shape_cast %2 : vector<1x144x128xf32> to vector<144x128xf32>
    %cst = arith.constant dense<0.000000e+00> : vector<8x128xf32>
    %4 = tpu.matmul %1, %3, %cst {dimension_numbers = #tpu.dot_dimension_numbers<[1], [0], [0], [1], [0, 0, 1, 1], [], []>} : vector<8x144xf32>, vector<144x128xf32>, vector<8x128xf32> -> vector<8x128xf32>
    %c0_6 = arith.constant 0 : index
    %c1 = arith.constant 1 : index
    %c0_7 = arith.constant 0 : index
    %c0_8 = arith.constant 0 : index
    %5 = vector.load %arg1[%c0_6, %c1, %c0_7, %c0_8] : memref<1x2x9x144xf32, #tpu.memory_space<vmem>>, vector<1x1x8x144xf32>
    %6 = vector.shape_cast %5 : vector<1x1x8x144xf32> to vector<8x144xf32>
    %c1_9 = arith.constant 1 : index
    %c0_10 = arith.constant 0 : index
    %c0_11 = arith.constant 0 : index
    %7 = vector.load %arg2[%c1_9, %c0_10, %c0_11] : memref<3x144x128xf32, #tpu.memory_space<vmem>>, vector<1x144x128xf32>
    %8 = vector.shape_cast %7 : vector<1x144x128xf32> to vector<144x128xf32>
    %cst_12 = arith.constant dense<0.000000e+00> : vector<8x128xf32>
    %9 = tpu.matmul %6, %8, %cst_12 {dimension_numbers = #tpu.dot_dimension_numbers<[1], [0], [0], [1], [0, 0, 1, 1], [], []>} : vector<8x144xf32>, vector<144x128xf32>, vector<8x128xf32> -> vector<8x128xf32>
    %10 = arith.addf %4, %9 : vector<8x128xf32>
    %c0_13 = arith.constant 0 : index
    %c0_14 = arith.constant 0 : index
    %c1_15 = arith.constant 1 : index
    %c0_16 = arith.constant 0 : index
    %11 = vector.load %arg1[%c0_13, %c0_14, %c1_15, %c0_16] : memref<1x2x9x144xf32, #tpu.memory_space<vmem>>, vector<1x1x8x144xf32>
    %12 = vector.shape_cast %11 : vector<1x1x8x144xf32> to vector<8x144xf32>
    %c2 = arith.constant 2 : index
    %c0_17 = arith.constant 0 : index
    %c0_18 = arith.constant 0 : index
    %13 = vector.load %arg2[%c2, %c0_17, %c0_18] : memref<3x144x128xf32, #tpu.memory_space<vmem>>, vector<1x144x128xf32>
    %14 = vector.shape_cast %13 : vector<1x144x128xf32> to vector<144x128xf32>
    %cst_19 = arith.constant dense<0.000000e+00> : vector<8x128xf32>
    %15 = tpu.matmul %12, %14, %cst_19 {dimension_numbers = #tpu.dot_dimension_numbers<[1], [0], [0], [1], [0, 0, 1, 1], [], []>} : vector<8x144xf32>, vector<144x128xf32>, vector<8x128xf32> -> vector<8x128xf32>
    %16 = arith.addf %10, %15 : vector<8x128xf32>
    %c0_20 = arith.constant 0 : index
    %c0_21 = arith.constant 0 : index
    %17 = vector.load %arg3[%c0_20, %c0_21] : memref<1x128xf32, #tpu.memory_space<vmem>>, vector<1x128xf32>
    %18 = vector.broadcast %17 : vector<1x128xf32> to vector<8x128xf32>
    %19 = arith.addf %16, %18 : vector<8x128xf32>
    %c0_22 = arith.constant 0 : index
    %c0_23 = arith.constant 0 : index
    %20 = vector.load %arg4[%c0_22, %c0_23] : memref<128x128xf32, #tpu.memory_space<vmem>>, vector<128x128xf32>
    %cst_24 = arith.constant dense<0.000000e+00> : vector<8x128xf32>
    %21 = tpu.matmul %19, %20, %cst_24 {dimension_numbers = #tpu.dot_dimension_numbers<[1], [0], [0], [1], [0, 0, 1, 1], [], []>} : vector<8x128xf32>, vector<128x128xf32>, vector<8x128xf32> -> vector<8x128xf32>
    %22 = arith.mulf %19, %19 : vector<8x128xf32>
    %c0_25 = arith.constant 0 : index
    %c0_26 = arith.constant 0 : index
    %23 = vector.load %arg4[%c0_25, %c0_26] : memref<128x128xf32, #tpu.memory_space<vmem>>, vector<128x128xf32>
    %cst_27 = arith.constant dense<0.000000e+00> : vector<8x128xf32>
    %24 = tpu.matmul %22, %23, %cst_27 {dimension_numbers = #tpu.dot_dimension_numbers<[1], [0], [0], [1], [0, 0, 1, 1], [], []>} : vector<8x128xf32>, vector<128x128xf32>, vector<8x128xf32> -> vector<8x128xf32>
    %cst_28 = arith.constant dense<0.000000e+00> : vector<128xf32>
    %25 = vector.multi_reduction <add>, %21, %cst_28 [0] : vector<8x128xf32> to vector<128xf32>
    %26 = vector.shape_cast %25 : vector<128xf32> to vector<1x128xf32>
    %cst_29 = arith.constant dense<0.000000e+00> : vector<128xf32>
    %27 = vector.multi_reduction <add>, %24, %cst_29 [0] : vector<8x128xf32> to vector<128xf32>
    %28 = vector.shape_cast %27 : vector<128xf32> to vector<1x128xf32>
    %29 = arith.mulf %26, %26 : vector<1x128xf32>
    %30 = arith.subf %28, %29 : vector<1x128xf32>
    %31 = vector.broadcast %26 : vector<1x128xf32> to vector<8x128xf32>
    %32 = arith.subf %19, %31 : vector<8x128xf32>
    %cst_30 = arith.constant 9.99999974E-6 : f32
    %33 = vector.broadcast %cst_30 : f32 to vector<1x128xf32>
    %34 = arith.addf %30, %33 : vector<1x128xf32>
    %35 = math.rsqrt %34 : vector<1x128xf32>
    %36 = vector.broadcast %35 : vector<1x128xf32> to vector<8x128xf32>
    %37 = arith.mulf %32, %36 : vector<8x128xf32>
    %cst_31 = arith.constant 0.000000e+00 : f32
    %38 = vector.broadcast %cst_31 : f32 to vector<8x128xf32>
    %39 = arith.maximumf %37, %38 : vector<8x128xf32>
    %c0_32 = arith.constant 0 : index
    %c0_33 = arith.constant 0 : index
    %c0_34 = arith.constant 0 : index
    %40 = vector.load %arg5[%c0_32, %c0_33, %c0_34] : memref<1x8x128xf32, #tpu.memory_space<vmem>>, vector<1x8x128xf32>
    %41 = vector.shape_cast %40 : vector<1x8x128xf32> to vector<8x128xf32>
    %42 = vector.shape_cast %39 : vector<8x128xf32> to vector<1x8x128xf32>
    tpu.vector_store %arg5[%c0_32, %c0_33, %c0_34], %42 {strides = array<i32>} : memref<1x8x128xf32, #tpu.memory_space<vmem>>, vector<1x8x128xf32>,
    return
  }
  func.func @transform_0(%arg0: i32) -> (i32, i32, i32, i32) {
    %c0_i32 = arith.constant 0 : i32
    %c0_i32_0 = arith.constant 0 : i32
    %c0_i32_1 = arith.constant 0 : i32
    %c0_i32_2 = arith.constant 0 : i32
    return %arg0, %c0_i32, %c0_i32_0, %c0_i32_1 : i32, i32, i32, i32
  }
  func.func @transform_1(%arg0: i32) -> (i32, i32, i32) {
    %c0_i32 = arith.constant 0 : i32
    %c0_i32_0 = arith.constant 0 : i32
    %c0_i32_1 = arith.constant 0 : i32
    %c0_i32_2 = arith.constant 0 : i32
    return %c0_i32, %c0_i32_0, %c0_i32_1 : i32, i32, i32
  }
  func.func @transform_2(%arg0: i32) -> (i32, i32) {
    %c0_i32 = arith.constant 0 : i32
    %c0_i32_0 = arith.constant 0 : i32
    %c0_i32_1 = arith.constant 0 : i32
    return %c0_i32, %c0_i32_0 : i32, i32
  }
  func.func @transform_3(%arg0: i32) -> (i32, i32) {
    %c0_i32 = arith.constant 0 : i32
    %c0_i32_0 = arith.constant 0 : i32
    %c0_i32_1 = arith.constant 0 : i32
    return %c0_i32, %c0_i32_0 : i32, i32
  }
  func.func @transform_4(%arg0: i32) -> (i32, i32, i32) {
    %c0_i32 = arith.constant 0 : i32
    %c0_i32_0 = arith.constant 0 : i32
    %c0_i32_1 = arith.constant 0 : i32
    return %arg0, %c0_i32, %c0_i32_0 : i32, i32, i32
  }
}

module attributes {stable_mosaic.version = 11 : i64} {
  func.func @_fused_conv_kernel(%arg0: i32, %arg1: memref<1x2x5x160xf32, #tpu.memory_space<vmem>>, %arg2: memref<3x160x128xf32, #tpu.memory_space<vmem>>, %arg3: memref<1x128xf32, #tpu.memory_space<vmem>>, %arg4: memref<128x128xf32, #tpu.memory_space<vmem>>, %arg5: memref<1x4x128xf32, #tpu.memory_space<vmem>>) attributes {dimension_semantics = [#tpu.dimension_semantics<parallel>], iteration_bounds = array<i64: 2>, scalar_prefetch = 0 : i64, scratch_operands = 0 : i64, tpu.core_type = #tpu.core_type<tc>, window_params = [{transform_indices = @transform_0, window_bounds = array<i64: 1, 2, 5, 160>}, {pipeline_mode = #tpu.pipeline_mode<synchronous>, transform_indices = @transform_1, window_bounds = array<i64: 3, 160, 128>}, {pipeline_mode = #tpu.pipeline_mode<synchronous>, transform_indices = @transform_2, window_bounds = array<i64: 1, 128>}, {pipeline_mode = #tpu.pipeline_mode<synchronous>, transform_indices = @transform_3, window_bounds = array<i64: 128, 128>}, {transform_indices = @transform_4, window_bounds = array<i64: 1, 4, 128>}]} {
    %c0 = arith.constant 0 : index
    %c0_0 = arith.constant 0 : index
    %c0_1 = arith.constant 0 : index
    %c0_2 = arith.constant 0 : index
    %0 = vector.load %arg1[%c0, %c0_0, %c0_1, %c0_2] : memref<1x2x5x160xf32, #tpu.memory_space<vmem>>, vector<1x1x4x160xf32>
    %1 = vector.shape_cast %0 : vector<1x1x4x160xf32> to vector<4x160xf32>
    %c0_3 = arith.constant 0 : index
    %c0_4 = arith.constant 0 : index
    %c0_5 = arith.constant 0 : index
    %2 = vector.load %arg2[%c0_3, %c0_4, %c0_5] : memref<3x160x128xf32, #tpu.memory_space<vmem>>, vector<1x160x128xf32>
    %3 = vector.shape_cast %2 : vector<1x160x128xf32> to vector<160x128xf32>
    %cst = arith.constant dense<0.000000e+00> : vector<4x128xf32>
    %4 = tpu.matmul %1, %3, %cst {dimension_numbers = #tpu.dot_dimension_numbers<[1], [0], [0], [1], [0, 0, 1, 1], [], []>} : vector<4x160xf32>, vector<160x128xf32>, vector<4x128xf32> -> vector<4x128xf32>
    %c0_6 = arith.constant 0 : index
    %c1 = arith.constant 1 : index
    %c0_7 = arith.constant 0 : index
    %c0_8 = arith.constant 0 : index
    %5 = vector.load %arg1[%c0_6, %c1, %c0_7, %c0_8] : memref<1x2x5x160xf32, #tpu.memory_space<vmem>>, vector<1x1x4x160xf32>
    %6 = vector.shape_cast %5 : vector<1x1x4x160xf32> to vector<4x160xf32>
    %c1_9 = arith.constant 1 : index
    %c0_10 = arith.constant 0 : index
    %c0_11 = arith.constant 0 : index
    %7 = vector.load %arg2[%c1_9, %c0_10, %c0_11] : memref<3x160x128xf32, #tpu.memory_space<vmem>>, vector<1x160x128xf32>
    %8 = vector.shape_cast %7 : vector<1x160x128xf32> to vector<160x128xf32>
    %cst_12 = arith.constant dense<0.000000e+00> : vector<4x128xf32>
    %9 = tpu.matmul %6, %8, %cst_12 {dimension_numbers = #tpu.dot_dimension_numbers<[1], [0], [0], [1], [0, 0, 1, 1], [], []>} : vector<4x160xf32>, vector<160x128xf32>, vector<4x128xf32> -> vector<4x128xf32>
    %10 = arith.addf %4, %9 : vector<4x128xf32>
    %c0_13 = arith.constant 0 : index
    %c0_14 = arith.constant 0 : index
    %c1_15 = arith.constant 1 : index
    %c0_16 = arith.constant 0 : index
    %11 = vector.load %arg1[%c0_13, %c0_14, %c1_15, %c0_16] : memref<1x2x5x160xf32, #tpu.memory_space<vmem>>, vector<1x1x4x160xf32>
    %12 = vector.shape_cast %11 : vector<1x1x4x160xf32> to vector<4x160xf32>
    %c2 = arith.constant 2 : index
    %c0_17 = arith.constant 0 : index
    %c0_18 = arith.constant 0 : index
    %13 = vector.load %arg2[%c2, %c0_17, %c0_18] : memref<3x160x128xf32, #tpu.memory_space<vmem>>, vector<1x160x128xf32>
    %14 = vector.shape_cast %13 : vector<1x160x128xf32> to vector<160x128xf32>
    %cst_19 = arith.constant dense<0.000000e+00> : vector<4x128xf32>
    %15 = tpu.matmul %12, %14, %cst_19 {dimension_numbers = #tpu.dot_dimension_numbers<[1], [0], [0], [1], [0, 0, 1, 1], [], []>} : vector<4x160xf32>, vector<160x128xf32>, vector<4x128xf32> -> vector<4x128xf32>
    %16 = arith.addf %10, %15 : vector<4x128xf32>
    %c0_20 = arith.constant 0 : index
    %c0_21 = arith.constant 0 : index
    %17 = vector.load %arg3[%c0_20, %c0_21] : memref<1x128xf32, #tpu.memory_space<vmem>>, vector<1x128xf32>
    %18 = vector.broadcast %17 : vector<1x128xf32> to vector<4x128xf32>
    %19 = arith.addf %16, %18 : vector<4x128xf32>
    %c0_22 = arith.constant 0 : index
    %c0_23 = arith.constant 0 : index
    %20 = vector.load %arg4[%c0_22, %c0_23] : memref<128x128xf32, #tpu.memory_space<vmem>>, vector<128x128xf32>
    %cst_24 = arith.constant dense<0.000000e+00> : vector<4x128xf32>
    %21 = tpu.matmul %19, %20, %cst_24 {dimension_numbers = #tpu.dot_dimension_numbers<[1], [0], [0], [1], [0, 0, 1, 1], [], []>} : vector<4x128xf32>, vector<128x128xf32>, vector<4x128xf32> -> vector<4x128xf32>
    %22 = arith.mulf %19, %19 : vector<4x128xf32>
    %c0_25 = arith.constant 0 : index
    %c0_26 = arith.constant 0 : index
    %23 = vector.load %arg4[%c0_25, %c0_26] : memref<128x128xf32, #tpu.memory_space<vmem>>, vector<128x128xf32>
    %cst_27 = arith.constant dense<0.000000e+00> : vector<4x128xf32>
    %24 = tpu.matmul %22, %23, %cst_27 {dimension_numbers = #tpu.dot_dimension_numbers<[1], [0], [0], [1], [0, 0, 1, 1], [], []>} : vector<4x128xf32>, vector<128x128xf32>, vector<4x128xf32> -> vector<4x128xf32>
    %cst_28 = arith.constant dense<0.000000e+00> : vector<128xf32>
    %25 = vector.multi_reduction <add>, %21, %cst_28 [0] : vector<4x128xf32> to vector<128xf32>
    %26 = vector.shape_cast %25 : vector<128xf32> to vector<1x128xf32>
    %cst_29 = arith.constant dense<0.000000e+00> : vector<128xf32>
    %27 = vector.multi_reduction <add>, %24, %cst_29 [0] : vector<4x128xf32> to vector<128xf32>
    %28 = vector.shape_cast %27 : vector<128xf32> to vector<1x128xf32>
    %29 = arith.mulf %26, %26 : vector<1x128xf32>
    %30 = arith.subf %28, %29 : vector<1x128xf32>
    %31 = vector.broadcast %26 : vector<1x128xf32> to vector<4x128xf32>
    %32 = arith.subf %19, %31 : vector<4x128xf32>
    %cst_30 = arith.constant 9.99999974E-6 : f32
    %33 = vector.broadcast %cst_30 : f32 to vector<1x128xf32>
    %34 = arith.addf %30, %33 : vector<1x128xf32>
    %35 = math.rsqrt %34 : vector<1x128xf32>
    %36 = vector.broadcast %35 : vector<1x128xf32> to vector<4x128xf32>
    %37 = arith.mulf %32, %36 : vector<4x128xf32>
    %cst_31 = arith.constant 0.000000e+00 : f32
    %38 = vector.broadcast %cst_31 : f32 to vector<4x128xf32>
    %39 = arith.maximumf %37, %38 : vector<4x128xf32>
    %c0_32 = arith.constant 0 : index
    %c0_33 = arith.constant 0 : index
    %c0_34 = arith.constant 0 : index
    %40 = vector.load %arg5[%c0_32, %c0_33, %c0_34] : memref<1x4x128xf32, #tpu.memory_space<vmem>>, vector<1x4x128xf32>
    %41 = vector.shape_cast %40 : vector<1x4x128xf32> to vector<4x128xf32>
    %42 = vector.shape_cast %39 : vector<4x128xf32> to vector<1x4x128xf32>
    tpu.vector_store %arg5[%c0_32, %c0_33, %c0_34], %42 {strides = array<i32>} : memref<1x4x128xf32, #tpu.memory_space<vmem>>, vector<1x4x128xf32>,
    return
  }
  func.func @transform_0(%arg0: i32) -> (i32, i32, i32, i32) {
    %c0_i32 = arith.constant 0 : i32
    %c0_i32_0 = arith.constant 0 : i32
    %c0_i32_1 = arith.constant 0 : i32
    %c0_i32_2 = arith.constant 0 : i32
    return %arg0, %c0_i32, %c0_i32_0, %c0_i32_1 : i32, i32, i32, i32
  }
  func.func @transform_1(%arg0: i32) -> (i32, i32, i32) {
    %c0_i32 = arith.constant 0 : i32
    %c0_i32_0 = arith.constant 0 : i32
    %c0_i32_1 = arith.constant 0 : i32
    %c0_i32_2 = arith.constant 0 : i32
    return %c0_i32, %c0_i32_0, %c0_i32_1 : i32, i32, i32
  }
  func.func @transform_2(%arg0: i32) -> (i32, i32) {
    %c0_i32 = arith.constant 0 : i32
    %c0_i32_0 = arith.constant 0 : i32
    %c0_i32_1 = arith.constant 0 : i32
    return %c0_i32, %c0_i32_0 : i32, i32
  }
  func.func @transform_3(%arg0: i32) -> (i32, i32) {
    %c0_i32 = arith.constant 0 : i32
    %c0_i32_0 = arith.constant 0 : i32
    %c0_i32_1 = arith.constant 0 : i32
    return %c0_i32, %c0_i32_0 : i32, i32
  }
  func.func @transform_4(%arg0: i32) -> (i32, i32, i32) {
    %c0_i32 = arith.constant 0 : i32
    %c0_i32_0 = arith.constant 0 : i32
    %c0_i32_1 = arith.constant 0 : i32
    return %arg0, %c0_i32, %c0_i32_0 : i32, i32, i32
  }
}

module attributes {stable_mosaic.version = 11 : i64} {
  func.func @_fused_conv_kernel(%arg0: i32, %arg1: memref<1x6x192xf32, #tpu.memory_space<vmem>>, %arg2: memref<3x192x128xf32, #tpu.memory_space<vmem>>, %arg3: memref<1x128xf32, #tpu.memory_space<vmem>>, %arg4: memref<128x128xf32, #tpu.memory_space<vmem>>, %arg5: memref<1x4x128xf32, #tpu.memory_space<vmem>>) attributes {dimension_semantics = [#tpu.dimension_semantics<parallel>], iteration_bounds = array<i64: 2>, scalar_prefetch = 0 : i64, scratch_operands = 0 : i64, tpu.core_type = #tpu.core_type<tc>, window_params = [{transform_indices = @transform_0, window_bounds = array<i64: 1, 6, 192>}, {pipeline_mode = #tpu.pipeline_mode<synchronous>, transform_indices = @transform_1, window_bounds = array<i64: 3, 192, 128>}, {pipeline_mode = #tpu.pipeline_mode<synchronous>, transform_indices = @transform_2, window_bounds = array<i64: 1, 128>}, {pipeline_mode = #tpu.pipeline_mode<synchronous>, transform_indices = @transform_3, window_bounds = array<i64: 128, 128>}, {transform_indices = @transform_4, window_bounds = array<i64: 1, 4, 128>}]} {
    %c0 = arith.constant 0 : index
    %c0_0 = arith.constant 0 : index
    %c0_1 = arith.constant 0 : index
    %0 = vector.load %arg1[%c0, %c0_0, %c0_1] : memref<1x6x192xf32, #tpu.memory_space<vmem>>, vector<1x4x192xf32>
    %1 = vector.shape_cast %0 : vector<1x4x192xf32> to vector<4x192xf32>
    %c0_2 = arith.constant 0 : index
    %c0_3 = arith.constant 0 : index
    %c0_4 = arith.constant 0 : index
    %2 = vector.load %arg2[%c0_2, %c0_3, %c0_4] : memref<3x192x128xf32, #tpu.memory_space<vmem>>, vector<1x192x128xf32>
    %3 = vector.shape_cast %2 : vector<1x192x128xf32> to vector<192x128xf32>
    %cst = arith.constant dense<0.000000e+00> : vector<4x128xf32>
    %4 = tpu.matmul %1, %3, %cst {dimension_numbers = #tpu.dot_dimension_numbers<[1], [0], [0], [1], [0, 0, 1, 1], [], []>} : vector<4x192xf32>, vector<192x128xf32>, vector<4x128xf32> -> vector<4x128xf32>
    %c0_5 = arith.constant 0 : index
    %c1 = arith.constant 1 : index
    %c0_6 = arith.constant 0 : index
    %5 = vector.load %arg1[%c0_5, %c1, %c0_6] : memref<1x6x192xf32, #tpu.memory_space<vmem>>, vector<1x4x192xf32>
    %6 = vector.shape_cast %5 : vector<1x4x192xf32> to vector<4x192xf32>
    %c1_7 = arith.constant 1 : index
    %c0_8 = arith.constant 0 : index
    %c0_9 = arith.constant 0 : index
    %7 = vector.load %arg2[%c1_7, %c0_8, %c0_9] : memref<3x192x128xf32, #tpu.memory_space<vmem>>, vector<1x192x128xf32>
    %8 = vector.shape_cast %7 : vector<1x192x128xf32> to vector<192x128xf32>
    %cst_10 = arith.constant dense<0.000000e+00> : vector<4x128xf32>
    %9 = tpu.matmul %6, %8, %cst_10 {dimension_numbers = #tpu.dot_dimension_numbers<[1], [0], [0], [1], [0, 0, 1, 1], [], []>} : vector<4x192xf32>, vector<192x128xf32>, vector<4x128xf32> -> vector<4x128xf32>
    %10 = arith.addf %4, %9 : vector<4x128xf32>
    %c0_11 = arith.constant 0 : index
    %c2 = arith.constant 2 : index
    %c0_12 = arith.constant 0 : index
    %11 = vector.load %arg1[%c0_11, %c2, %c0_12] : memref<1x6x192xf32, #tpu.memory_space<vmem>>, vector<1x4x192xf32>
    %12 = vector.shape_cast %11 : vector<1x4x192xf32> to vector<4x192xf32>
    %c2_13 = arith.constant 2 : index
    %c0_14 = arith.constant 0 : index
    %c0_15 = arith.constant 0 : index
    %13 = vector.load %arg2[%c2_13, %c0_14, %c0_15] : memref<3x192x128xf32, #tpu.memory_space<vmem>>, vector<1x192x128xf32>
    %14 = vector.shape_cast %13 : vector<1x192x128xf32> to vector<192x128xf32>
    %cst_16 = arith.constant dense<0.000000e+00> : vector<4x128xf32>
    %15 = tpu.matmul %12, %14, %cst_16 {dimension_numbers = #tpu.dot_dimension_numbers<[1], [0], [0], [1], [0, 0, 1, 1], [], []>} : vector<4x192xf32>, vector<192x128xf32>, vector<4x128xf32> -> vector<4x128xf32>
    %16 = arith.addf %10, %15 : vector<4x128xf32>
    %c0_17 = arith.constant 0 : index
    %c0_18 = arith.constant 0 : index
    %17 = vector.load %arg3[%c0_17, %c0_18] : memref<1x128xf32, #tpu.memory_space<vmem>>, vector<1x128xf32>
    %18 = vector.broadcast %17 : vector<1x128xf32> to vector<4x128xf32>
    %19 = arith.addf %16, %18 : vector<4x128xf32>
    %c0_19 = arith.constant 0 : index
    %c0_20 = arith.constant 0 : index
    %20 = vector.load %arg4[%c0_19, %c0_20] : memref<128x128xf32, #tpu.memory_space<vmem>>, vector<128x128xf32>
    %cst_21 = arith.constant dense<0.000000e+00> : vector<4x128xf32>
    %21 = tpu.matmul %19, %20, %cst_21 {dimension_numbers = #tpu.dot_dimension_numbers<[1], [0], [0], [1], [0, 0, 1, 1], [], []>} : vector<4x128xf32>, vector<128x128xf32>, vector<4x128xf32> -> vector<4x128xf32>
    %22 = arith.mulf %19, %19 : vector<4x128xf32>
    %c0_22 = arith.constant 0 : index
    %c0_23 = arith.constant 0 : index
    %23 = vector.load %arg4[%c0_22, %c0_23] : memref<128x128xf32, #tpu.memory_space<vmem>>, vector<128x128xf32>
    %cst_24 = arith.constant dense<0.000000e+00> : vector<4x128xf32>
    %24 = tpu.matmul %22, %23, %cst_24 {dimension_numbers = #tpu.dot_dimension_numbers<[1], [0], [0], [1], [0, 0, 1, 1], [], []>} : vector<4x128xf32>, vector<128x128xf32>, vector<4x128xf32> -> vector<4x128xf32>
    %cst_25 = arith.constant dense<0.000000e+00> : vector<128xf32>
    %25 = vector.multi_reduction <add>, %21, %cst_25 [0] : vector<4x128xf32> to vector<128xf32>
    %26 = vector.shape_cast %25 : vector<128xf32> to vector<1x128xf32>
    %cst_26 = arith.constant dense<0.000000e+00> : vector<128xf32>
    %27 = vector.multi_reduction <add>, %24, %cst_26 [0] : vector<4x128xf32> to vector<128xf32>
    %28 = vector.shape_cast %27 : vector<128xf32> to vector<1x128xf32>
    %29 = arith.mulf %26, %26 : vector<1x128xf32>
    %30 = arith.subf %28, %29 : vector<1x128xf32>
    %31 = vector.broadcast %26 : vector<1x128xf32> to vector<4x128xf32>
    %32 = arith.subf %19, %31 : vector<4x128xf32>
    %cst_27 = arith.constant 9.99999974E-6 : f32
    %33 = vector.broadcast %cst_27 : f32 to vector<1x128xf32>
    %34 = arith.addf %30, %33 : vector<1x128xf32>
    %35 = math.rsqrt %34 : vector<1x128xf32>
    %36 = vector.broadcast %35 : vector<1x128xf32> to vector<4x128xf32>
    %37 = arith.mulf %32, %36 : vector<4x128xf32>
    %cst_28 = arith.constant 0.000000e+00 : f32
    %38 = vector.broadcast %cst_28 : f32 to vector<4x128xf32>
    %39 = arith.maximumf %37, %38 : vector<4x128xf32>
    %c0_29 = arith.constant 0 : index
    %c0_30 = arith.constant 0 : index
    %c0_31 = arith.constant 0 : index
    %40 = vector.load %arg5[%c0_29, %c0_30, %c0_31] : memref<1x4x128xf32, #tpu.memory_space<vmem>>, vector<1x4x128xf32>
    %41 = vector.shape_cast %40 : vector<1x4x128xf32> to vector<4x128xf32>
    %42 = vector.shape_cast %39 : vector<4x128xf32> to vector<1x4x128xf32>
    tpu.vector_store %arg5[%c0_29, %c0_30, %c0_31], %42 {strides = array<i32>} : memref<1x4x128xf32, #tpu.memory_space<vmem>>, vector<1x4x128xf32>,
    return
  }
  func.func @transform_0(%arg0: i32) -> (i32, i32, i32) {
    %c0_i32 = arith.constant 0 : i32
    %c0_i32_0 = arith.constant 0 : i32
    %c0_i32_1 = arith.constant 0 : i32
    return %arg0, %c0_i32, %c0_i32_0 : i32, i32, i32
  }
  func.func @transform_1(%arg0: i32) -> (i32, i32, i32) {
    %c0_i32 = arith.constant 0 : i32
    %c0_i32_0 = arith.constant 0 : i32
    %c0_i32_1 = arith.constant 0 : i32
    %c0_i32_2 = arith.constant 0 : i32
    return %c0_i32, %c0_i32_0, %c0_i32_1 : i32, i32, i32
  }
  func.func @transform_2(%arg0: i32) -> (i32, i32) {
    %c0_i32 = arith.constant 0 : i32
    %c0_i32_0 = arith.constant 0 : i32
    %c0_i32_1 = arith.constant 0 : i32
    return %c0_i32, %c0_i32_0 : i32, i32
  }
  func.func @transform_3(%arg0: i32) -> (i32, i32) {
    %c0_i32 = arith.constant 0 : i32
    %c0_i32_0 = arith.constant 0 : i32
    %c0_i32_1 = arith.constant 0 : i32
    return %c0_i32, %c0_i32_0 : i32, i32
  }
  func.func @transform_4(%arg0: i32) -> (i32, i32, i32) {
    %c0_i32 = arith.constant 0 : i32
    %c0_i32_0 = arith.constant 0 : i32
    %c0_i32_1 = arith.constant 0 : i32
    return %arg0, %c0_i32, %c0_i32_0 : i32, i32, i32
  }
}

module attributes {stable_mosaic.version = 11 : i64} {
  func.func @_fused_conv_kernel(%arg0: i32, %arg1: memref<1x6x192xf32, #tpu.memory_space<vmem>>, %arg2: memref<3x192x128xf32, #tpu.memory_space<vmem>>, %arg3: memref<1x128xf32, #tpu.memory_space<vmem>>, %arg4: memref<128x128xf32, #tpu.memory_space<vmem>>, %arg5: memref<1x4x128xf32, #tpu.memory_space<vmem>>, %arg6: memref<1x4x128xf32, #tpu.memory_space<vmem>>) attributes {dimension_semantics = [#tpu.dimension_semantics<parallel>], iteration_bounds = array<i64: 2>, scalar_prefetch = 0 : i64, scratch_operands = 0 : i64, tpu.core_type = #tpu.core_type<tc>, window_params = [{transform_indices = @transform_0, window_bounds = array<i64: 1, 6, 192>}, {pipeline_mode = #tpu.pipeline_mode<synchronous>, transform_indices = @transform_1, window_bounds = array<i64: 3, 192, 128>}, {pipeline_mode = #tpu.pipeline_mode<synchronous>, transform_indices = @transform_2, window_bounds = array<i64: 1, 128>}, {pipeline_mode = #tpu.pipeline_mode<synchronous>, transform_indices = @transform_3, window_bounds = array<i64: 128, 128>}, {transform_indices = @transform_4, window_bounds = array<i64: 1, 4, 128>}, {transform_indices = @transform_5, window_bounds = array<i64: 1, 4, 128>}]} {
    %c0 = arith.constant 0 : index
    %c0_0 = arith.constant 0 : index
    %c0_1 = arith.constant 0 : index
    %0 = vector.load %arg1[%c0, %c0_0, %c0_1] : memref<1x6x192xf32, #tpu.memory_space<vmem>>, vector<1x4x192xf32>
    %1 = vector.shape_cast %0 : vector<1x4x192xf32> to vector<4x192xf32>
    %c0_2 = arith.constant 0 : index
    %c0_3 = arith.constant 0 : index
    %c0_4 = arith.constant 0 : index
    %2 = vector.load %arg2[%c0_2, %c0_3, %c0_4] : memref<3x192x128xf32, #tpu.memory_space<vmem>>, vector<1x192x128xf32>
    %3 = vector.shape_cast %2 : vector<1x192x128xf32> to vector<192x128xf32>
    %cst = arith.constant dense<0.000000e+00> : vector<4x128xf32>
    %4 = tpu.matmul %1, %3, %cst {dimension_numbers = #tpu.dot_dimension_numbers<[1], [0], [0], [1], [0, 0, 1, 1], [], []>} : vector<4x192xf32>, vector<192x128xf32>, vector<4x128xf32> -> vector<4x128xf32>
    %c0_5 = arith.constant 0 : index
    %c1 = arith.constant 1 : index
    %c0_6 = arith.constant 0 : index
    %5 = vector.load %arg1[%c0_5, %c1, %c0_6] : memref<1x6x192xf32, #tpu.memory_space<vmem>>, vector<1x4x192xf32>
    %6 = vector.shape_cast %5 : vector<1x4x192xf32> to vector<4x192xf32>
    %c1_7 = arith.constant 1 : index
    %c0_8 = arith.constant 0 : index
    %c0_9 = arith.constant 0 : index
    %7 = vector.load %arg2[%c1_7, %c0_8, %c0_9] : memref<3x192x128xf32, #tpu.memory_space<vmem>>, vector<1x192x128xf32>
    %8 = vector.shape_cast %7 : vector<1x192x128xf32> to vector<192x128xf32>
    %cst_10 = arith.constant dense<0.000000e+00> : vector<4x128xf32>
    %9 = tpu.matmul %6, %8, %cst_10 {dimension_numbers = #tpu.dot_dimension_numbers<[1], [0], [0], [1], [0, 0, 1, 1], [], []>} : vector<4x192xf32>, vector<192x128xf32>, vector<4x128xf32> -> vector<4x128xf32>
    %10 = arith.addf %4, %9 : vector<4x128xf32>
    %c0_11 = arith.constant 0 : index
    %c2 = arith.constant 2 : index
    %c0_12 = arith.constant 0 : index
    %11 = vector.load %arg1[%c0_11, %c2, %c0_12] : memref<1x6x192xf32, #tpu.memory_space<vmem>>, vector<1x4x192xf32>
    %12 = vector.shape_cast %11 : vector<1x4x192xf32> to vector<4x192xf32>
    %c2_13 = arith.constant 2 : index
    %c0_14 = arith.constant 0 : index
    %c0_15 = arith.constant 0 : index
    %13 = vector.load %arg2[%c2_13, %c0_14, %c0_15] : memref<3x192x128xf32, #tpu.memory_space<vmem>>, vector<1x192x128xf32>
    %14 = vector.shape_cast %13 : vector<1x192x128xf32> to vector<192x128xf32>
    %cst_16 = arith.constant dense<0.000000e+00> : vector<4x128xf32>
    %15 = tpu.matmul %12, %14, %cst_16 {dimension_numbers = #tpu.dot_dimension_numbers<[1], [0], [0], [1], [0, 0, 1, 1], [], []>} : vector<4x192xf32>, vector<192x128xf32>, vector<4x128xf32> -> vector<4x128xf32>
    %16 = arith.addf %10, %15 : vector<4x128xf32>
    %c0_17 = arith.constant 0 : index
    %c0_18 = arith.constant 0 : index
    %17 = vector.load %arg3[%c0_17, %c0_18] : memref<1x128xf32, #tpu.memory_space<vmem>>, vector<1x128xf32>
    %18 = vector.broadcast %17 : vector<1x128xf32> to vector<4x128xf32>
    %19 = arith.addf %16, %18 : vector<4x128xf32>
    %c0_19 = arith.constant 0 : index
    %c0_20 = arith.constant 0 : index
    %20 = vector.load %arg4[%c0_19, %c0_20] : memref<128x128xf32, #tpu.memory_space<vmem>>, vector<128x128xf32>
    %cst_21 = arith.constant dense<0.000000e+00> : vector<4x128xf32>
    %21 = tpu.matmul %19, %20, %cst_21 {dimension_numbers = #tpu.dot_dimension_numbers<[1], [0], [0], [1], [0, 0, 1, 1], [], []>} : vector<4x128xf32>, vector<128x128xf32>, vector<4x128xf32> -> vector<4x128xf32>
    %22 = arith.mulf %19, %19 : vector<4x128xf32>
    %c0_22 = arith.constant 0 : index
    %c0_23 = arith.constant 0 : index
    %23 = vector.load %arg4[%c0_22, %c0_23] : memref<128x128xf32, #tpu.memory_space<vmem>>, vector<128x128xf32>
    %cst_24 = arith.constant dense<0.000000e+00> : vector<4x128xf32>
    %24 = tpu.matmul %22, %23, %cst_24 {dimension_numbers = #tpu.dot_dimension_numbers<[1], [0], [0], [1], [0, 0, 1, 1], [], []>} : vector<4x128xf32>, vector<128x128xf32>, vector<4x128xf32> -> vector<4x128xf32>
    %cst_25 = arith.constant dense<0.000000e+00> : vector<128xf32>
    %25 = vector.multi_reduction <add>, %21, %cst_25 [0] : vector<4x128xf32> to vector<128xf32>
    %26 = vector.shape_cast %25 : vector<128xf32> to vector<1x128xf32>
    %cst_26 = arith.constant dense<0.000000e+00> : vector<128xf32>
    %27 = vector.multi_reduction <add>, %24, %cst_26 [0] : vector<4x128xf32> to vector<128xf32>
    %28 = vector.shape_cast %27 : vector<128xf32> to vector<1x128xf32>
    %29 = arith.mulf %26, %26 : vector<1x128xf32>
    %30 = arith.subf %28, %29 : vector<1x128xf32>
    %31 = vector.broadcast %26 : vector<1x128xf32> to vector<4x128xf32>
    %32 = arith.subf %19, %31 : vector<4x128xf32>
    %cst_27 = arith.constant 9.99999974E-6 : f32
    %33 = vector.broadcast %cst_27 : f32 to vector<1x128xf32>
    %34 = arith.addf %30, %33 : vector<1x128xf32>
    %35 = math.rsqrt %34 : vector<1x128xf32>
    %36 = vector.broadcast %35 : vector<1x128xf32> to vector<4x128xf32>
    %37 = arith.mulf %32, %36 : vector<4x128xf32>
    %c0_28 = arith.constant 0 : index
    %c0_29 = arith.constant 0 : index
    %c0_30 = arith.constant 0 : index
    %38 = vector.load %arg5[%c0_28, %c0_29, %c0_30] : memref<1x4x128xf32, #tpu.memory_space<vmem>>, vector<1x4x128xf32>
    %39 = vector.shape_cast %38 : vector<1x4x128xf32> to vector<4x128xf32>
    %40 = arith.addf %37, %39 : vector<4x128xf32>
    %c0_31 = arith.constant 0 : index
    %c0_32 = arith.constant 0 : index
    %c0_33 = arith.constant 0 : index
    %41 = vector.load %arg6[%c0_31, %c0_32, %c0_33] : memref<1x4x128xf32, #tpu.memory_space<vmem>>, vector<1x4x128xf32>
    %42 = vector.shape_cast %41 : vector<1x4x128xf32> to vector<4x128xf32>
    %43 = vector.shape_cast %40 : vector<4x128xf32> to vector<1x4x128xf32>
    tpu.vector_store %arg6[%c0_31, %c0_32, %c0_33], %43 {strides = array<i32>} : memref<1x4x128xf32, #tpu.memory_space<vmem>>, vector<1x4x128xf32>,
    return
  }
  func.func @transform_0(%arg0: i32) -> (i32, i32, i32) {
    %c0_i32 = arith.constant 0 : i32
    %c0_i32_0 = arith.constant 0 : i32
    %c0_i32_1 = arith.constant 0 : i32
    return %arg0, %c0_i32, %c0_i32_0 : i32, i32, i32
  }
  func.func @transform_1(%arg0: i32) -> (i32, i32, i32) {
    %c0_i32 = arith.constant 0 : i32
    %c0_i32_0 = arith.constant 0 : i32
    %c0_i32_1 = arith.constant 0 : i32
    %c0_i32_2 = arith.constant 0 : i32
    return %c0_i32, %c0_i32_0, %c0_i32_1 : i32, i32, i32
  }
  func.func @transform_2(%arg0: i32) -> (i32, i32) {
    %c0_i32 = arith.constant 0 : i32
    %c0_i32_0 = arith.constant 0 : i32
    %c0_i32_1 = arith.constant 0 : i32
    return %c0_i32, %c0_i32_0 : i32, i32
  }
  func.func @transform_3(%arg0: i32) -> (i32, i32) {
    %c0_i32 = arith.constant 0 : i32
    %c0_i32_0 = arith.constant 0 : i32
    %c0_i32_1 = arith.constant 0 : i32
    return %c0_i32, %c0_i32_0 : i32, i32
  }
  func.func @transform_4(%arg0: i32) -> (i32, i32, i32) {
    %c0_i32 = arith.constant 0 : i32
    %c0_i32_0 = arith.constant 0 : i32
    %c0_i32_1 = arith.constant 0 : i32
    return %arg0, %c0_i32, %c0_i32_0 : i32, i32, i32
  }
  func.func @transform_5(%arg0: i32) -> (i32, i32, i32) {
    %c0_i32 = arith.constant 0 : i32
    %c0_i32_0 = arith.constant 0 : i32
    %c0_i32_1 = arith.constant 0 : i32
    return %arg0, %c0_i32, %c0_i32_0 : i32, i32, i32
  }
}

module attributes {stable_mosaic.version = 11 : i64} {
  func.func @_fused_conv_kernel(%arg0: i32, %arg1: memref<1x6x192xf32, #tpu.memory_space<vmem>>, %arg2: memref<3x192x128xf32, #tpu.memory_space<vmem>>, %arg3: memref<1x128xf32, #tpu.memory_space<vmem>>, %arg4: memref<128x128xf32, #tpu.memory_space<vmem>>, %arg5: memref<1x4x128xf32, #tpu.memory_space<vmem>>, %arg6: memref<1x4x128xf32, #tpu.memory_space<vmem>>) attributes {dimension_semantics = [#tpu.dimension_semantics<parallel>], iteration_bounds = array<i64: 2>, scalar_prefetch = 0 : i64, scratch_operands = 0 : i64, tpu.core_type = #tpu.core_type<tc>, window_params = [{transform_indices = @transform_0, window_bounds = array<i64: 1, 6, 192>}, {pipeline_mode = #tpu.pipeline_mode<synchronous>, transform_indices = @transform_1, window_bounds = array<i64: 3, 192, 128>}, {pipeline_mode = #tpu.pipeline_mode<synchronous>, transform_indices = @transform_2, window_bounds = array<i64: 1, 128>}, {pipeline_mode = #tpu.pipeline_mode<synchronous>, transform_indices = @transform_3, window_bounds = array<i64: 128, 128>}, {transform_indices = @transform_4, window_bounds = array<i64: 1, 4, 128>}, {transform_indices = @transform_5, window_bounds = array<i64: 1, 4, 128>}]} {
    %c0 = arith.constant 0 : index
    %c0_0 = arith.constant 0 : index
    %c0_1 = arith.constant 0 : index
    %0 = vector.load %arg1[%c0, %c0_0, %c0_1] : memref<1x6x192xf32, #tpu.memory_space<vmem>>, vector<1x4x192xf32>
    %1 = vector.shape_cast %0 : vector<1x4x192xf32> to vector<4x192xf32>
    %c0_2 = arith.constant 0 : index
    %c0_3 = arith.constant 0 : index
    %c0_4 = arith.constant 0 : index
    %2 = vector.load %arg2[%c0_2, %c0_3, %c0_4] : memref<3x192x128xf32, #tpu.memory_space<vmem>>, vector<1x192x128xf32>
    %3 = vector.shape_cast %2 : vector<1x192x128xf32> to vector<192x128xf32>
    %cst = arith.constant dense<0.000000e+00> : vector<4x128xf32>
    %4 = tpu.matmul %1, %3, %cst {dimension_numbers = #tpu.dot_dimension_numbers<[1], [0], [0], [1], [0, 0, 1, 1], [], []>} : vector<4x192xf32>, vector<192x128xf32>, vector<4x128xf32> -> vector<4x128xf32>
    %c0_5 = arith.constant 0 : index
    %c1 = arith.constant 1 : index
    %c0_6 = arith.constant 0 : index
    %5 = vector.load %arg1[%c0_5, %c1, %c0_6] : memref<1x6x192xf32, #tpu.memory_space<vmem>>, vector<1x4x192xf32>
    %6 = vector.shape_cast %5 : vector<1x4x192xf32> to vector<4x192xf32>
    %c1_7 = arith.constant 1 : index
    %c0_8 = arith.constant 0 : index
    %c0_9 = arith.constant 0 : index
    %7 = vector.load %arg2[%c1_7, %c0_8, %c0_9] : memref<3x192x128xf32, #tpu.memory_space<vmem>>, vector<1x192x128xf32>
    %8 = vector.shape_cast %7 : vector<1x192x128xf32> to vector<192x128xf32>
    %cst_10 = arith.constant dense<0.000000e+00> : vector<4x128xf32>
    %9 = tpu.matmul %6, %8, %cst_10 {dimension_numbers = #tpu.dot_dimension_numbers<[1], [0], [0], [1], [0, 0, 1, 1], [], []>} : vector<4x192xf32>, vector<192x128xf32>, vector<4x128xf32> -> vector<4x128xf32>
    %10 = arith.addf %4, %9 : vector<4x128xf32>
    %c0_11 = arith.constant 0 : index
    %c2 = arith.constant 2 : index
    %c0_12 = arith.constant 0 : index
    %11 = vector.load %arg1[%c0_11, %c2, %c0_12] : memref<1x6x192xf32, #tpu.memory_space<vmem>>, vector<1x4x192xf32>
    %12 = vector.shape_cast %11 : vector<1x4x192xf32> to vector<4x192xf32>
    %c2_13 = arith.constant 2 : index
    %c0_14 = arith.constant 0 : index
    %c0_15 = arith.constant 0 : index
    %13 = vector.load %arg2[%c2_13, %c0_14, %c0_15] : memref<3x192x128xf32, #tpu.memory_space<vmem>>, vector<1x192x128xf32>
    %14 = vector.shape_cast %13 : vector<1x192x128xf32> to vector<192x128xf32>
    %cst_16 = arith.constant dense<0.000000e+00> : vector<4x128xf32>
    %15 = tpu.matmul %12, %14, %cst_16 {dimension_numbers = #tpu.dot_dimension_numbers<[1], [0], [0], [1], [0, 0, 1, 1], [], []>} : vector<4x192xf32>, vector<192x128xf32>, vector<4x128xf32> -> vector<4x128xf32>
    %16 = arith.addf %10, %15 : vector<4x128xf32>
    %c0_17 = arith.constant 0 : index
    %c0_18 = arith.constant 0 : index
    %17 = vector.load %arg3[%c0_17, %c0_18] : memref<1x128xf32, #tpu.memory_space<vmem>>, vector<1x128xf32>
    %18 = vector.broadcast %17 : vector<1x128xf32> to vector<4x128xf32>
    %19 = arith.addf %16, %18 : vector<4x128xf32>
    %c0_19 = arith.constant 0 : index
    %c0_20 = arith.constant 0 : index
    %20 = vector.load %arg4[%c0_19, %c0_20] : memref<128x128xf32, #tpu.memory_space<vmem>>, vector<128x128xf32>
    %cst_21 = arith.constant dense<0.000000e+00> : vector<4x128xf32>
    %21 = tpu.matmul %19, %20, %cst_21 {dimension_numbers = #tpu.dot_dimension_numbers<[1], [0], [0], [1], [0, 0, 1, 1], [], []>} : vector<4x128xf32>, vector<128x128xf32>, vector<4x128xf32> -> vector<4x128xf32>
    %22 = arith.mulf %19, %19 : vector<4x128xf32>
    %c0_22 = arith.constant 0 : index
    %c0_23 = arith.constant 0 : index
    %23 = vector.load %arg4[%c0_22, %c0_23] : memref<128x128xf32, #tpu.memory_space<vmem>>, vector<128x128xf32>
    %cst_24 = arith.constant dense<0.000000e+00> : vector<4x128xf32>
    %24 = tpu.matmul %22, %23, %cst_24 {dimension_numbers = #tpu.dot_dimension_numbers<[1], [0], [0], [1], [0, 0, 1, 1], [], []>} : vector<4x128xf32>, vector<128x128xf32>, vector<4x128xf32> -> vector<4x128xf32>
    %cst_25 = arith.constant dense<0.000000e+00> : vector<128xf32>
    %25 = vector.multi_reduction <add>, %21, %cst_25 [0] : vector<4x128xf32> to vector<128xf32>
    %26 = vector.shape_cast %25 : vector<128xf32> to vector<1x128xf32>
    %cst_26 = arith.constant dense<0.000000e+00> : vector<128xf32>
    %27 = vector.multi_reduction <add>, %24, %cst_26 [0] : vector<4x128xf32> to vector<128xf32>
    %28 = vector.shape_cast %27 : vector<128xf32> to vector<1x128xf32>
    %29 = arith.mulf %26, %26 : vector<1x128xf32>
    %30 = arith.subf %28, %29 : vector<1x128xf32>
    %31 = vector.broadcast %26 : vector<1x128xf32> to vector<4x128xf32>
    %32 = arith.subf %19, %31 : vector<4x128xf32>
    %cst_27 = arith.constant 9.99999974E-6 : f32
    %33 = vector.broadcast %cst_27 : f32 to vector<1x128xf32>
    %34 = arith.addf %30, %33 : vector<1x128xf32>
    %35 = math.rsqrt %34 : vector<1x128xf32>
    %36 = vector.broadcast %35 : vector<1x128xf32> to vector<4x128xf32>
    %37 = arith.mulf %32, %36 : vector<4x128xf32>
    %c0_28 = arith.constant 0 : index
    %c0_29 = arith.constant 0 : index
    %c0_30 = arith.constant 0 : index
    %38 = vector.load %arg5[%c0_28, %c0_29, %c0_30] : memref<1x4x128xf32, #tpu.memory_space<vmem>>, vector<1x4x128xf32>
    %39 = vector.shape_cast %38 : vector<1x4x128xf32> to vector<4x128xf32>
    %40 = arith.addf %37, %39 : vector<4x128xf32>
    %cst_31 = arith.constant 0.000000e+00 : f32
    %41 = vector.broadcast %cst_31 : f32 to vector<4x128xf32>
    %42 = arith.subf %41, %40 : vector<4x128xf32>
    %43 = math.exp %42 : vector<4x128xf32>
    %cst_32 = arith.constant 1.000000e+00 : f32
    %44 = vector.broadcast %cst_32 : f32 to vector<4x128xf32>
    %45 = arith.addf %44, %43 : vector<4x128xf32>
    %cst_33 = arith.constant 1.000000e+00 : f32
    %46 = vector.broadcast %cst_33 : f32 to vector<4x128xf32>
    %47 = arith.divf %46, %45 : vector<4x128xf32>
    %c0_34 = arith.constant 0 : index
    %c0_35 = arith.constant 0 : index
    %c0_36 = arith.constant 0 : index
    %48 = vector.load %arg6[%c0_34, %c0_35, %c0_36] : memref<1x4x128xf32, #tpu.memory_space<vmem>>, vector<1x4x128xf32>
    %49 = vector.shape_cast %48 : vector<1x4x128xf32> to vector<4x128xf32>
    %50 = vector.shape_cast %47 : vector<4x128xf32> to vector<1x4x128xf32>
    tpu.vector_store %arg6[%c0_34, %c0_35, %c0_36], %50 {strides = array<i32>} : memref<1x4x128xf32, #tpu.memory_space<vmem>>, vector<1x4x128xf32>,
    return
  }
  func.func @transform_0(%arg0: i32) -> (i32, i32, i32) {
    %c0_i32 = arith.constant 0 : i32
    %c0_i32_0 = arith.constant 0 : i32
    %c0_i32_1 = arith.constant 0 : i32
    return %arg0, %c0_i32, %c0_i32_0 : i32, i32, i32
  }
  func.func @transform_1(%arg0: i32) -> (i32, i32, i32) {
    %c0_i32 = arith.constant 0 : i32
    %c0_i32_0 = arith.constant 0 : i32
    %c0_i32_1 = arith.constant 0 : i32
    %c0_i32_2 = arith.constant 0 : i32
    return %c0_i32, %c0_i32_0, %c0_i32_1 : i32, i32, i32
  }
  func.func @transform_2(%arg0: i32) -> (i32, i32) {
    %c0_i32 = arith.constant 0 : i32
    %c0_i32_0 = arith.constant 0 : i32
    %c0_i32_1 = arith.constant 0 : i32
    return %c0_i32, %c0_i32_0 : i32, i32
  }
  func.func @transform_3(%arg0: i32) -> (i32, i32) {
    %c0_i32 = arith.constant 0 : i32
    %c0_i32_0 = arith.constant 0 : i32
    %c0_i32_1 = arith.constant 0 : i32
    return %c0_i32, %c0_i32_0 : i32, i32
  }
  func.func @transform_4(%arg0: i32) -> (i32, i32, i32) {
    %c0_i32 = arith.constant 0 : i32
    %c0_i32_0 = arith.constant 0 : i32
    %c0_i32_1 = arith.constant 0 : i32
    return %arg0, %c0_i32, %c0_i32_0 : i32, i32, i32
  }
  func.func @transform_5(%arg0: i32) -> (i32, i32, i32) {
    %c0_i32 = arith.constant 0 : i32
    %c0_i32_0 = arith.constant 0 : i32
    %c0_i32_1 = arith.constant 0 : i32
    return %arg0, %c0_i32, %c0_i32_0 : i32, i32, i32
  }
}

</mosaic_0001>

<llo_original>
// kernel: tile.93
$region0: #{tile.93}
  #allocation0 [shape = 's32[1]{0}', space=sflag, size = 0x4, scoped, tag = 'scoped memory for tile.93']
  %s0 = inlined_call_operand.vmem [shape: f32[8], index: 0, kind: input, shape index: {}]
  %s1 = inlined_call_operand.vmem [shape: f32[16,8], index: 1, kind: output, shape index: {}]
  // Predicated region
  $region2: #{tile.93} parent=0 // pred_check
    _
  $region3: #{tile.93} parent=0 // pred_check_branch
    %3 = sbr.rel (0) target = $region5
  $region4: #{tile.93} parent=0 // pred_region
    _
  $region5: #{tile.93} parent=0 // pred_fallthru
    _
  %v4 = vld [vmem:[%s0] ss:$0 sm:$0xff]
  %5 = vst [vmem:[%s1] sm:$0xff] %v4
  %s6 = scalar_lea.vmem %s1, 8
  %7 = vst [vmem:[%s6] sm:$0xff] %v4

// kernel: tile.94
$region0: #{tile.94}
  %s0 = inlined_call_operand.vmem [shape: f32[16,8], index: 0, kind: input, shape index: {}]
  %s1 = inlined_call_operand.vmem [shape: f32[1,128], index: 1, kind: output, shape index: {}]
  $region1: #{tile.94} parent=0
    #allocation0 [shape = 'u8[4096]{0}', space=vmem, size = 0x1000, scoped, tag = 'scoped mem for output reshape']
    %v2 = vld [vmem:[%s0] sm:$0x1]
    %vm3 = vcmask 64512
    %4 = vst.msk [vmem:[#allocation0] sm:$0x1] %vm3, %v2
    %s5 = scalar_lea.vmem %s0, 15
    %v6 = vld [vmem:[%s5] sm:$0x1]
    %7 = vrot.lane.b32.xlu0 %v6, 120
    %v8 = vpop.permute.xlu0 %7
    %vm9 = vcmask 1048512
    %10 = vst.msk [vmem:[#allocation0] sm:$0x1] %vm9, %v8
    %s11 = scalar_lea.vmem %s0, 14
    %v12 = vld [vmem:[%s11] sm:$0x1]
    %13 = vrot.lane.b32.xlu0 %v12, 112
    %v14 = vpop.permute.xlu0 %13
    %vm15 = vcmask 982912
    %16 = vst.msk [vmem:[#allocation0] sm:$0x1] %vm15, %v14
    %s17 = scalar_lea.vmem %s0, 13
    %v18 = vld [vmem:[%s17] sm:$0x1]
    %19 = vrot.lane.b32.xlu0 %v18, 104
    %v20 = vpop.permute.xlu0 %19
    %vm21 = vcmask 917312
    %22 = vst.msk [vmem:[#allocation0] sm:$0x1] %vm21, %v20
    %s23 = scalar_lea.vmem %s0, 12
    %v24 = vld [vmem:[%s23] sm:$0x1]
    %25 = vrot.lane.b32.xlu0 %v24, 96
    %v26 = vpop.permute.xlu0 %25
    %vm27 = vcmask 851712
    %28 = vst.msk [vmem:[#allocation0] sm:$0x1] %vm27, %v26
    %s29 = scalar_lea.vmem %s0, 11
    %v30 = vld [vmem:[%s29] sm:$0x1]
    %31 = vrot.lane.b32.xlu0 %v30, 88
    %v32 = vpop.permute.xlu0 %31
    %vm33 = vcmask 786112
    %34 = vst.msk [vmem:[#allocation0] sm:$0x1] %vm33, %v32
    %s35 = scalar_lea.vmem %s0, 10
    %v36 = vld [vmem:[%s35] sm:$0x1]
    %37 = vrot.lane.b32.xlu0 %v36, 80
    %v38 = vpop.permute.xlu0 %37
    %vm39 = vcmask 720512
    %40 = vst.msk [vmem:[#allocation0] sm:$0x1] %vm39, %v38
    %s41 = scalar_lea.vmem %s0, 9
    %v42 = vld [vmem:[%s41] sm:$0x1]
    %43 = vrot.lane.b32.xlu0 %v42, 72
    %v44 = vpop.permute.xlu0 %43
    %vm45 = vcmask 654912
    %46 = vst.msk [vmem:[#allocation0] sm:$0x1] %vm45, %v44
    %s47 = scalar_lea.vmem %s0, 8
    %v48 = vld [vmem:[%s47] sm:$0x1]
    %49 = vrot.lane.b32.xlu0 %v48, 64
    %v50 = vpop.permute.xlu0 %49
    %vm51 = vcmask 589312
    %52 = vst.msk [vmem:[#allocation0] sm:$0x1] %vm51, %v50
    %s53 = scalar_lea.vmem %s0, 7
    %v54 = vld [vmem:[%s53] sm:$0x1]
    %55 = vrot.lane.b32.xlu0 %v54, 56
    %v56 = vpop.permute.xlu0 %55
    %vm57 = vcmask 523712
    %58 = vst.msk [vmem:[#allocation0] sm:$0x1] %vm57, %v56
    %s59 = scalar_lea.vmem %s0, 6
    %v60 = vld [vmem:[%s59] sm:$0x1]
    %61 = vrot.lane.b32.xlu0 %v60, 48
    %v62 = vpop.permute.xlu0 %61
    %vm63 = vcmask 458112
    %64 = vst.msk [vmem:[#allocation0] sm:$0x1] %vm63, %v62
    %s65 = scalar_lea.vmem %s0, 5
    %v66 = vld [vmem:[%s65] sm:$0x1]
    %67 = vrot.lane.b32.xlu0 %v66, 40
    %v68 = vpop.permute.xlu0 %67
    %vm69 = vcmask 392512
    %70 = vst.msk [vmem:[#allocation0] sm:$0x1] %vm69, %v68
    %s71 = scalar_lea.vmem %s0, 4
    %v72 = vld [vmem:[%s71] sm:$0x1]
    %73 = vrot.lane.b32.xlu0 %v72, 32
    %v74 = vpop.permute.xlu0 %73
    %vm75 = vcmask 326912
    %76 = vst.msk [vmem:[#allocation0] sm:$0x1] %vm75, %v74
    %s77 = scalar_lea.vmem %s0, 3
    %v78 = vld [vmem:[%s77] sm:$0x1]
    %79 = vrot.lane.b32.xlu0 %v78, 24
    %v80 = vpop.permute.xlu0 %79
    %vm81 = vcmask 261312
    %82 = vst.msk [vmem:[#allocation0] sm:$0x1] %vm81, %v80
    %s83 = scalar_lea.vmem %s0, 2
    %v84 = vld [vmem:[%s83] sm:$0x1]
    %85 = vrot.lane.b32.xlu0 %v84, 16
    %v86 = vpop.permute.xlu0 %85
    %vm87 = vcmask 195712
    %88 = vst.msk [vmem:[#allocation0] sm:$0x1] %vm87, %v86
    %s89 = scalar_lea.vmem %s0, 1
    %v90 = vld [vmem:[%s89] sm:$0x1]
    %91 = vrot.lane.b32.xlu0 %v90, 8
    %v92 = vpop.permute.xlu0 %91
    %vm93 = vcmask 130112
    %94 = vst.msk [vmem:[#allocation0] sm:$0x1] %vm93, %v92
    %s96 = sshll.u32 1, 1
    %s97 = ssub.s32 %s96, 1
    %v99 = vld [vmem:[#allocation0] sm:%s97]
    %s100 = sshll.u32 1, 1
    %s101 = ssub.s32 %s100, 1
    %102 = vst [vmem:[%s1] sm:%s101] %v99

// kernel: resnet_discriminator_forward.9
$region0: #{resnet_discriminator_forward.9}
  #allocation0 [shape = 'u32[]', space=smem, size = 0x4, offset = 0x4, fixed_abs, tag = 'smem constant byte address 0x4 - core index']
  #allocation1 [shape = 'u32[144,128]{1,0:T(1,128)}', space=vmem, size = 0x12000, scoped, tag = 'internal scratch']
  %s0 = inlined_call_operand.vmem [shape: f32[2,22,88], index: 0, kind: input, shape index: {}]
  %s1 = inlined_call_operand.vmem [shape: f32[7,88,128], index: 1, kind: input, shape index: {}]
  %s2 = inlined_call_operand.vmem [shape: f32[1,128], index: 2, kind: input, shape index: {}]
  %s3 = inlined_call_operand.vmem [shape: f32[128,128], index: 3, kind: input, shape index: {}]
  %s4 = inlined_call_operand.vmem [shape: f32[2,16,128], index: 4, kind: output, shape index: {}]
  %s5 = sld [smem:[#allocation0]]
  $region49: #{resnet_discriminator_forward.9} parent=0
    _
  %s7 = ssub.s32 1, %s5
  %s8 = scalar_select 0, %s7, %s5
  loop: start=0, step=1, limit=4
  $region2: #{resnet_discriminator_forward.9} parent=0 // loop_pre_header
    _
  $region3: #{resnet_discriminator_forward.9} parent=0 // loop_header
    %s10 = sphi 0, %s14
    %p11 = scmp.ge.s32.totalorder %s10, 4
    %s20 = sphi 0, %s22
    %s23 = sphi 0, %s20
    %s24 = sphi 0, %s23
    %s40 = sphi 0, %s24
    %s44 = sphi 0, %s44
    %s46 = sphi 0, %s44
    %s47 = sphi 0, %s46
    %s61 = sphi 0, %s47
    %s65 = sphi 0, %s65
    %s67 = sphi 0, %s65
    %s68 = sphi 0, %s67
    %s82 = sphi 0, %s68
    %s86 = sphi 0, %s86
    %s88 = sphi 0, %s86
    %s89 = sphi 0, %s88
    %s103 = sphi 0, %s89
    %s109 = sphi 0, %s111
    %s112 = sphi 0, %s109
    %s113 = sphi 0, %s112
    %s129 = sphi 0, %s113
  $region4: #{resnet_discriminator_forward.9} parent=0 // loop_header_branch
    %13 = sbr.rel (%p11) target = $region8
  $region5: #{resnet_discriminator_forward.9} parent=0 // loop_body
    %s15 = ssub.s32 %s10, 1
    %s16 = ssub.s32 %s10, 2
    %s17 = sadd.s32 %s10, 1
    %s18 = ssub.s32 %s10, %s17
    %p19 = scmp.eq.s32.totalorder %s18, 0
    %s21 = sadd.s32 %s20, 1
    %s22 = scalar_select %p19, %s20, %s21
    %p25 = pneg %p19
    %p26 = scmp.eq.s32.totalorder %s10, 1
    %p27 = por %p25, %p26
    %p28 = scmp.ne.s32.totalorder %s20, %s23
    %p29 = scmp.eq.s32.totalorder %s10, 0
    %p30 = por %p28, %p29
    %p31 = scmp.ne.s32.totalorder %s20, %s23
    %p32 = scmp.eq.s32.totalorder %s15, 1
    %p33 = por %p31, %p32
    %p34 = scmp.ne.s32.totalorder %s23, %s24
    %p35 = scmp.eq.s32.totalorder %s15, 0
    %p36 = por %p34, %p35
    %p37 = scmp.ne.s32.totalorder %s23, %s24
    %p38 = scmp.eq.s32.totalorder %s16, 1
    %p39 = por %p37, %p38
    %p41 = scmp.ne.s32.totalorder %s24, %s40
    %p42 = scmp.eq.s32.totalorder %s16, 0
    %p43 = por %p41, %p42
    %s45 = sadd.s32 %s44, 1
    %p48 = scmp.eq.s32.totalorder %s10, 1
    %p49 = scmp.ne.s32.totalorder %s44, %s46
    %p50 = scmp.eq.s32.totalorder %s10, 0
    %p51 = por %p49, %p50
    %p52 = scmp.ne.s32.totalorder %s44, %s46
    %p53 = scmp.eq.s32.totalorder %s15, 1
    %p54 = por %p52, %p53
    %p55 = scmp.ne.s32.totalorder %s46, %s47
    %p56 = scmp.eq.s32.totalorder %s15, 0
    %p57 = por %p55, %p56
    %p58 = scmp.ne.s32.totalorder %s46, %s47
    %p59 = scmp.eq.s32.totalorder %s16, 1
    %p60 = por %p58, %p59
    %p62 = scmp.ne.s32.totalorder %s47, %s61
    %p63 = scmp.eq.s32.totalorder %s16, 0
    %p64 = por %p62, %p63
    %s66 = sadd.s32 %s65, 1
    %p69 = scmp.eq.s32.totalorder %s10, 1
    %p70 = scmp.ne.s32.totalorder %s65, %s67
    %p71 = scmp.eq.s32.totalorder %s10, 0
    %p72 = por %p70, %p71
    %p73 = scmp.ne.s32.totalorder %s65, %s67
    %p74 = scmp.eq.s32.totalorder %s15, 1
    %p75 = por %p73, %p74
    %p76 = scmp.ne.s32.totalorder %s67, %s68
    %p77 = scmp.eq.s32.totalorder %s15, 0
    %p78 = por %p76, %p77
    %p79 = scmp.ne.s32.totalorder %s67, %s68
    %p80 = scmp.eq.s32.totalorder %s16, 1
    %p81 = por %p79, %p80
    %p83 = scmp.ne.s32.totalorder %s68, %s82
    %p84 = scmp.eq.s32.totalorder %s16, 0
    %p85 = por %p83, %p84
    %s87 = sadd.s32 %s86, 1
    %p90 = scmp.eq.s32.totalorder %s10, 1
    %p91 = scmp.ne.s32.totalorder %s86, %s88
    %p92 = scmp.eq.s32.totalorder %s10, 0
    %p93 = por %p91, %p92
    %p94 = scmp.ne.s32.totalorder %s86, %s88
    %p95 = scmp.eq.s32.totalorder %s15, 1
    %p96 = por %p94, %p95
    %p97 = scmp.ne.s32.totalorder %s88, %s89
    %p98 = scmp.eq.s32.totalorder %s15, 0
    %p99 = por %p97, %p98
    %p100 = scmp.ne.s32.totalorder %s88, %s89
    %p101 = scmp.eq.s32.totalorder %s16, 1
    %p102 = por %p100, %p101
    %p104 = scmp.ne.s32.totalorder %s89, %s103
    %p105 = scmp.eq.s32.totalorder %s16, 0
    %p106 = por %p104, %p105
    %s107 = ssub.s32 %s10, %s17
    %p108 = scmp.eq.s32.totalorder %s107, 0
    %s110 = sadd.s32 %s109, 1
    %s111 = scalar_select %p108, %s109, %s110
    %p114 = pneg %p108
    %p115 = scmp.eq.s32.totalorder %s10, 1
    %p116 = por %p114, %p115
    %p117 = scmp.ne.s32.totalorder %s109, %s112
    %p118 = scmp.eq.s32.totalorder %s10, 0
    %p119 = por %p117, %p118
    %p120 = scmp.ne.s32.totalorder %s109, %s112
    %p121 = scmp.eq.s32.totalorder %s15, 1
    %p122 = por %p120, %p121
    %p123 = scmp.ne.s32.totalorder %s112, %s113
    %p124 = scmp.eq.s32.totalorder %s15, 0
    %p125 = por %p123, %p124
    %p126 = scmp.ne.s32.totalorder %s112, %s113
    %p127 = scmp.eq.s32.totalorder %s16, 1
    %p128 = por %p126, %p127
    %p130 = scmp.ne.s32.totalorder %s113, %s129
    %p131 = scmp.eq.s32.totalorder %s16, 0
    %p132 = por %p130, %p131
    %p133 = scmp.le.s32.totalorder 1, %s10
    %p134 = scmp.lt.s32.totalorder %s10, 3
    %p135 = pnand %p133, %p134
    %p136 = pneg %p135
    // Predicated region
    $region9: #{resnet_discriminator_forward.9} parent=5 // pred_check
      _
    $region10: #{resnet_discriminator_forward.9} parent=5 // pred_check_branch
      %138 = sbr.rel (%p135) target = $region12
    $region11: #{resnet_discriminator_forward.9} parent=5 // pred_region
      %s139 = ssub.s32 %s10, 1
      // Predicated region
      $region13: #{resnet_discriminator_forward.9} parent=11 // pred_check
        %p140 = pneg %p57
      $region14: #{resnet_discriminator_forward.9} parent=11 // pred_check_branch
        %142 = sbr.rel (%p140) target = $region16
      $region15: #{resnet_discriminator_forward.9} parent=11 // pred_region
        _
      $region16: #{resnet_discriminator_forward.9} parent=11 // pred_fallthru
        _
      // Predicated region
      $region17: #{resnet_discriminator_forward.9} parent=11 // pred_check
        %p143 = pneg %p78
      $region18: #{resnet_discriminator_forward.9} parent=11 // pred_check_branch
        %145 = sbr.rel (%p143) target = $region20
      $region19: #{resnet_discriminator_forward.9} parent=11 // pred_region
        _
      $region20: #{resnet_discriminator_forward.9} parent=11 // pred_fallthru
        _
      // Predicated region
      $region21: #{resnet_discriminator_forward.9} parent=11 // pred_check
        %p146 = pneg %p99
      $region22: #{resnet_discriminator_forward.9} parent=11 // pred_check_branch
        %148 = sbr.rel (%p146) target = $region24
      $region23: #{resnet_discriminator_forward.9} parent=11 // pred_region
        _
      $region24: #{resnet_discriminator_forward.9} parent=11 // pred_fallthru
        _
    $region12: #{resnet_discriminator_forward.9} parent=5 // pred_fallthru
      _
    %p149 = scmp.lt.s32.totalorder %s10, 2
    // Predicated region
    $region25: #{resnet_discriminator_forward.9} parent=5 // pred_check
      %p150 = pneg %p149
    $region26: #{resnet_discriminator_forward.9} parent=5 // pred_check_branch
      %152 = sbr.rel (%p150) target = $region28
    $region27: #{resnet_discriminator_forward.9} parent=5 // pred_region
      // Predicated region
      $region29: #{resnet_discriminator_forward.9} parent=27 // pred_check
        %p153 = pneg %p30
      $region30: #{resnet_discriminator_forward.9} parent=27 // pred_check_branch
        %155 = sbr.rel (%p153) target = $region32
      $region31: #{resnet_discriminator_forward.9} parent=27 // pred_region
        %p156 = scmp.lt.s32.totalorder %s10, 1
        %s157 = scalar_select %p156, %s10, 1
        %s158 = smul.addr %s157, 3
        %s159 = smul.addr %s158, 8
        %s160 = scalar_lea.vmem %s0, %s159
      $region32: #{resnet_discriminator_forward.9} parent=27 // pred_fallthru
        _
    $region28: #{resnet_discriminator_forward.9} parent=5 // pred_fallthru
      _
    %p161 = scmp.le.s32.totalorder 1, %s10
    %p162 = scmp.lt.s32.totalorder %s10, 3
    %p163 = pnand %p161, %p162
    %p164 = pneg %p163
    // Predicated region
    $region33: #{resnet_discriminator_forward.9} parent=5 // pred_check
      _
    $region34: #{resnet_discriminator_forward.9} parent=5 // pred_check_branch
      %166 = sbr.rel (%p163) target = $region36
    $region35: #{resnet_discriminator_forward.9} parent=5 // pred_region
      %s167 = ssub.s32 %s10, 1
      %p168 = scmp.lt.s32.totalorder %s15, 1
      %s169 = scalar_select %p168, %s15, 1
      %s170 = smul.addr %s169, 3
      %s171 = smul.addr %s170, 8
      %s172 = scalar_lea.vmem %s0, %s171
      %p173 = pneg %p36
      %p174 = pneg %p33
      %p175 = pneg %p57
      %p176 = pneg %p54
      %p177 = pneg %p78
      %p178 = pneg %p75
      %p179 = pneg %p99
      %p180 = pneg %p96
      %p181 = pneg %p125
      %p182 = pneg %p122
      %p183 = scmp.lt.s32.totalorder %s15, 1
      %s184 = scalar_select %p183, %s15, 1
      %s185 = smul.addr %s184, 2
      %s186 = smul.addr %s185, 8
      %s187 = scalar_lea.vmem %s4, %s186
      %p188 = scmp.lt.s32.totalorder %s15, 1
      %s189 = scalar_select %p188, %s15, 1
      %s190 = smul.addr %s189, 3
      %s191 = smul.addr %s190, 8
      %s192 = scalar_lea.vmem %s0, %s191
      %p193 = scmp.lt.s32.totalorder %s15, 1
      %s194 = scalar_select %p193, %s15, 1
      %s195 = smul.addr %s194, 2
      %s196 = smul.addr %s195, 8
      %s197 = scalar_lea.vmem %s4, %s196
      %v198 = vld [vmem:[%s192] sm:$0xff]
      %v199 = vld [vmem:[%s192 + $0x8] sm:$0xff]
      %v200 = vld [vmem:[%s1] sm:$0xff]
      %v201 = vld [vmem:[%s1 + $0x8] sm:$0xff]
      %v202 = vld [vmem:[%s1 + $0x10] sm:$0xff]
      %v203 = vld [vmem:[%s1 + $0x18] sm:$0xff]
      %v204 = vld [vmem:[%s1 + $0x20] sm:$0xff]
      %v205 = vld [vmem:[%s1 + $0x28] sm:$0xff]
      %v206 = vld [vmem:[%s1 + $0x30] sm:$0xff]
      %v207 = vld [vmem:[%s1 + $0x38] sm:$0xff]
      %v208 = vld [vmem:[%s1 + $0x40] sm:$0xff]
      %v209 = vld [vmem:[%s1 + $0x48] sm:$0xff]
      %v210 = vld [vmem:[%s1 + $0x50] sm:$0xff]
      %v211 = vld [vmem:[%s192 + $0x1] sm:$0xff]
      %v212 = vld [vmem:[%s192 + $0x9] sm:$0xff]
      %s213 = scalar_lea.vmem %s1, 88
      %v214 = vld [vmem:[%s213] sm:$0xff]
      %v215 = vld [vmem:[%s213 + $0x8] sm:$0xff]
      %v216 = vld [vmem:[%s213 + $0x10] sm:$0xff]
      %v217 = vld [vmem:[%s213 + $0x18] sm:$0xff]
      %v218 = vld [vmem:[%s213 + $0x20] sm:$0xff]
      %v219 = vld [vmem:[%s213 + $0x28] sm:$0xff]
      %v220 = vld [vmem:[%s213 + $0x30] sm:$0xff]
      %v221 = vld [vmem:[%s213 + $0x38] sm:$0xff]
      %v222 = vld [vmem:[%s213 + $0x40] sm:$0xff]
      %v223 = vld [vmem:[%s213 + $0x48] sm:$0xff]
      %v224 = vld [vmem:[%s213 + $0x50] sm:$0xff]
      %vm225 = vcmask 719872
      %v227 = vsel %vm225, %v211, 0
      %v230 = vsel %vm225, %v212, 0
      %232 = vmatprep.subr.mxu0 0.0
      %233 = vmatpush1.msra.mxu0 0.0
      %234 = vmatprep.subr.mxu0 0.0
      %235 = vmatpush1.msra.mxu0 0.0
      %236 = vmatprep.subr.mxu0 0.0
      %237 = vmatpush1.msra.mxu0 0.0
      %238 = vmatprep.subr.mxu0 0.0
      %239 = vmatpush1.msra.mxu0 0.0
      %240 = vmatprep.subr.mxu0 0.0
      %241 = vmatpush1.msra.mxu0 0.0
      %242 = vmatprep.subr.mxu0 0.0
      %243 = vmatpush1.msra.mxu0 %v224
      %244 = vmatprep.subr.mxu0 0.0
      %245 = vmatpush1.msra.mxu0 %v223
      %246 = vmatprep.subr.mxu0 0.0
      %247 = vmatpush1.msra.mxu0 %v222
      %248 = vmatprep.subr.mxu0 0.0
      %249 = vmatpush1.msra.mxu0 %v221
      %250 = vmatprep.subr.mxu0 0.0
      %251 = vmatpush1.msra.mxu0 %v220
      %252 = vmatprep.subr.mxu0 0.0
      %253 = vmatpush1.msra.mxu0 %v219
      %254 = vmatprep.subr.mxu0 0.0
      %255 = vmatpush1.msra.mxu0 %v218
      %256 = vmatprep.subr.mxu0 0.0
      %257 = vmatpush1.msra.mxu0 %v217
      %258 = vmatprep.subr.mxu0 0.0
      %259 = vmatpush1.msra.mxu0 %v216
      %260 = vmatprep.subr.mxu0 0.0
      %261 = vmatpush1.msra.mxu0 %v215
      %262 = vmatprep.subr.mxu0 0.0
      %263 = vmatpush1.msra.mxu0 %v214
      %264 = vmatprep.subr.mxu0 0.0
      %265 = vmatpush2.msra.mxu0 0.0
      %266 = vmatprep.subr.mxu0 0.0
      %267 = vmatpush2.msra.mxu0 0.0
      %268 = vmatprep.subr.mxu0 0.0
      %269 = vmatpush2.msra.mxu0 0.0
      %270 = vmatprep.subr.mxu0 0.0
      %271 = vmatpush2.msra.mxu0 0.0
      %272 = vmatprep.subr.mxu0 0.0
      %273 = vmatpush2.msra.mxu0 0.0
      %274 = vmatprep.subr.mxu0 0.0
      %275 = vmatpush2.msra.mxu0 0.0
      %276 = vmatprep.subr.mxu0 0.0
      %277 = vmatpush2.msra.mxu0 0.0
      %278 = vmatprep.subr.mxu0 0.0
      %279 = vmatpush2.msra.mxu0 0.0
      %280 = vmatprep.subr.mxu0 0.0
      %281 = vmatpush2.msra.mxu0 0.0
      %282 = vmatprep.subr.mxu0 0.0
      %283 = vmatpush2.msra.mxu0 0.0
      %284 = vmatprep.subr.mxu0 0.0
      %285 = vmatpush2.msra.mxu0 0.0
      %286 = vmatprep.subr.mxu0 0.0
      %287 = vmatpush2.msra.mxu0 0.0
      %288 = vmatprep.subr.mxu0 0.0
      %289 = vmatpush2.msra.mxu0 0.0
      %290 = vmatprep.subr.mxu0 0.0
      %291 = vmatpush2.msra.mxu0 0.0
      %292 = vmatprep.subr.mxu0 0.0
      %293 = vmatpush2.msra.mxu0 0.0
      %294 = vmatprep.subr.mxu0 0.0
      %295 = vmatpush2.msra.mxu0 0.0
      %296 = vmatprep.mubr.f32.mxu0 0.0
      %297 = vmatmul.mubr.f32.gmra.mxu0 %v227
      %v298 = vpop.f32.mrf.mxu0
      %v299 = vadd.f32 0.0, %v298
      %v300 = vpop.f32.mrf.mxu0
      %301 = vmatprep.mubr.f32.mxu0 0.0
      %302 = vmatmul.mubr.f32.gmra.mxu0 %v230
      %v303 = vpop.f32.mrf.mxu0
      %v304 = vadd.f32 0.0, %v303
      %v305 = vpop.f32.mrf.mxu0
      %306 = vdwg.mxu0
      %v308 = vsel %vm225, %v198, 0
      %v311 = vsel %vm225, %v199, 0
      %313 = vmatprep.subr.mxu0 0.0
      %314 = vmatpush1.msra.mxu0 0.0
      %315 = vmatprep.subr.mxu0 0.0
      %316 = vmatpush1.msra.mxu0 0.0
      %317 = vmatprep.subr.mxu0 0.0
      %318 = vmatpush1.msra.mxu0 0.0
      %319 = vmatprep.subr.mxu0 0.0
      %320 = vmatpush1.msra.mxu0 0.0
      %321 = vmatprep.subr.mxu0 0.0
      %322 = vmatpush1.msra.mxu0 0.0
      %323 = vmatprep.subr.mxu0 0.0
      %324 = vmatpush1.msra.mxu0 %v210
      %325 = vmatprep.subr.mxu0 0.0
      %326 = vmatpush1.msra.mxu0 %v209
      %327 = vmatprep.subr.mxu0 0.0
      %328 = vmatpush1.msra.mxu0 %v208
      %329 = vmatprep.subr.mxu0 0.0
      %330 = vmatpush1.msra.mxu0 %v207
      %331 = vmatprep.subr.mxu0 0.0
      %332 = vmatpush1.msra.mxu0 %v206
      %333 = vmatprep.subr.mxu0 0.0
      %334 = vmatpush1.msra.mxu0 %v205
      %335 = vmatprep.subr.mxu0 0.0
      %336 = vmatpush1.msra.mxu0 %v204
      %337 = vmatprep.subr.mxu0 0.0
      %338 = vmatpush1.msra.mxu0 %v203
      %339 = vmatprep.subr.mxu0 0.0
      %340 = vmatpush1.msra.mxu0 %v202
      %341 = vmatprep.subr.mxu0 0.0
      %342 = vmatpush1.msra.mxu0 %v201
      %343 = vmatprep.subr.mxu0 0.0
      %344 = vmatpush1.msra.mxu0 %v200
      %345 = vmatprep.subr.mxu0 0.0
      %346 = vmatpush2.msra.mxu0 0.0
      %347 = vmatprep.subr.mxu0 0.0
      %348 = vmatpush2.msra.mxu0 0.0
      %349 = vmatprep.subr.mxu0 0.0
      %350 = vmatpush2.msra.mxu0 0.0
      %351 = vmatprep.subr.mxu0 0.0
      %352 = vmatpush2.msra.mxu0 0.0
      %353 = vmatprep.subr.mxu0 0.0
      %354 = vmatpush2.msra.mxu0 0.0
      %355 = vmatprep.subr.mxu0 0.0
      %356 = vmatpush2.msra.mxu0 0.0
      %357 = vmatprep.subr.mxu0 0.0
      %358 = vmatpush2.msra.mxu0 0.0
      %359 = vmatprep.subr.mxu0 0.0
      %360 = vmatpush2.msra.mxu0 0.0
      %361 = vmatprep.subr.mxu0 0.0
      %362 = vmatpush2.msra.mxu0 0.0
      %363 = vmatprep.subr.mxu0 0.0
      %364 = vmatpush2.msra.mxu0 0.0
      %365 = vmatprep.subr.mxu0 0.0
      %366 = vmatpush2.msra.mxu0 0.0
      %367 = vmatprep.subr.mxu0 0.0
      %368 = vmatpush2.msra.mxu0 0.0
      %369 = vmatprep.subr.mxu0 0.0
      %370 = vmatpush2.msra.mxu0 0.0
      %371 = vmatprep.subr.mxu0 0.0
      %372 = vmatpush2.msra.mxu0 0.0
      %373 = vmatprep.subr.mxu0 0.0
      %374 = vmatpush2.msra.mxu0 0.0
      %375 = vmatprep.subr.mxu0 0.0
      %376 = vmatpush2.msra.mxu0 0.0
      %377 = vmatprep.mubr.f32.mxu0 0.0
      %378 = vmatmul.mubr.f32.gmra.mxu0 %v308
      %v379 = vpop.f32.mrf.mxu0
      %v380 = vadd.f32 %v299, %v379
      %v381 = vpop.f32.mrf.mxu0
      %382 = vmatprep.mubr.f32.mxu0 0.0
      %383 = vmatmul.mubr.f32.gmra.mxu0 %v311
      %v384 = vpop.f32.mrf.mxu0
      %v385 = vadd.f32 %v304, %v384
      %v386 = vpop.f32.mrf.mxu0
      %387 = vdwg.mxu0
      %v388 = vld [vmem:[%s192 + $0x2] sm:$0xff]
      %v389 = vld [vmem:[%s192 + $0xa] sm:$0xff]
      %s390 = scalar_lea.vmem %s1, 176
      %v391 = vld [vmem:[%s390] sm:$0xff]
      %v392 = vld [vmem:[%s390 + $0x8] sm:$0xff]
      %v393 = vld [vmem:[%s390 + $0x10] sm:$0xff]
      %v394 = vld [vmem:[%s390 + $0x18] sm:$0xff]
      %v395 = vld [vmem:[%s390 + $0x20] sm:$0xff]
      %v396 = vld [vmem:[%s390 + $0x28] sm:$0xff]
      %v397 = vld [vmem:[%s390 + $0x30] sm:$0xff]
      %v398 = vld [vmem:[%s390 + $0x38] sm:$0xff]
      %v399 = vld [vmem:[%s390 + $0x40] sm:$0xff]
      %v400 = vld [vmem:[%s390 + $0x48] sm:$0xff]
      %v401 = vld [vmem:[%s390 + $0x50] sm:$0xff]
      %v403 = vsel %vm225, %v388, 0
      %v406 = vsel %vm225, %v389, 0
      %408 = vmatprep.subr.mxu0 0.0
      %409 = vmatpush1.msra.mxu0 0.0
      %410 = vmatprep.subr.mxu0 0.0
      %411 = vmatpush1.msra.mxu0 0.0
      %412 = vmatprep.subr.mxu0 0.0
      %413 = vmatpush1.msra.mxu0 0.0
      %414 = vmatprep.subr.mxu0 0.0
      %415 = vmatpush1.msra.mxu0 0.0
      %416 = vmatprep.subr.mxu0 0.0
      %417 = vmatpush1.msra.mxu0 0.0
      %418 = vmatprep.subr.mxu0 0.0
      %419 = vmatpush1.msra.mxu0 %v401
      %420 = vmatprep.subr.mxu0 0.0
      %421 = vmatpush1.msra.mxu0 %v400
      %422 = vmatprep.subr.mxu0 0.0
      %423 = vmatpush1.msra.mxu0 %v399
      %424 = vmatprep.subr.mxu0 0.0
      %425 = vmatpush1.msra.mxu0 %v398
      %426 = vmatprep.subr.mxu0 0.0
      %427 = vmatpush1.msra.mxu0 %v397
      %428 = vmatprep.subr.mxu0 0.0
      %429 = vmatpush1.msra.mxu0 %v396
      %430 = vmatprep.subr.mxu0 0.0
      %431 = vmatpush1.msra.mxu0 %v395
      %432 = vmatprep.subr.mxu0 0.0
      %433 = vmatpush1.msra.mxu0 %v394
      %434 = vmatprep.subr.mxu0 0.0
      %435 = vmatpush1.msra.mxu0 %v393
      %436 = vmatprep.subr.mxu0 0.0
      %437 = vmatpush1.msra.mxu0 %v392
      %438 = vmatprep.subr.mxu0 0.0
      %439 = vmatpush1.msra.mxu0 %v391
      %440 = vmatprep.subr.mxu0 0.0
      %441 = vmatpush2.msra.mxu0 0.0
      %442 = vmatprep.subr.mxu0 0.0
      %443 = vmatpush2.msra.mxu0 0.0
      %444 = vmatprep.subr.mxu0 0.0
      %445 = vmatpush2.msra.mxu0 0.0
      %446 = vmatprep.subr.mxu0 0.0
      %447 = vmatpush2.msra.mxu0 0.0
      %448 = vmatprep.subr.mxu0 0.0
      %449 = vmatpush2.msra.mxu0 0.0
      %450 = vmatprep.subr.mxu0 0.0
      %451 = vmatpush2.msra.mxu0 0.0
      %452 = vmatprep.subr.mxu0 0.0
      %453 = vmatpush2.msra.mxu0 0.0
      %454 = vmatprep.subr.mxu0 0.0
      %455 = vmatpush2.msra.mxu0 0.0
      %456 = vmatprep.subr.mxu0 0.0
      %457 = vmatpush2.msra.mxu0 0.0
      %458 = vmatprep.subr.mxu0 0.0
      %459 = vmatpush2.msra.mxu0 0.0
      %460 = vmatprep.subr.mxu0 0.0
      %461 = vmatpush2.msra.mxu0 0.0
      %462 = vmatprep.subr.mxu0 0.0
      %463 = vmatpush2.msra.mxu0 0.0
      %464 = vmatprep.subr.mxu0 0.0
      %465 = vmatpush2.msra.mxu0 0.0
      %466 = vmatprep.subr.mxu0 0.0
      %467 = vmatpush2.msra.mxu0 0.0
      %468 = vmatprep.subr.mxu0 0.0
      %469 = vmatpush2.msra.mxu0 0.0
      %470 = vmatprep.subr.mxu0 0.0
      %471 = vmatpush2.msra.mxu0 0.0
      %472 = vmatprep.mubr.f32.mxu0 0.0
      %473 = vmatmul.mubr.f32.gmra.mxu0 %v403
      %v474 = vpop.f32.mrf.mxu0
      %v475 = vadd.f32 0.0, %v474
      %v476 = vpop.f32.mrf.mxu0
      %477 = vmatprep.mubr.f32.mxu0 0.0
      %478 = vmatmul.mubr.f32.gmra.mxu0 %v406
      %v479 = vpop.f32.mrf.mxu0
      %v480 = vadd.f32 0.0, %v479
      %v481 = vpop.f32.mrf.mxu0
      %482 = vdwg.mxu0
      %v483 = vadd.f32 %v380, %v475
      %v484 = vadd.f32 %v385, %v480
      %v485 = vld [vmem:[%s192 + $0x3] sm:$0xff]
      %v486 = vld [vmem:[%s192 + $0xb] sm:$0xff]
      %s487 = scalar_lea.vmem %s1, 264
      %v488 = vld [vmem:[%s487] sm:$0xff]
      %v489 = vld [vmem:[%s487 + $0x8] sm:$0xff]
      %v490 = vld [vmem:[%s487 + $0x10] sm:$0xff]
      %v491 = vld [vmem:[%s487 + $0x18] sm:$0xff]
      %v492 = vld [vmem:[%s487 + $0x20] sm:$0xff]
      %v493 = vld [vmem:[%s487 + $0x28] sm:$0xff]
      %v494 = vld [vmem:[%s487 + $0x30] sm:$0xff]
      %v495 = vld [vmem:[%s487 + $0x38] sm:$0xff]
      %v496 = vld [vmem:[%s487 + $0x40] sm:$0xff]
      %v497 = vld [vmem:[%s487 + $0x48] sm:$0xff]
      %v498 = vld [vmem:[%s487 + $0x50] sm:$0xff]
      %v500 = vsel %vm225, %v485, 0
      %v503 = vsel %vm225, %v486, 0
      %505 = vmatprep.subr.mxu0 0.0
      %506 = vmatpush1.msra.mxu0 0.0
      %507 = vmatprep.subr.mxu0 0.0
      %508 = vmatpush1.msra.mxu0 0.0
      %509 = vmatprep.subr.mxu0 0.0
      %510 = vmatpush1.msra.mxu0 0.0
      %511 = vmatprep.subr.mxu0 0.0
      %512 = vmatpush1.msra.mxu0 0.0
      %513 = vmatprep.subr.mxu0 0.0
      %514 = vmatpush1.msra.mxu0 0.0
      %515 = vmatprep.subr.mxu0 0.0
      %516 = vmatpush1.msra.mxu0 %v498
      %517 = vmatprep.subr.mxu0 0.0
      %518 = vmatpush1.msra.mxu0 %v497
      %519 = vmatprep.subr.mxu0 0.0
      %520 = vmatpush1.msra.mxu0 %v496
      %521 = vmatprep.subr.mxu0 0.0
      %522 = vmatpush1.msra.mxu0 %v495
      %523 = vmatprep.subr.mxu0 0.0
      %524 = vmatpush1.msra.mxu0 %v494
      %525 = vmatprep.subr.mxu0 0.0
      %526 = vmatpush1.msra.mxu0 %v493
      %527 = vmatprep.subr.mxu0 0.0
      %528 = vmatpush1.msra.mxu0 %v492
      %529 = vmatprep.subr.mxu0 0.0
      %530 = vmatpush1.msra.mxu0 %v491
      %531 = vmatprep.subr.mxu0 0.0
      %532 = vmatpush1.msra.mxu0 %v490
      %533 = vmatprep.subr.mxu0 0.0
      %534 = vmatpush1.msra.mxu0 %v489
      %535 = vmatprep.subr.mxu0 0.0
      %536 = vmatpush1.msra.mxu0 %v488
      %537 = vmatprep.subr.mxu0 0.0
      %538 = vmatpush2.msra.mxu0 0.0
      %539 = vmatprep.subr.mxu0 0.0
      %540 = vmatpush2.msra.mxu0 0.0
      %541 = vmatprep.subr.mxu0 0.0
      %542 = vmatpush2.msra.mxu0 0.0
      %543 = vmatprep.subr.mxu0 0.0
      %544 = vmatpush2.msra.mxu0 0.0
      %545 = vmatprep.subr.mxu0 0.0
      %546 = vmatpush2.msra.mxu0 0.0
      %547 = vmatprep.subr.mxu0 0.0
      %548 = vmatpush2.msra.mxu0 0.0
      %549 = vmatprep.subr.mxu0 0.0
      %550 = vmatpush2.msra.mxu0 0.0
      %551 = vmatprep.subr.mxu0 0.0
      %552 = vmatpush2.msra.mxu0 0.0
      %553 = vmatprep.subr.mxu0 0.0
      %554 = vmatpush2.msra.mxu0 0.0
      %555 = vmatprep.subr.mxu0 0.0
      %556 = vmatpush2.msra.mxu0 0.0
      %557 = vmatprep.subr.mxu0 0.0
      %558 = vmatpush2.msra.mxu0 0.0
      %559 = vmatprep.subr.mxu0 0.0
      %560 = vmatpush2.msra.mxu0 0.0
      %561 = vmatprep.subr.mxu0 0.0
      %562 = vmatpush2.msra.mxu0 0.0
      %563 = vmatprep.subr.mxu0 0.0
      %564 = vmatpush2.msra.mxu0 0.0
      %565 = vmatprep.subr.mxu0 0.0
      %566 = vmatpush2.msra.mxu0 0.0
      %567 = vmatprep.subr.mxu0 0.0
      %568 = vmatpush2.msra.mxu0 0.0
      %569 = vmatprep.mubr.f32.mxu0 0.0
      %570 = vmatmul.mubr.f32.gmra.mxu0 %v500
      %v571 = vpop.f32.mrf.mxu0
      %v572 = vadd.f32 0.0, %v571
      %v573 = vpop.f32.mrf.mxu0
      %574 = vmatprep.mubr.f32.mxu0 0.0
      %575 = vmatmul.mubr.f32.gmra.mxu0 %v503
      %v576 = vpop.f32.mrf.mxu0
      %v577 = vadd.f32 0.0, %v576
      %v578 = vpop.f32.mrf.mxu0
      %579 = vdwg.mxu0
      %v580 = vadd.f32 %v483, %v572
      %v581 = vadd.f32 %v484, %v577
      %v582 = vld [vmem:[%s192 + $0x4] sm:$0xff]
      %v583 = vld [vmem:[%s192 + $0xc] sm:$0xff]
      %s584 = scalar_lea.vmem %s1, 352
      %v585 = vld [vmem:[%s584] sm:$0xff]
      %v586 = vld [vmem:[%s584 + $0x8] sm:$0xff]
      %v587 = vld [vmem:[%s584 + $0x10] sm:$0xff]
      %v588 = vld [vmem:[%s584 + $0x18] sm:$0xff]
      %v589 = vld [vmem:[%s584 + $0x20] sm:$0xff]
      %v590 = vld [vmem:[%s584 + $0x28] sm:$0xff]
      %v591 = vld [vmem:[%s584 + $0x30] sm:$0xff]
      %v592 = vld [vmem:[%s584 + $0x38] sm:$0xff]
      %v593 = vld [vmem:[%s584 + $0x40] sm:$0xff]
      %v594 = vld [vmem:[%s584 + $0x48] sm:$0xff]
      %v595 = vld [vmem:[%s584 + $0x50] sm:$0xff]
      %v597 = vsel %vm225, %v582, 0
      %v600 = vsel %vm225, %v583, 0
      %602 = vmatprep.subr.mxu0 0.0
      %603 = vmatpush1.msra.mxu0 0.0
      %604 = vmatprep.subr.mxu0 0.0
      %605 = vmatpush1.msra.mxu0 0.0
      %606 = vmatprep.subr.mxu0 0.0
      %607 = vmatpush1.msra.mxu0 0.0
      %608 = vmatprep.subr.mxu0 0.0
      %609 = vmatpush1.msra.mxu0 0.0
      %610 = vmatprep.subr.mxu0 0.0
      %611 = vmatpush1.msra.mxu0 0.0
      %612 = vmatprep.subr.mxu0 0.0
      %613 = vmatpush1.msra.mxu0 %v595
      %614 = vmatprep.subr.mxu0 0.0
      %615 = vmatpush1.msra.mxu0 %v594
      %616 = vmatprep.subr.mxu0 0.0
      %617 = vmatpush1.msra.mxu0 %v593
      %618 = vmatprep.subr.mxu0 0.0
      %619 = vmatpush1.msra.mxu0 %v592
      %620 = vmatprep.subr.mxu0 0.0
      %621 = vmatpush1.msra.mxu0 %v591
      %622 = vmatprep.subr.mxu0 0.0
      %623 = vmatpush1.msra.mxu0 %v590
      %624 = vmatprep.subr.mxu0 0.0
      %625 = vmatpush1.msra.mxu0 %v589
      %626 = vmatprep.subr.mxu0 0.0
      %627 = vmatpush1.msra.mxu0 %v588
      %628 = vmatprep.subr.mxu0 0.0
      %629 = vmatpush1.msra.mxu0 %v587
      %630 = vmatprep.subr.mxu0 0.0
      %631 = vmatpush1.msra.mxu0 %v586
      %632 = vmatprep.subr.mxu0 0.0
      %633 = vmatpush1.msra.mxu0 %v585
      %634 = vmatprep.subr.mxu0 0.0
      %635 = vmatpush2.msra.mxu0 0.0
      %636 = vmatprep.subr.mxu0 0.0
      %637 = vmatpush2.msra.mxu0 0.0
      %638 = vmatprep.subr.mxu0 0.0
      %639 = vmatpush2.msra.mxu0 0.0
      %640 = vmatprep.subr.mxu0 0.0
      %641 = vmatpush2.msra.mxu0 0.0
      %642 = vmatprep.subr.mxu0 0.0
      %643 = vmatpush2.msra.mxu0 0.0
      %644 = vmatprep.subr.mxu0 0.0
      %645 = vmatpush2.msra.mxu0 0.0
      %646 = vmatprep.subr.mxu0 0.0
      %647 = vmatpush2.msra.mxu0 0.0
      %648 = vmatprep.subr.mxu0 0.0
      %649 = vmatpush2.msra.mxu0 0.0
      %650 = vmatprep.subr.mxu0 0.0
      %651 = vmatpush2.msra.mxu0 0.0
      %652 = vmatprep.subr.mxu0 0.0
      %653 = vmatpush2.msra.mxu0 0.0
      %654 = vmatprep.subr.mxu0 0.0
      %655 = vmatpush2.msra.mxu0 0.0
      %656 = vmatprep.subr.mxu0 0.0
      %657 = vmatpush2.msra.mxu0 0.0
      %658 = vmatprep.subr.mxu0 0.0
      %659 = vmatpush2.msra.mxu0 0.0
      %660 = vmatprep.subr.mxu0 0.0
      %661 = vmatpush2.msra.mxu0 0.0
      %662 = vmatprep.subr.mxu0 0.0
      %663 = vmatpush2.msra.mxu0 0.0
      %664 = vmatprep.subr.mxu0 0.0
      %665 = vmatpush2.msra.mxu0 0.0
      %666 = vmatprep.mubr.f32.mxu0 0.0
      %667 = vmatmul.mubr.f32.gmra.mxu0 %v597
      %v668 = vpop.f32.mrf.mxu0
      %v669 = vadd.f32 0.0, %v668
      %v670 = vpop.f32.mrf.mxu0
      %671 = vmatprep.mubr.f32.mxu0 0.0
      %672 = vmatmul.mubr.f32.gmra.mxu0 %v600
      %v673 = vpop.f32.mrf.mxu0
      %v674 = vadd.f32 0.0, %v673
      %v675 = vpop.f32.mrf.mxu0
      %676 = vdwg.mxu0
      %v677 = vadd.f32 %v580, %v669
      %v678 = vadd.f32 %v581, %v674
      %v679 = vld [vmem:[%s192 + $0x5] sm:$0xff]
      %v680 = vld [vmem:[%s192 + $0xd] sm:$0xff]
      %s681 = scalar_lea.vmem %s1, 440
      %v682 = vld [vmem:[%s681] sm:$0xff]
      %v683 = vld [vmem:[%s681 + $0x8] sm:$0xff]
      %v684 = vld [vmem:[%s681 + $0x10] sm:$0xff]
      %v685 = vld [vmem:[%s681 + $0x18] sm:$0xff]
      %v686 = vld [vmem:[%s681 + $0x20] sm:$0xff]
      %v687 = vld [vmem:[%s681 + $0x28] sm:$0xff]
      %v688 = vld [vmem:[%s681 + $0x30] sm:$0xff]
      %v689 = vld [vmem:[%s681 + $0x38] sm:$0xff]
      %v690 = vld [vmem:[%s681 + $0x40] sm:$0xff]
      %v691 = vld [vmem:[%s681 + $0x48] sm:$0xff]
      %v692 = vld [vmem:[%s681 + $0x50] sm:$0xff]
      %v694 = vsel %vm225, %v679, 0
      %v697 = vsel %vm225, %v680, 0
      %699 = vmatprep.subr.mxu0 0.0
      %700 = vmatpush1.msra.mxu0 0.0
      %701 = vmatprep.subr.mxu0 0.0
      %702 = vmatpush1.msra.mxu0 0.0
      %703 = vmatprep.subr.mxu0 0.0
      %704 = vmatpush1.msra.mxu0 0.0
      %705 = vmatprep.subr.mxu0 0.0
      %706 = vmatpush1.msra.mxu0 0.0
      %707 = vmatprep.subr.mxu0 0.0
      %708 = vmatpush1.msra.mxu0 0.0
      %709 = vmatprep.subr.mxu0 0.0
      %710 = vmatpush1.msra.mxu0 %v692
      %711 = vmatprep.subr.mxu0 0.0
      %712 = vmatpush1.msra.mxu0 %v691
      %713 = vmatprep.subr.mxu0 0.0
      %714 = vmatpush1.msra.mxu0 %v690
      %715 = vmatprep.subr.mxu0 0.0
      %716 = vmatpush1.msra.mxu0 %v689
      %717 = vmatprep.subr.mxu0 0.0
      %718 = vmatpush1.msra.mxu0 %v688
      %719 = vmatprep.subr.mxu0 0.0
      %720 = vmatpush1.msra.mxu0 %v687
      %721 = vmatprep.subr.mxu0 0.0
      %722 = vmatpush1.msra.mxu0 %v686
      %723 = vmatprep.subr.mxu0 0.0
      %724 = vmatpush1.msra.mxu0 %v685
      %725 = vmatprep.subr.mxu0 0.0
      %726 = vmatpush1.msra.mxu0 %v684
      %727 = vmatprep.subr.mxu0 0.0
      %728 = vmatpush1.msra.mxu0 %v683
      %729 = vmatprep.subr.mxu0 0.0
      %730 = vmatpush1.msra.mxu0 %v682
      %731 = vmatprep.subr.mxu0 0.0
      %732 = vmatpush2.msra.mxu0 0.0
      %733 = vmatprep.subr.mxu0 0.0
      %734 = vmatpush2.msra.mxu0 0.0
      %735 = vmatprep.subr.mxu0 0.0
      %736 = vmatpush2.msra.mxu0 0.0
      %737 = vmatprep.subr.mxu0 0.0
      %738 = vmatpush2.msra.mxu0 0.0
      %739 = vmatprep.subr.mxu0 0.0
      %740 = vmatpush2.msra.mxu0 0.0
      %741 = vmatprep.subr.mxu0 0.0
      %742 = vmatpush2.msra.mxu0 0.0
      %743 = vmatprep.subr.mxu0 0.0
      %744 = vmatpush2.msra.mxu0 0.0
      %745 = vmatprep.subr.mxu0 0.0
      %746 = vmatpush2.msra.mxu0 0.0
      %747 = vmatprep.subr.mxu0 0.0
      %748 = vmatpush2.msra.mxu0 0.0
      %749 = vmatprep.subr.mxu0 0.0
      %750 = vmatpush2.msra.mxu0 0.0
      %751 = vmatprep.subr.mxu0 0.0
      %752 = vmatpush2.msra.mxu0 0.0
      %753 = vmatprep.subr.mxu0 0.0
      %754 = vmatpush2.msra.mxu0 0.0
      %755 = vmatprep.subr.mxu0 0.0
      %756 = vmatpush2.msra.mxu0 0.0
      %757 = vmatprep.subr.mxu0 0.0
      %758 = vmatpush2.msra.mxu0 0.0
      %759 = vmatprep.subr.mxu0 0.0
      %760 = vmatpush2.msra.mxu0 0.0
      %761 = vmatprep.subr.mxu0 0.0
      %762 = vmatpush2.msra.mxu0 0.0
      %763 = vmatprep.mubr.f32.mxu0 0.0
      %764 = vmatmul.mubr.f32.gmra.mxu0 %v694
      %v765 = vpop.f32.mrf.mxu0
      %v766 = vadd.f32 0.0, %v765
      %v767 = vpop.f32.mrf.mxu0
      %768 = vmatprep.mubr.f32.mxu0 0.0
      %769 = vmatmul.mubr.f32.gmra.mxu0 %v697
      %v770 = vpop.f32.mrf.mxu0
      %v771 = vadd.f32 0.0, %v770
      %v772 = vpop.f32.mrf.mxu0
      %773 = vdwg.mxu0
      %v774 = vadd.f32 %v677, %v766
      %v775 = vadd.f32 %v678, %v771
      %v776 = vld [vmem:[%s192 + $0x6] sm:$0xff]
      %v777 = vld [vmem:[%s192 + $0xe] sm:$0xff]
      %s778 = scalar_lea.vmem %s1, 528
      %v779 = vld [vmem:[%s778] sm:$0xff]
      %v780 = vld [vmem:[%s778 + $0x8] sm:$0xff]
      %v781 = vld [vmem:[%s778 + $0x10] sm:$0xff]
      %v782 = vld [vmem:[%s778 + $0x18] sm:$0xff]
      %v783 = vld [vmem:[%s778 + $0x20] sm:$0xff]
      %v784 = vld [vmem:[%s778 + $0x28] sm:$0xff]
      %v785 = vld [vmem:[%s778 + $0x30] sm:$0xff]
      %v786 = vld [vmem:[%s778 + $0x38] sm:$0xff]
      %v787 = vld [vmem:[%s778 + $0x40] sm:$0xff]
      %v788 = vld [vmem:[%s778 + $0x48] sm:$0xff]
      %v789 = vld [vmem:[%s778 + $0x50] sm:$0xff]
      %v791 = vsel %vm225, %v776, 0
      %v794 = vsel %vm225, %v777, 0
      %796 = vmatprep.subr.mxu0 0.0
      %797 = vmatpush1.msra.mxu0 0.0
      %798 = vmatprep.subr.mxu0 0.0
      %799 = vmatpush1.msra.mxu0 0.0
      %800 = vmatprep.subr.mxu0 0.0
      %801 = vmatpush1.msra.mxu0 0.0
      %802 = vmatprep.subr.mxu0 0.0
      %803 = vmatpush1.msra.mxu0 0.0
      %804 = vmatprep.subr.mxu0 0.0
      %805 = vmatpush1.msra.mxu0 0.0
      %806 = vmatprep.subr.mxu0 0.0
      %807 = vmatpush1.msra.mxu0 %v789
      %808 = vmatprep.subr.mxu0 0.0
      %809 = vmatpush1.msra.mxu0 %v788
      %810 = vmatprep.subr.mxu0 0.0
      %811 = vmatpush1.msra.mxu0 %v787
      %812 = vmatprep.subr.mxu0 0.0
      %813 = vmatpush1.msra.mxu0 %v786
      %814 = vmatprep.subr.mxu0 0.0
      %815 = vmatpush1.msra.mxu0 %v785
      %816 = vmatprep.subr.mxu0 0.0
      %817 = vmatpush1.msra.mxu0 %v784
      %818 = vmatprep.subr.mxu0 0.0
      %819 = vmatpush1.msra.mxu0 %v783
      %820 = vmatprep.subr.mxu0 0.0
      %821 = vmatpush1.msra.mxu0 %v782
      %822 = vmatprep.subr.mxu0 0.0
      %823 = vmatpush1.msra.mxu0 %v781
      %824 = vmatprep.subr.mxu0 0.0
      %825 = vmatpush1.msra.mxu0 %v780
      %826 = vmatprep.subr.mxu0 0.0
      %827 = vmatpush1.msra.mxu0 %v779
      %828 = vmatprep.subr.mxu0 0.0
      %829 = vmatpush2.msra.mxu0 0.0
      %830 = vmatprep.subr.mxu0 0.0
      %831 = vmatpush2.msra.mxu0 0.0
      %832 = vmatprep.subr.mxu0 0.0
      %833 = vmatpush2.msra.mxu0 0.0
      %834 = vmatprep.subr.mxu0 0.0
      %835 = vmatpush2.msra.mxu0 0.0
      %836 = vmatprep.subr.mxu0 0.0
      %837 = vmatpush2.msra.mxu0 0.0
      %838 = vmatprep.subr.mxu0 0.0
      %839 = vmatpush2.msra.mxu0 0.0
      %840 = vmatprep.subr.mxu0 0.0
      %841 = vmatpush2.msra.mxu0 0.0
      %842 = vmatprep.subr.mxu0 0.0
      %843 = vmatpush2.msra.mxu0 0.0
      %844 = vmatprep.subr.mxu0 0.0
      %845 = vmatpush2.msra.mxu0 0.0
      %846 = vmatprep.subr.mxu0 0.0
      %847 = vmatpush2.msra.mxu0 0.0
      %848 = vmatprep.subr.mxu0 0.0
      %849 = vmatpush2.msra.mxu0 0.0
      %850 = vmatprep.subr.mxu0 0.0
      %851 = vmatpush2.msra.mxu0 0.0
      %852 = vmatprep.subr.mxu0 0.0
      %853 = vmatpush2.msra.mxu0 0.0
      %854 = vmatprep.subr.mxu0 0.0
      %855 = vmatpush2.msra.mxu0 0.0
      %856 = vmatprep.subr.mxu0 0.0
      %857 = vmatpush2.msra.mxu0 0.0
      %858 = vmatprep.subr.mxu0 0.0
      %859 = vmatpush2.msra.mxu0 0.0
      %860 = vmatprep.mubr.f32.mxu0 0.0
      %861 = vmatmul.mubr.f32.gmra.mxu0 %v791
      %v862 = vpop.f32.mrf.mxu0
      %v863 = vadd.f32 0.0, %v862
      %v864 = vpop.f32.mrf.mxu0
      %865 = vmatprep.mubr.f32.mxu0 0.0
      %866 = vmatmul.mubr.f32.gmra.mxu0 %v794
      %v867 = vpop.f32.mrf.mxu0
      %v868 = vadd.f32 0.0, %v867
      %v869 = vpop.f32.mrf.mxu0
      %870 = vdwg.mxu0
      %v871 = vadd.f32 %v774, %v863
      %v872 = vadd.f32 %v775, %v868
      %v873 = vld [vmem:[%s2] sm:$0x1]
      %v875 = vlaneseq
      %v876 = vshrl.u32 %v875, 7
      %v877 = vsub.s32 0, %v876
      %v878 = vrot.slane %v873, %v877
      %v880 = vadd.f32 %v871, %v878
      %v881 = vadd.f32 %v872, %v878
      %v882 = vld [vmem:[%s3] sm:$0xff]
      %v883 = vld [vmem:[%s3 + $0x8] sm:$0xff]
      %v884 = vld [vmem:[%s3 + $0x10] sm:$0xff]
      %v885 = vld [vmem:[%s3 + $0x18] sm:$0xff]
      %v886 = vld [vmem:[%s3 + $0x20] sm:$0xff]
      %v887 = vld [vmem:[%s3 + $0x28] sm:$0xff]
      %v888 = vld [vmem:[%s3 + $0x30] sm:$0xff]
      %v889 = vld [vmem:[%s3 + $0x38] sm:$0xff]
      %v890 = vld [vmem:[%s3 + $0x40] sm:$0xff]
      %v891 = vld [vmem:[%s3 + $0x48] sm:$0xff]
      %v892 = vld [vmem:[%s3 + $0x50] sm:$0xff]
      %v893 = vld [vmem:[%s3 + $0x58] sm:$0xff]
      %v894 = vld [vmem:[%s3 + $0x60] sm:$0xff]
      %v895 = vld [vmem:[%s3 + $0x68] sm:$0xff]
      %v896 = vld [vmem:[%s3 + $0x70] sm:$0xff]
      %v897 = vld [vmem:[%s3 + $0x78] sm:$0xff]
      %898 = vmatprep.subr.mxu0 0.0
      %899 = vmatpush1.msra.mxu0 %v897
      %900 = vmatprep.subr.mxu0 0.0
      %901 = vmatpush1.msra.mxu0 %v896
      %902 = vmatprep.subr.mxu0 0.0
      %903 = vmatpush1.msra.mxu0 %v895
      %904 = vmatprep.subr.mxu0 0.0
      %905 = vmatpush1.msra.mxu0 %v894
      %906 = vmatprep.subr.mxu0 0.0
      %907 = vmatpush1.msra.mxu0 %v893
      %908 = vmatprep.subr.mxu0 0.0
      %909 = vmatpush1.msra.mxu0 %v892
      %910 = vmatprep.subr.mxu0 0.0
      %911 = vmatpush1.msra.mxu0 %v891
      %912 = vmatprep.subr.mxu0 0.0
      %913 = vmatpush1.msra.mxu0 %v890
      %914 = vmatprep.subr.mxu0 0.0
      %915 = vmatpush1.msra.mxu0 %v889
      %916 = vmatprep.subr.mxu0 0.0
      %917 = vmatpush1.msra.mxu0 %v888
      %918 = vmatprep.subr.mxu0 0.0
      %919 = vmatpush1.msra.mxu0 %v887
      %920 = vmatprep.subr.mxu0 0.0
      %921 = vmatpush1.msra.mxu0 %v886
      %922 = vmatprep.subr.mxu0 0.0
      %923 = vmatpush1.msra.mxu0 %v885
      %924 = vmatprep.subr.mxu0 0.0
      %925 = vmatpush1.msra.mxu0 %v884
      %926 = vmatprep.subr.mxu0 0.0
      %927 = vmatpush1.msra.mxu0 %v883
      %928 = vmatprep.subr.mxu0 0.0
      %929 = vmatpush1.msra.mxu0 %v882
      %930 = vmatprep.subr.mxu0 0.0
      %931 = vmatpush2.msra.mxu0 0.0
      %932 = vmatprep.subr.mxu0 0.0
      %933 = vmatpush2.msra.mxu0 0.0
      %934 = vmatprep.subr.mxu0 0.0
      %935 = vmatpush2.msra.mxu0 0.0
      %936 = vmatprep.subr.mxu0 0.0
      %937 = vmatpush2.msra.mxu0 0.0
      %938 = vmatprep.subr.mxu0 0.0
      %939 = vmatpush2.msra.mxu0 0.0
      %940 = vmatprep.subr.mxu0 0.0
      %941 = vmatpush2.msra.mxu0 0.0
      %942 = vmatprep.subr.mxu0 0.0
      %943 = vmatpush2.msra.mxu0 0.0
      %944 = vmatprep.subr.mxu0 0.0
      %945 = vmatpush2.msra.mxu0 0.0
      %946 = vmatprep.subr.mxu0 0.0
      %947 = vmatpush2.msra.mxu0 0.0
      %948 = vmatprep.subr.mxu0 0.0
      %949 = vmatpush2.msra.mxu0 0.0
      %950 = vmatprep.subr.mxu0 0.0
      %951 = vmatpush2.msra.mxu0 0.0
      %952 = vmatprep.subr.mxu0 0.0
      %953 = vmatpush2.msra.mxu0 0.0
      %954 = vmatprep.subr.mxu0 0.0
      %955 = vmatpush2.msra.mxu0 0.0
      %956 = vmatprep.subr.mxu0 0.0
      %957 = vmatpush2.msra.mxu0 0.0
      %958 = vmatprep.subr.mxu0 0.0
      %959 = vmatpush2.msra.mxu0 0.0
      %960 = vmatprep.subr.mxu0 0.0
      %961 = vmatpush2.msra.mxu0 0.0
      %962 = vmatprep.mubr.f32.mxu0 0.0
      %963 = vmatmul.mubr.f32.gmra.mxu0 %v880
      %v964 = vpop.f32.mrf.mxu0
      %v965 = vadd.f32 0.0, %v964
      %v966 = vpop.f32.mrf.mxu0
      %967 = vmatprep.mubr.f32.mxu0 0.0
      %968 = vmatmul.mubr.f32.gmra.mxu0 %v881
      %v969 = vpop.f32.mrf.mxu0
      %v970 = vadd.f32 0.0, %v969
      %v971 = vpop.f32.mrf.mxu0
      %972 = vdwg.mxu0
      %v973 = vmul.f32 %v880, %v880
      %v974 = vmul.f32 %v881, %v881
      %975 = vmatprep.subr.mxu0 0.0
      %976 = vmatpush1.msra.mxu0 %v897
      %977 = vmatprep.subr.mxu0 0.0
      %978 = vmatpush1.msra.mxu0 %v896
      %979 = vmatprep.subr.mxu0 0.0
      %980 = vmatpush1.msra.mxu0 %v895
      %981 = vmatprep.subr.mxu0 0.0
      %982 = vmatpush1.msra.mxu0 %v894
      %983 = vmatprep.subr.mxu0 0.0
      %984 = vmatpush1.msra.mxu0 %v893
      %985 = vmatprep.subr.mxu0 0.0
      %986 = vmatpush1.msra.mxu0 %v892
      %987 = vmatprep.subr.mxu0 0.0
      %988 = vmatpush1.msra.mxu0 %v891
      %989 = vmatprep.subr.mxu0 0.0
      %990 = vmatpush1.msra.mxu0 %v890
      %991 = vmatprep.subr.mxu0 0.0
      %992 = vmatpush1.msra.mxu0 %v889
      %993 = vmatprep.subr.mxu0 0.0
      %994 = vmatpush1.msra.mxu0 %v888
      %995 = vmatprep.subr.mxu0 0.0
      %996 = vmatpush1.msra.mxu0 %v887
      %997 = vmatprep.subr.mxu0 0.0
      %998 = vmatpush1.msra.mxu0 %v886
      %999 = vmatprep.subr.mxu0 0.0
      %1000 = vmatpush1.msra.mxu0 %v885
      %1001 = vmatprep.subr.mxu0 0.0
      %1002 = vmatpush1.msra.mxu0 %v884
      %1003 = vmatprep.subr.mxu0 0.0
      %1004 = vmatpush1.msra.mxu0 %v883
      %1005 = vmatprep.subr.mxu0 0.0
      %1006 = vmatpush1.msra.mxu0 %v882
      %1007 = vmatprep.subr.mxu0 0.0
      %1008 = vmatpush2.msra.mxu0 0.0
      %1009 = vmatprep.subr.mxu0 0.0
      %1010 = vmatpush2.msra.mxu0 0.0
      %1011 = vmatprep.subr.mxu0 0.0
      %1012 = vmatpush2.msra.mxu0 0.0
      %1013 = vmatprep.subr.mxu0 0.0
      %1014 = vmatpush2.msra.mxu0 0.0
      %1015 = vmatprep.subr.mxu0 0.0
      %1016 = vmatpush2.msra.mxu0 0.0
      %1017 = vmatprep.subr.mxu0 0.0
      %1018 = vmatpush2.msra.mxu0 0.0
      %1019 = vmatprep.subr.mxu0 0.0
      %1020 = vmatpush2.msra.mxu0 0.0
      %1021 = vmatprep.subr.mxu0 0.0
      %1022 = vmatpush2.msra.mxu0 0.0
      %1023 = vmatprep.subr.mxu0 0.0
      %1024 = vmatpush2.msra.mxu0 0.0
      %1025 = vmatprep.subr.mxu0 0.0
      %1026 = vmatpush2.msra.mxu0 0.0
      %1027 = vmatprep.subr.mxu0 0.0
      %1028 = vmatpush2.msra.mxu0 0.0
      %1029 = vmatprep.subr.mxu0 0.0
      %1030 = vmatpush2.msra.mxu0 0.0
      %1031 = vmatprep.subr.mxu0 0.0
      %1032 = vmatpush2.msra.mxu0 0.0
      %1033 = vmatprep.subr.mxu0 0.0
      %1034 = vmatpush2.msra.mxu0 0.0
      %1035 = vmatprep.subr.mxu0 0.0
      %1036 = vmatpush2.msra.mxu0 0.0
      %1037 = vmatprep.subr.mxu0 0.0
      %1038 = vmatpush2.msra.mxu0 0.0
      %1039 = vmatprep.mubr.f32.mxu0 0.0
      %1040 = vmatmul.mubr.f32.gmra.mxu0 %v973
      %v1041 = vpop.f32.mrf.mxu0
      %v1042 = vadd.f32 0.0, %v1041
      %v1043 = vpop.f32.mrf.mxu0
      %1044 = vmatprep.mubr.f32.mxu0 0.0
      %1045 = vmatmul.mubr.f32.gmra.mxu0 %v974
      %v1046 = vpop.f32.mrf.mxu0
      %v1047 = vadd.f32 0.0, %v1046
      %v1048 = vpop.f32.mrf.mxu0
      %1049 = vdwg.mxu0
      %v1050 = vadd.f32 %v965, %v970
      %v1051 = vrot.slane %v1050, 4
      %v1052 = vadd.f32 %v1050, %v1051
      %v1053 = vrot.slane %v1052, 2
      %v1054 = vadd.f32 %v1052, %v1053
      %v1055 = vrot.slane %v1054, 1
      %v1056 = vadd.f32 %v1054, %v1055
      %v1057 = vadd.f32 %v1042, %v1047
      %v1058 = vrot.slane %v1057, 4
      %v1059 = vadd.f32 %v1057, %v1058
      %v1060 = vrot.slane %v1059, 2
      %v1061 = vadd.f32 %v1059, %v1060
      %v1062 = vrot.slane %v1061, 1
      %v1063 = vadd.f32 %v1061, %v1062
      %v1064 = vmul.f32 %v1056, %v1056
      %v1065 = vsub.f32 %v1063, %v1064
      %v1066 = vsub.f32 %v880, %v1056
      %v1067 = vsub.f32 %v881, %v1056
      %v1068 = vadd.f32 %v1065, 1e-05
      %v1069 = vrsqrt.pop %v1068
      %v1070 = vmul.f32 %v1066, %v1069
      %v1071 = vmul.f32 %v1067, %v1069
      %v1072 = vmax.f32 %v1070, 0.0
      %v1073 = vmax.f32 %v1071, 0.0
      %1074 = vst [vmem:[%s197] sm:$0xff] %v1072
      %1075 = vst [vmem:[%s197 + $0x8] sm:$0xff] %v1073
      %p1076 = scmp.lt.s32.totalorder %s15, 1
      %s1077 = scalar_select %p1076, %s15, 1
      %s1078 = smul.addr %s1077, 2
      %s1079 = smul.addr %s1078, 8
      %s1080 = scalar_lea.vmem %s4, %s1079
      // Predicated region
      $region37: #{resnet_discriminator_forward.9} parent=35 // pred_check
        %p1081 = pneg %p122
      $region38: #{resnet_discriminator_forward.9} parent=35 // pred_check_branch
        %1083 = sbr.rel (%p1081) target = $region40
      $region39: #{resnet_discriminator_forward.9} parent=35 // pred_region
        _
      $region40: #{resnet_discriminator_forward.9} parent=35 // pred_fallthru
        _
    $region36: #{resnet_discriminator_forward.9} parent=5 // pred_fallthru
      _
    %p1084 = scmp.le.s32.totalorder 2, %s10
    // Predicated region
    $region41: #{resnet_discriminator_forward.9} parent=5 // pred_check
      %p1085 = pneg %p1084
    $region42: #{resnet_discriminator_forward.9} parent=5 // pred_check_branch
      %1087 = sbr.rel (%p1085) target = $region44
    $region43: #{resnet_discriminator_forward.9} parent=5 // pred_region
      %s1088 = ssub.s32 %s10, 2
      // Predicated region
      $region45: #{resnet_discriminator_forward.9} parent=43 // pred_check
        %p1089 = pneg %p128
      $region46: #{resnet_discriminator_forward.9} parent=43 // pred_check_branch
        %1091 = sbr.rel (%p1089) target = $region48
      $region47: #{resnet_discriminator_forward.9} parent=43 // pred_region
        %p1092 = scmp.lt.s32.totalorder %s16, 1
        %s1093 = scalar_select %p1092, %s16, 1
        %s1094 = smul.addr %s1093, 2
        %s1095 = smul.addr %s1094, 8
        %s1096 = scalar_lea.vmem %s4, %s1095
      $region48: #{resnet_discriminator_forward.9} parent=43 // pred_fallthru
        _
    $region44: #{resnet_discriminator_forward.9} parent=5 // pred_fallthru
      _
  $region6: #{resnet_discriminator_forward.9} parent=0 // loop_footer
    %s14 = sadd.s32 1, %s10
  $region7: #{resnet_discriminator_forward.9} parent=0 // loop_footer_branch
    %9 = sbr.rel target = $region3
  $region8: #{resnet_discriminator_forward.9} parent=0 // loop_exit
    _

// kernel: tile.103
$region0: #{tile.103}
  #allocation0 [shape = 's32[1]{0}', space=sflag, size = 0x4, scoped, tag = 'scoped memory for tile.103']
  %s0 = inlined_call_operand.vmem [shape: f32[16], index: 0, kind: input, shape index: {}]
  %s1 = inlined_call_operand.vmem [shape: f32[8,16], index: 1, kind: output, shape index: {}]
  // Predicated region
  $region2: #{tile.103} parent=0 // pred_check
    _
  $region3: #{tile.103} parent=0 // pred_check_branch
    %3 = sbr.rel (0) target = $region5
  $region4: #{tile.103} parent=0 // pred_region
    _
  $region5: #{tile.103} parent=0 // pred_fallthru
    _
  %v4 = vld [vmem:[%s0] ss:$0 sm:$0xff]
  %5 = vst [vmem:[%s1] sm:$0xff] %v4

// kernel: tile.104
$region0: #{tile.104}
  %s0 = inlined_call_operand.vmem [shape: f32[8,16], index: 0, kind: input, shape index: {}]
  %s1 = inlined_call_operand.vmem [shape: f32[1,128], index: 1, kind: output, shape index: {}]
  $region1: #{tile.104} parent=0
    #allocation0 [shape = 'u8[4096]{0}', space=vmem, size = 0x1000, scoped, tag = 'scoped mem for output reshape']
    %v2 = vld [vmem:[%s0] sm:$0x1]
    %vm3 = vcmask 130048
    %4 = vst.msk [vmem:[#allocation0] sm:$0x1] %vm3, %v2
    %s5 = scalar_lea.vmem %s0, 7
    %v6 = vld [vmem:[%s5] sm:$0x1]
    %7 = vrot.lane.b32.xlu0 %v6, 112
    %v8 = vpop.permute.xlu0 %7
    %vm9 = vcmask 1048448
    %10 = vst.msk [vmem:[#allocation0] sm:$0x1] %vm9, %v8
    %s11 = scalar_lea.vmem %s0, 6
    %v12 = vld [vmem:[%s11] sm:$0x1]
    %13 = vrot.lane.b32.xlu0 %v12, 96
    %v14 = vpop.permute.xlu0 %13
    %vm15 = vcmask 917248
    %16 = vst.msk [vmem:[#allocation0] sm:$0x1] %vm15, %v14
    %s17 = scalar_lea.vmem %s0, 5
    %v18 = vld [vmem:[%s17] sm:$0x1]
    %19 = vrot.lane.b32.xlu0 %v18, 80
    %v20 = vpop.permute.xlu0 %19
    %vm21 = vcmask 786048
    %22 = vst.msk [vmem:[#allocation0] sm:$0x1] %vm21, %v20
    %s23 = scalar_lea.vmem %s0, 4
    %v24 = vld [vmem:[%s23] sm:$0x1]
    %25 = vrot.lane.b32.xlu0 %v24, 64
    %v26 = vpop.permute.xlu0 %25
    %vm27 = vcmask 654848
    %28 = vst.msk [vmem:[#allocation0] sm:$0x1] %vm27, %v26
    %s29 = scalar_lea.vmem %s0, 3
    %v30 = vld [vmem:[%s29] sm:$0x1]
    %31 = vrot.lane.b32.xlu0 %v30, 48
    %v32 = vpop.permute.xlu0 %31
    %vm33 = vcmask 523648
    %34 = vst.msk [vmem:[#allocation0] sm:$0x1] %vm33, %v32
    %s35 = scalar_lea.vmem %s0, 2
    %v36 = vld [vmem:[%s35] sm:$0x1]
    %37 = vrot.lane.b32.xlu0 %v36, 32
    %v38 = vpop.permute.xlu0 %37
    %vm39 = vcmask 392448
    %40 = vst.msk [vmem:[#allocation0] sm:$0x1] %vm39, %v38
    %s41 = scalar_lea.vmem %s0, 1
    %v42 = vld [vmem:[%s41] sm:$0x1]
    %43 = vrot.lane.b32.xlu0 %v42, 16
    %v44 = vpop.permute.xlu0 %43
    %vm45 = vcmask 261248
    %46 = vst.msk [vmem:[#allocation0] sm:$0x1] %vm45, %v44
    %s48 = sshll.u32 1, 1
    %s49 = ssub.s32 %s48, 1
    %v51 = vld [vmem:[#allocation0] sm:%s49]
    %s52 = sshll.u32 1, 1
    %s53 = ssub.s32 %s52, 1
    %54 = vst [vmem:[%s1] sm:%s53] %v51

// kernel: resnet_discriminator_forward.10
$region0: #{resnet_discriminator_forward.10}
  #allocation0 [shape = 'u32[]', space=smem, size = 0x4, offset = 0x4, fixed_abs, tag = 'smem constant byte address 0x4 - core index']
  #allocation1 [shape = 'u32[144,128]{1,0:T(1,128)}', space=vmem, size = 0x12000, scoped, tag = 'internal scratch']
  %s0 = inlined_call_operand.vmem [shape: f32[2,2,9,144], index: 0, kind: input, shape index: {}]
  %s1 = inlined_call_operand.vmem [shape: f32[3,144,128], index: 1, kind: input, shape index: {}]
  %s2 = inlined_call_operand.vmem [shape: f32[1,128], index: 2, kind: input, shape index: {}]
  %s3 = inlined_call_operand.vmem [shape: f32[128,128], index: 3, kind: input, shape index: {}]
  %s4 = inlined_call_operand.vmem [shape: f32[2,8,128], index: 4, kind: output, shape index: {}]
  %s5 = sld [smem:[#allocation0]]
  $region49: #{resnet_discriminator_forward.10} parent=0
    _
  %s7 = ssub.s32 1, %s5
  %s8 = scalar_select 0, %s7, %s5
  loop: start=0, step=1, limit=4
  $region2: #{resnet_discriminator_forward.10} parent=0 // loop_pre_header
    _
  $region3: #{resnet_discriminator_forward.10} parent=0 // loop_header
    %s10 = sphi 0, %s14
    %p11 = scmp.ge.s32.totalorder %s10, 4
    %s20 = sphi 0, %s22
    %s23 = sphi 0, %s20
    %s24 = sphi 0, %s23
    %s40 = sphi 0, %s24
    %s44 = sphi 0, %s44
    %s46 = sphi 0, %s44
    %s47 = sphi 0, %s46
    %s61 = sphi 0, %s47
    %s65 = sphi 0, %s65
    %s67 = sphi 0, %s65
    %s68 = sphi 0, %s67
    %s82 = sphi 0, %s68
    %s86 = sphi 0, %s86
    %s88 = sphi 0, %s86
    %s89 = sphi 0, %s88
    %s103 = sphi 0, %s89
    %s109 = sphi 0, %s111
    %s112 = sphi 0, %s109
    %s113 = sphi 0, %s112
    %s129 = sphi 0, %s113
  $region4: #{resnet_discriminator_forward.10} parent=0 // loop_header_branch
    %13 = sbr.rel (%p11) target = $region8
  $region5: #{resnet_discriminator_forward.10} parent=0 // loop_body
    %s15 = ssub.s32 %s10, 1
    %s16 = ssub.s32 %s10, 2
    %s17 = sadd.s32 %s10, 1
    %s18 = ssub.s32 %s10, %s17
    %p19 = scmp.eq.s32.totalorder %s18, 0
    %s21 = sadd.s32 %s20, 1
    %s22 = scalar_select %p19, %s20, %s21
    %p25 = pneg %p19
    %p26 = scmp.eq.s32.totalorder %s10, 1
    %p27 = por %p25, %p26
    %p28 = scmp.ne.s32.totalorder %s20, %s23
    %p29 = scmp.eq.s32.totalorder %s10, 0
    %p30 = por %p28, %p29
    %p31 = scmp.ne.s32.totalorder %s20, %s23
    %p32 = scmp.eq.s32.totalorder %s15, 1
    %p33 = por %p31, %p32
    %p34 = scmp.ne.s32.totalorder %s23, %s24
    %p35 = scmp.eq.s32.totalorder %s15, 0
    %p36 = por %p34, %p35
    %p37 = scmp.ne.s32.totalorder %s23, %s24
    %p38 = scmp.eq.s32.totalorder %s16, 1
    %p39 = por %p37, %p38
    %p41 = scmp.ne.s32.totalorder %s24, %s40
    %p42 = scmp.eq.s32.totalorder %s16, 0
    %p43 = por %p41, %p42
    %s45 = sadd.s32 %s44, 1
    %p48 = scmp.eq.s32.totalorder %s10, 1
    %p49 = scmp.ne.s32.totalorder %s44, %s46
    %p50 = scmp.eq.s32.totalorder %s10, 0
    %p51 = por %p49, %p50
    %p52 = scmp.ne.s32.totalorder %s44, %s46
    %p53 = scmp.eq.s32.totalorder %s15, 1
    %p54 = por %p52, %p53
    %p55 = scmp.ne.s32.totalorder %s46, %s47
    %p56 = scmp.eq.s32.totalorder %s15, 0
    %p57 = por %p55, %p56
    %p58 = scmp.ne.s32.totalorder %s46, %s47
    %p59 = scmp.eq.s32.totalorder %s16, 1
    %p60 = por %p58, %p59
    %p62 = scmp.ne.s32.totalorder %s47, %s61
    %p63 = scmp.eq.s32.totalorder %s16, 0
    %p64 = por %p62, %p63
    %s66 = sadd.s32 %s65, 1
    %p69 = scmp.eq.s32.totalorder %s10, 1
    %p70 = scmp.ne.s32.totalorder %s65, %s67
    %p71 = scmp.eq.s32.totalorder %s10, 0
    %p72 = por %p70, %p71
    %p73 = scmp.ne.s32.totalorder %s65, %s67
    %p74 = scmp.eq.s32.totalorder %s15, 1
    %p75 = por %p73, %p74
    %p76 = scmp.ne.s32.totalorder %s67, %s68
    %p77 = scmp.eq.s32.totalorder %s15, 0
    %p78 = por %p76, %p77
    %p79 = scmp.ne.s32.totalorder %s67, %s68
    %p80 = scmp.eq.s32.totalorder %s16, 1
    %p81 = por %p79, %p80
    %p83 = scmp.ne.s32.totalorder %s68, %s82
    %p84 = scmp.eq.s32.totalorder %s16, 0
    %p85 = por %p83, %p84
    %s87 = sadd.s32 %s86, 1
    %p90 = scmp.eq.s32.totalorder %s10, 1
    %p91 = scmp.ne.s32.totalorder %s86, %s88
    %p92 = scmp.eq.s32.totalorder %s10, 0
    %p93 = por %p91, %p92
    %p94 = scmp.ne.s32.totalorder %s86, %s88
    %p95 = scmp.eq.s32.totalorder %s15, 1
    %p96 = por %p94, %p95
    %p97 = scmp.ne.s32.totalorder %s88, %s89
    %p98 = scmp.eq.s32.totalorder %s15, 0
    %p99 = por %p97, %p98
    %p100 = scmp.ne.s32.totalorder %s88, %s89
    %p101 = scmp.eq.s32.totalorder %s16, 1
    %p102 = por %p100, %p101
    %p104 = scmp.ne.s32.totalorder %s89, %s103
    %p105 = scmp.eq.s32.totalorder %s16, 0
    %p106 = por %p104, %p105
    %s107 = ssub.s32 %s10, %s17
    %p108 = scmp.eq.s32.totalorder %s107, 0
    %s110 = sadd.s32 %s109, 1
    %s111 = scalar_select %p108, %s109, %s110
    %p114 = pneg %p108
    %p115 = scmp.eq.s32.totalorder %s10, 1
    %p116 = por %p114, %p115
    %p117 = scmp.ne.s32.totalorder %s109, %s112
    %p118 = scmp.eq.s32.totalorder %s10, 0
    %p119 = por %p117, %p118
    %p120 = scmp.ne.s32.totalorder %s109, %s112
    %p121 = scmp.eq.s32.totalorder %s15, 1
    %p122 = por %p120, %p121
    %p123 = scmp.ne.s32.totalorder %s112, %s113
    %p124 = scmp.eq.s32.totalorder %s15, 0
    %p125 = por %p123, %p124
    %p126 = scmp.ne.s32.totalorder %s112, %s113
    %p127 = scmp.eq.s32.totalorder %s16, 1
    %p128 = por %p126, %p127
    %p130 = scmp.ne.s32.totalorder %s113, %s129
    %p131 = scmp.eq.s32.totalorder %s16, 0
    %p132 = por %p130, %p131
    %p133 = scmp.le.s32.totalorder 1, %s10
    %p134 = scmp.lt.s32.totalorder %s10, 3
    %p135 = pnand %p133, %p134
    %p136 = pneg %p135
    // Predicated region
    $region9: #{resnet_discriminator_forward.10} parent=5 // pred_check
      _
    $region10: #{resnet_discriminator_forward.10} parent=5 // pred_check_branch
      %138 = sbr.rel (%p135) target = $region12
    $region11: #{resnet_discriminator_forward.10} parent=5 // pred_region
      %s139 = ssub.s32 %s10, 1
      // Predicated region
      $region13: #{resnet_discriminator_forward.10} parent=11 // pred_check
        %p140 = pneg %p57
      $region14: #{resnet_discriminator_forward.10} parent=11 // pred_check_branch
        %142 = sbr.rel (%p140) target = $region16
      $region15: #{resnet_discriminator_forward.10} parent=11 // pred_region
        _
      $region16: #{resnet_discriminator_forward.10} parent=11 // pred_fallthru
        _
      // Predicated region
      $region17: #{resnet_discriminator_forward.10} parent=11 // pred_check
        %p143 = pneg %p78
      $region18: #{resnet_discriminator_forward.10} parent=11 // pred_check_branch
        %145 = sbr.rel (%p143) target = $region20
      $region19: #{resnet_discriminator_forward.10} parent=11 // pred_region
        _
      $region20: #{resnet_discriminator_forward.10} parent=11 // pred_fallthru
        _
      // Predicated region
      $region21: #{resnet_discriminator_forward.10} parent=11 // pred_check
        %p146 = pneg %p99
      $region22: #{resnet_discriminator_forward.10} parent=11 // pred_check_branch
        %148 = sbr.rel (%p146) target = $region24
      $region23: #{resnet_discriminator_forward.10} parent=11 // pred_region
        _
      $region24: #{resnet_discriminator_forward.10} parent=11 // pred_fallthru
        _
    $region12: #{resnet_discriminator_forward.10} parent=5 // pred_fallthru
      _
    %p149 = scmp.lt.s32.totalorder %s10, 2
    // Predicated region
    $region25: #{resnet_discriminator_forward.10} parent=5 // pred_check
      %p150 = pneg %p149
    $region26: #{resnet_discriminator_forward.10} parent=5 // pred_check_branch
      %152 = sbr.rel (%p150) target = $region28
    $region27: #{resnet_discriminator_forward.10} parent=5 // pred_region
      // Predicated region
      $region29: #{resnet_discriminator_forward.10} parent=27 // pred_check
        %p153 = pneg %p30
      $region30: #{resnet_discriminator_forward.10} parent=27 // pred_check_branch
        %155 = sbr.rel (%p153) target = $region32
      $region31: #{resnet_discriminator_forward.10} parent=27 // pred_region
        %p156 = scmp.lt.s32.totalorder %s10, 1
        %s157 = scalar_select %p156, %s10, 1
        %s158 = smul.addr %s157, 8
        %s159 = smul.addr %s158, 8
        %s160 = scalar_lea.vmem %s0, %s159
      $region32: #{resnet_discriminator_forward.10} parent=27 // pred_fallthru
        _
    $region28: #{resnet_discriminator_forward.10} parent=5 // pred_fallthru
      _
    %p161 = scmp.le.s32.totalorder 1, %s10
    %p162 = scmp.lt.s32.totalorder %s10, 3
    %p163 = pnand %p161, %p162
    %p164 = pneg %p163
    // Predicated region
    $region33: #{resnet_discriminator_forward.10} parent=5 // pred_check
      _
    $region34: #{resnet_discriminator_forward.10} parent=5 // pred_check_branch
      %166 = sbr.rel (%p163) target = $region36
    $region35: #{resnet_discriminator_forward.10} parent=5 // pred_region
      %s167 = ssub.s32 %s10, 1
      %p168 = scmp.lt.s32.totalorder %s15, 1
      %s169 = scalar_select %p168, %s15, 1
      %s170 = smul.addr %s169, 8
      %s171 = smul.addr %s170, 8
      %s172 = scalar_lea.vmem %s0, %s171
      %p173 = pneg %p36
      %p174 = pneg %p33
      %p175 = pneg %p57
      %p176 = pneg %p54
      %p177 = pneg %p78
      %p178 = pneg %p75
      %p179 = pneg %p99
      %p180 = pneg %p96
      %p181 = pneg %p125
      %p182 = pneg %p122
      %p183 = scmp.lt.s32.totalorder %s15, 1
      %s184 = scalar_select %p183, %s15, 1
      %s185 = smul.addr %s184, 8
      %s186 = scalar_lea.vmem %s4, %s185
      %p187 = scmp.lt.s32.totalorder %s15, 1
      %s188 = scalar_select %p187, %s15, 1
      %s189 = smul.addr %s188, 8
      %s190 = smul.addr %s189, 8
      %s191 = scalar_lea.vmem %s0, %s190
      %p192 = scmp.lt.s32.totalorder %s15, 1
      %s193 = scalar_select %p192, %s15, 1
      %s194 = smul.addr %s193, 8
      %s195 = scalar_lea.vmem %s4, %s194
      %v196 = vld [vmem:[%s191] sm:$0xff]
      %v197 = vld [vmem:[%s191 + $0x8] sm:$0xff]
      %v198 = vld [vmem:[%s1] sm:$0xff]
      %v199 = vld [vmem:[%s1 + $0x8] sm:$0xff]
      %v200 = vld [vmem:[%s1 + $0x10] sm:$0xff]
      %v201 = vld [vmem:[%s1 + $0x18] sm:$0xff]
      %v202 = vld [vmem:[%s1 + $0x20] sm:$0xff]
      %v203 = vld [vmem:[%s1 + $0x28] sm:$0xff]
      %v204 = vld [vmem:[%s1 + $0x30] sm:$0xff]
      %v205 = vld [vmem:[%s1 + $0x38] sm:$0xff]
      %v206 = vld [vmem:[%s1 + $0x40] sm:$0xff]
      %v207 = vld [vmem:[%s1 + $0x48] sm:$0xff]
      %v208 = vld [vmem:[%s1 + $0x50] sm:$0xff]
      %v209 = vld [vmem:[%s1 + $0x58] sm:$0xff]
      %v210 = vld [vmem:[%s1 + $0x60] sm:$0xff]
      %v211 = vld [vmem:[%s1 + $0x68] sm:$0xff]
      %v212 = vld [vmem:[%s1 + $0x70] sm:$0xff]
      %v213 = vld [vmem:[%s1 + $0x78] sm:$0xff]
      %v214 = vld [vmem:[%s1 + $0x80] sm:$0xff]
      %v215 = vld [vmem:[%s1 + $0x88] sm:$0xff]
      %s216 = scalar_lea.vmem %s191, 32
      %v217 = vld [vmem:[%s216] sm:$0xff]
      %v218 = vld [vmem:[%s216 + $0x8] sm:$0xff]
      %s219 = scalar_lea.vmem %s1, 144
      %v220 = vld [vmem:[%s219] sm:$0xff]
      %v221 = vld [vmem:[%s219 + $0x8] sm:$0xff]
      %v222 = vld [vmem:[%s219 + $0x10] sm:$0xff]
      %v223 = vld [vmem:[%s219 + $0x18] sm:$0xff]
      %v224 = vld [vmem:[%s219 + $0x20] sm:$0xff]
      %v225 = vld [vmem:[%s219 + $0x28] sm:$0xff]
      %v226 = vld [vmem:[%s219 + $0x30] sm:$0xff]
      %v227 = vld [vmem:[%s219 + $0x38] sm:$0xff]
      %v228 = vld [vmem:[%s219 + $0x40] sm:$0xff]
      %v229 = vld [vmem:[%s219 + $0x48] sm:$0xff]
      %v230 = vld [vmem:[%s219 + $0x50] sm:$0xff]
      %v231 = vld [vmem:[%s219 + $0x58] sm:$0xff]
      %v232 = vld [vmem:[%s219 + $0x60] sm:$0xff]
      %v233 = vld [vmem:[%s219 + $0x68] sm:$0xff]
      %v234 = vld [vmem:[%s219 + $0x70] sm:$0xff]
      %v235 = vld [vmem:[%s219 + $0x78] sm:$0xff]
      %v236 = vld [vmem:[%s219 + $0x80] sm:$0xff]
      %v237 = vld [vmem:[%s219 + $0x88] sm:$0xff]
      %vm238 = vcmask 130048
      %v240 = vsel %vm238, %v218, 0
      %242 = vmatprep.subr.mxu0 0.0
      %243 = vmatpush1.msra.mxu0 %v235
      %244 = vmatprep.subr.mxu0 0.0
      %245 = vmatpush1.msra.mxu0 %v234
      %246 = vmatprep.subr.mxu0 0.0
      %247 = vmatpush1.msra.mxu0 %v233
      %248 = vmatprep.subr.mxu0 0.0
      %249 = vmatpush1.msra.mxu0 %v232
      %250 = vmatprep.subr.mxu0 0.0
      %251 = vmatpush1.msra.mxu0 %v231
      %252 = vmatprep.subr.mxu0 0.0
      %253 = vmatpush1.msra.mxu0 %v230
      %254 = vmatprep.subr.mxu0 0.0
      %255 = vmatpush1.msra.mxu0 %v229
      %256 = vmatprep.subr.mxu0 0.0
      %257 = vmatpush1.msra.mxu0 %v228
      %258 = vmatprep.subr.mxu0 0.0
      %259 = vmatpush1.msra.mxu0 %v227
      %260 = vmatprep.subr.mxu0 0.0
      %261 = vmatpush1.msra.mxu0 %v226
      %262 = vmatprep.subr.mxu0 0.0
      %263 = vmatpush1.msra.mxu0 %v225
      %264 = vmatprep.subr.mxu0 0.0
      %265 = vmatpush1.msra.mxu0 %v224
      %266 = vmatprep.subr.mxu0 0.0
      %267 = vmatpush1.msra.mxu0 %v223
      %268 = vmatprep.subr.mxu0 0.0
      %269 = vmatpush1.msra.mxu0 %v222
      %270 = vmatprep.subr.mxu0 0.0
      %271 = vmatpush1.msra.mxu0 %v221
      %272 = vmatprep.subr.mxu0 0.0
      %273 = vmatpush1.msra.mxu0 %v220
      %274 = vmatprep.subr.mxu0 0.0
      %275 = vmatpush2.msra.mxu0 0.0
      %276 = vmatprep.subr.mxu0 0.0
      %277 = vmatpush2.msra.mxu0 0.0
      %278 = vmatprep.subr.mxu0 0.0
      %279 = vmatpush2.msra.mxu0 0.0
      %280 = vmatprep.subr.mxu0 0.0
      %281 = vmatpush2.msra.mxu0 0.0
      %282 = vmatprep.subr.mxu0 0.0
      %283 = vmatpush2.msra.mxu0 0.0
      %284 = vmatprep.subr.mxu0 0.0
      %285 = vmatpush2.msra.mxu0 0.0
      %286 = vmatprep.subr.mxu0 0.0
      %287 = vmatpush2.msra.mxu0 0.0
      %288 = vmatprep.subr.mxu0 0.0
      %289 = vmatpush2.msra.mxu0 0.0
      %290 = vmatprep.subr.mxu0 0.0
      %291 = vmatpush2.msra.mxu0 0.0
      %292 = vmatprep.subr.mxu0 0.0
      %293 = vmatpush2.msra.mxu0 0.0
      %294 = vmatprep.subr.mxu0 0.0
      %295 = vmatpush2.msra.mxu0 0.0
      %296 = vmatprep.subr.mxu0 0.0
      %297 = vmatpush2.msra.mxu0 0.0
      %298 = vmatprep.subr.mxu0 0.0
      %299 = vmatpush2.msra.mxu0 0.0
      %300 = vmatprep.subr.mxu0 0.0
      %301 = vmatpush2.msra.mxu0 0.0
      %302 = vmatprep.subr.mxu0 0.0
      %303 = vmatpush2.msra.mxu0 %v237
      %304 = vmatprep.subr.mxu0 0.0
      %305 = vmatpush2.msra.mxu0 %v236
      %306 = vmatprep.mubr.f32.mxu0 %v240
      %307 = vmatmul.mubr.f32.gmra.mxu0 %v217
      %v308 = vpop.f32.mrf.mxu0
      %v309 = vadd.f32 0.0, %v308
      %v310 = vpop.f32.mrf.mxu0
      %311 = vdwg.mxu0
      %v313 = vsel %vm238, %v197, 0
      %315 = vmatprep.subr.mxu0 0.0
      %316 = vmatpush1.msra.mxu0 %v213
      %317 = vmatprep.subr.mxu0 0.0
      %318 = vmatpush1.msra.mxu0 %v212
      %319 = vmatprep.subr.mxu0 0.0
      %320 = vmatpush1.msra.mxu0 %v211
      %321 = vmatprep.subr.mxu0 0.0
      %322 = vmatpush1.msra.mxu0 %v210
      %323 = vmatprep.subr.mxu0 0.0
      %324 = vmatpush1.msra.mxu0 %v209
      %325 = vmatprep.subr.mxu0 0.0
      %326 = vmatpush1.msra.mxu0 %v208
      %327 = vmatprep.subr.mxu0 0.0
      %328 = vmatpush1.msra.mxu0 %v207
      %329 = vmatprep.subr.mxu0 0.0
      %330 = vmatpush1.msra.mxu0 %v206
      %331 = vmatprep.subr.mxu0 0.0
      %332 = vmatpush1.msra.mxu0 %v205
      %333 = vmatprep.subr.mxu0 0.0
      %334 = vmatpush1.msra.mxu0 %v204
      %335 = vmatprep.subr.mxu0 0.0
      %336 = vmatpush1.msra.mxu0 %v203
      %337 = vmatprep.subr.mxu0 0.0
      %338 = vmatpush1.msra.mxu0 %v202
      %339 = vmatprep.subr.mxu0 0.0
      %340 = vmatpush1.msra.mxu0 %v201
      %341 = vmatprep.subr.mxu0 0.0
      %342 = vmatpush1.msra.mxu0 %v200
      %343 = vmatprep.subr.mxu0 0.0
      %344 = vmatpush1.msra.mxu0 %v199
      %345 = vmatprep.subr.mxu0 0.0
      %346 = vmatpush1.msra.mxu0 %v198
      %347 = vmatprep.subr.mxu0 0.0
      %348 = vmatpush2.msra.mxu0 0.0
      %349 = vmatprep.subr.mxu0 0.0
      %350 = vmatpush2.msra.mxu0 0.0
      %351 = vmatprep.subr.mxu0 0.0
      %352 = vmatpush2.msra.mxu0 0.0
      %353 = vmatprep.subr.mxu0 0.0
      %354 = vmatpush2.msra.mxu0 0.0
      %355 = vmatprep.subr.mxu0 0.0
      %356 = vmatpush2.msra.mxu0 0.0
      %357 = vmatprep.subr.mxu0 0.0
      %358 = vmatpush2.msra.mxu0 0.0
      %359 = vmatprep.subr.mxu0 0.0
      %360 = vmatpush2.msra.mxu0 0.0
      %361 = vmatprep.subr.mxu0 0.0
      %362 = vmatpush2.msra.mxu0 0.0
      %363 = vmatprep.subr.mxu0 0.0
      %364 = vmatpush2.msra.mxu0 0.0
      %365 = vmatprep.subr.mxu0 0.0
      %366 = vmatpush2.msra.mxu0 0.0
      %367 = vmatprep.subr.mxu0 0.0
      %368 = vmatpush2.msra.mxu0 0.0
      %369 = vmatprep.subr.mxu0 0.0
      %370 = vmatpush2.msra.mxu0 0.0
      %371 = vmatprep.subr.mxu0 0.0
      %372 = vmatpush2.msra.mxu0 0.0
      %373 = vmatprep.subr.mxu0 0.0
      %374 = vmatpush2.msra.mxu0 0.0
      %375 = vmatprep.subr.mxu0 0.0
      %376 = vmatpush2.msra.mxu0 %v215
      %377 = vmatprep.subr.mxu0 0.0
      %378 = vmatpush2.msra.mxu0 %v214
      %379 = vmatprep.mubr.f32.mxu0 %v313
      %380 = vmatmul.mubr.f32.gmra.mxu0 %v196
      %v381 = vpop.f32.mrf.mxu0
      %v382 = vadd.f32 %v309, %v381
      %v383 = vpop.f32.mrf.mxu0
      %384 = vdwg.mxu0
      %v385 = vld [vmem:[%s191] sm:$0xfe]
      %v386 = vld [vmem:[%s191 + $0x8] sm:$0xfe]
      %v387 = vld [vmem:[%s191 + $0x10] sm:$0x1]
      %v388 = vld [vmem:[%s191 + $0x18] sm:$0x1]
      %s389 = scalar_lea.vmem %s1, 288
      %v390 = vld [vmem:[%s389] sm:$0xff]
      %v391 = vld [vmem:[%s389 + $0x8] sm:$0xff]
      %v392 = vld [vmem:[%s389 + $0x10] sm:$0xff]
      %v393 = vld [vmem:[%s389 + $0x18] sm:$0xff]
      %v394 = vld [vmem:[%s389 + $0x20] sm:$0xff]
      %v395 = vld [vmem:[%s389 + $0x28] sm:$0xff]
      %v396 = vld [vmem:[%s389 + $0x30] sm:$0xff]
      %v397 = vld [vmem:[%s389 + $0x38] sm:$0xff]
      %v398 = vld [vmem:[%s389 + $0x40] sm:$0xff]
      %v399 = vld [vmem:[%s389 + $0x48] sm:$0xff]
      %v400 = vld [vmem:[%s389 + $0x50] sm:$0xff]
      %v401 = vld [vmem:[%s389 + $0x58] sm:$0xff]
      %v402 = vld [vmem:[%s389 + $0x60] sm:$0xff]
      %v403 = vld [vmem:[%s389 + $0x68] sm:$0xff]
      %v404 = vld [vmem:[%s389 + $0x70] sm:$0xff]
      %v405 = vld [vmem:[%s389 + $0x78] sm:$0xff]
      %v406 = vld [vmem:[%s389 + $0x80] sm:$0xff]
      %v407 = vld [vmem:[%s389 + $0x88] sm:$0xff]
      %vm412 = vcmask 1046528
      %v413 = vrot.slane %v385, 1
      %v414 = vrot.slane %v387, 1
      %v415 = vsel %vm412, %v413, %v414
      %v416 = vrot.slane %v386, 1
      %v417 = vrot.slane %v388, 1
      %v418 = vsel %vm412, %v416, %v417
      %v420 = vsel %vm238, %v418, 0
      %422 = vmatprep.subr.mxu0 0.0
      %423 = vmatpush1.msra.mxu0 %v405
      %424 = vmatprep.subr.mxu0 0.0
      %425 = vmatpush1.msra.mxu0 %v404
      %426 = vmatprep.subr.mxu0 0.0
      %427 = vmatpush1.msra.mxu0 %v403
      %428 = vmatprep.subr.mxu0 0.0
      %429 = vmatpush1.msra.mxu0 %v402
      %430 = vmatprep.subr.mxu0 0.0
      %431 = vmatpush1.msra.mxu0 %v401
      %432 = vmatprep.subr.mxu0 0.0
      %433 = vmatpush1.msra.mxu0 %v400
      %434 = vmatprep.subr.mxu0 0.0
      %435 = vmatpush1.msra.mxu0 %v399
      %436 = vmatprep.subr.mxu0 0.0
      %437 = vmatpush1.msra.mxu0 %v398
      %438 = vmatprep.subr.mxu0 0.0
      %439 = vmatpush1.msra.mxu0 %v397
      %440 = vmatprep.subr.mxu0 0.0
      %441 = vmatpush1.msra.mxu0 %v396
      %442 = vmatprep.subr.mxu0 0.0
      %443 = vmatpush1.msra.mxu0 %v395
      %444 = vmatprep.subr.mxu0 0.0
      %445 = vmatpush1.msra.mxu0 %v394
      %446 = vmatprep.subr.mxu0 0.0
      %447 = vmatpush1.msra.mxu0 %v393
      %448 = vmatprep.subr.mxu0 0.0
      %449 = vmatpush1.msra.mxu0 %v392
      %450 = vmatprep.subr.mxu0 0.0
      %451 = vmatpush1.msra.mxu0 %v391
      %452 = vmatprep.subr.mxu0 0.0
      %453 = vmatpush1.msra.mxu0 %v390
      %454 = vmatprep.subr.mxu0 0.0
      %455 = vmatpush2.msra.mxu0 0.0
      %456 = vmatprep.subr.mxu0 0.0
      %457 = vmatpush2.msra.mxu0 0.0
      %458 = vmatprep.subr.mxu0 0.0
      %459 = vmatpush2.msra.mxu0 0.0
      %460 = vmatprep.subr.mxu0 0.0
      %461 = vmatpush2.msra.mxu0 0.0
      %462 = vmatprep.subr.mxu0 0.0
      %463 = vmatpush2.msra.mxu0 0.0
      %464 = vmatprep.subr.mxu0 0.0
      %465 = vmatpush2.msra.mxu0 0.0
      %466 = vmatprep.subr.mxu0 0.0
      %467 = vmatpush2.msra.mxu0 0.0
      %468 = vmatprep.subr.mxu0 0.0
      %469 = vmatpush2.msra.mxu0 0.0
      %470 = vmatprep.subr.mxu0 0.0
      %471 = vmatpush2.msra.mxu0 0.0
      %472 = vmatprep.subr.mxu0 0.0
      %473 = vmatpush2.msra.mxu0 0.0
      %474 = vmatprep.subr.mxu0 0.0
      %475 = vmatpush2.msra.mxu0 0.0
      %476 = vmatprep.subr.mxu0 0.0
      %477 = vmatpush2.msra.mxu0 0.0
      %478 = vmatprep.subr.mxu0 0.0
      %479 = vmatpush2.msra.mxu0 0.0
      %480 = vmatprep.subr.mxu0 0.0
      %481 = vmatpush2.msra.mxu0 0.0
      %482 = vmatprep.subr.mxu0 0.0
      %483 = vmatpush2.msra.mxu0 %v407
      %484 = vmatprep.subr.mxu0 0.0
      %485 = vmatpush2.msra.mxu0 %v406
      %486 = vmatprep.mubr.f32.mxu0 %v420
      %487 = vmatmul.mubr.f32.gmra.mxu0 %v415
      %v488 = vpop.f32.mrf.mxu0
      %v489 = vadd.f32 0.0, %v488
      %v490 = vpop.f32.mrf.mxu0
      %491 = vdwg.mxu0
      %v492 = vadd.f32 %v382, %v489
      %v493 = vld [vmem:[%s2] sm:$0x1]
      %v495 = vlaneseq
      %v496 = vshrl.u32 %v495, 7
      %v497 = vsub.s32 0, %v496
      %v498 = vrot.slane %v493, %v497
      %v500 = vadd.f32 %v492, %v498
      %v501 = vld [vmem:[%s3] sm:$0xff]
      %v502 = vld [vmem:[%s3 + $0x8] sm:$0xff]
      %v503 = vld [vmem:[%s3 + $0x10] sm:$0xff]
      %v504 = vld [vmem:[%s3 + $0x18] sm:$0xff]
      %v505 = vld [vmem:[%s3 + $0x20] sm:$0xff]
      %v506 = vld [vmem:[%s3 + $0x28] sm:$0xff]
      %v507 = vld [vmem:[%s3 + $0x30] sm:$0xff]
      %v508 = vld [vmem:[%s3 + $0x38] sm:$0xff]
      %v509 = vld [vmem:[%s3 + $0x40] sm:$0xff]
      %v510 = vld [vmem:[%s3 + $0x48] sm:$0xff]
      %v511 = vld [vmem:[%s3 + $0x50] sm:$0xff]
      %v512 = vld [vmem:[%s3 + $0x58] sm:$0xff]
      %v513 = vld [vmem:[%s3 + $0x60] sm:$0xff]
      %v514 = vld [vmem:[%s3 + $0x68] sm:$0xff]
      %v515 = vld [vmem:[%s3 + $0x70] sm:$0xff]
      %v516 = vld [vmem:[%s3 + $0x78] sm:$0xff]
      %517 = vmatprep.subr.mxu0 0.0
      %518 = vmatpush1.msra.mxu0 %v516
      %519 = vmatprep.subr.mxu0 0.0
      %520 = vmatpush1.msra.mxu0 %v515
      %521 = vmatprep.subr.mxu0 0.0
      %522 = vmatpush1.msra.mxu0 %v514
      %523 = vmatprep.subr.mxu0 0.0
      %524 = vmatpush1.msra.mxu0 %v513
      %525 = vmatprep.subr.mxu0 0.0
      %526 = vmatpush1.msra.mxu0 %v512
      %527 = vmatprep.subr.mxu0 0.0
      %528 = vmatpush1.msra.mxu0 %v511
      %529 = vmatprep.subr.mxu0 0.0
      %530 = vmatpush1.msra.mxu0 %v510
      %531 = vmatprep.subr.mxu0 0.0
      %532 = vmatpush1.msra.mxu0 %v509
      %533 = vmatprep.subr.mxu0 0.0
      %534 = vmatpush1.msra.mxu0 %v508
      %535 = vmatprep.subr.mxu0 0.0
      %536 = vmatpush1.msra.mxu0 %v507
      %537 = vmatprep.subr.mxu0 0.0
      %538 = vmatpush1.msra.mxu0 %v506
      %539 = vmatprep.subr.mxu0 0.0
      %540 = vmatpush1.msra.mxu0 %v505
      %541 = vmatprep.subr.mxu0 0.0
      %542 = vmatpush1.msra.mxu0 %v504
      %543 = vmatprep.subr.mxu0 0.0
      %544 = vmatpush1.msra.mxu0 %v503
      %545 = vmatprep.subr.mxu0 0.0
      %546 = vmatpush1.msra.mxu0 %v502
      %547 = vmatprep.subr.mxu0 0.0
      %548 = vmatpush1.msra.mxu0 %v501
      %549 = vmatprep.subr.mxu0 0.0
      %550 = vmatpush2.msra.mxu0 0.0
      %551 = vmatprep.subr.mxu0 0.0
      %552 = vmatpush2.msra.mxu0 0.0
      %553 = vmatprep.subr.mxu0 0.0
      %554 = vmatpush2.msra.mxu0 0.0
      %555 = vmatprep.subr.mxu0 0.0
      %556 = vmatpush2.msra.mxu0 0.0
      %557 = vmatprep.subr.mxu0 0.0
      %558 = vmatpush2.msra.mxu0 0.0
      %559 = vmatprep.subr.mxu0 0.0
      %560 = vmatpush2.msra.mxu0 0.0
      %561 = vmatprep.subr.mxu0 0.0
      %562 = vmatpush2.msra.mxu0 0.0
      %563 = vmatprep.subr.mxu0 0.0
      %564 = vmatpush2.msra.mxu0 0.0
      %565 = vmatprep.subr.mxu0 0.0
      %566 = vmatpush2.msra.mxu0 0.0
      %567 = vmatprep.subr.mxu0 0.0
      %568 = vmatpush2.msra.mxu0 0.0
      %569 = vmatprep.subr.mxu0 0.0
      %570 = vmatpush2.msra.mxu0 0.0
      %571 = vmatprep.subr.mxu0 0.0
      %572 = vmatpush2.msra.mxu0 0.0
      %573 = vmatprep.subr.mxu0 0.0
      %574 = vmatpush2.msra.mxu0 0.0
      %575 = vmatprep.subr.mxu0 0.0
      %576 = vmatpush2.msra.mxu0 0.0
      %577 = vmatprep.subr.mxu0 0.0
      %578 = vmatpush2.msra.mxu0 0.0
      %579 = vmatprep.subr.mxu0 0.0
      %580 = vmatpush2.msra.mxu0 0.0
      %581 = vmatprep.mubr.f32.mxu0 0.0
      %582 = vmatmul.mubr.f32.gmra.mxu0 %v500
      %v583 = vpop.f32.mrf.mxu0
      %v584 = vadd.f32 0.0, %v583
      %v585 = vpop.f32.mrf.mxu0
      %586 = vdwg.mxu0
      %v587 = vmul.f32 %v500, %v500
      %588 = vmatprep.subr.mxu0 0.0
      %589 = vmatpush1.msra.mxu0 %v516
      %590 = vmatprep.subr.mxu0 0.0
      %591 = vmatpush1.msra.mxu0 %v515
      %592 = vmatprep.subr.mxu0 0.0
      %593 = vmatpush1.msra.mxu0 %v514
      %594 = vmatprep.subr.mxu0 0.0
      %595 = vmatpush1.msra.mxu0 %v513
      %596 = vmatprep.subr.mxu0 0.0
      %597 = vmatpush1.msra.mxu0 %v512
      %598 = vmatprep.subr.mxu0 0.0
      %599 = vmatpush1.msra.mxu0 %v511
      %600 = vmatprep.subr.mxu0 0.0
      %601 = vmatpush1.msra.mxu0 %v510
      %602 = vmatprep.subr.mxu0 0.0
      %603 = vmatpush1.msra.mxu0 %v509
      %604 = vmatprep.subr.mxu0 0.0
      %605 = vmatpush1.msra.mxu0 %v508
      %606 = vmatprep.subr.mxu0 0.0
      %607 = vmatpush1.msra.mxu0 %v507
      %608 = vmatprep.subr.mxu0 0.0
      %609 = vmatpush1.msra.mxu0 %v506
      %610 = vmatprep.subr.mxu0 0.0
      %611 = vmatpush1.msra.mxu0 %v505
      %612 = vmatprep.subr.mxu0 0.0
      %613 = vmatpush1.msra.mxu0 %v504
      %614 = vmatprep.subr.mxu0 0.0
      %615 = vmatpush1.msra.mxu0 %v503
      %616 = vmatprep.subr.mxu0 0.0
      %617 = vmatpush1.msra.mxu0 %v502
      %618 = vmatprep.subr.mxu0 0.0
      %619 = vmatpush1.msra.mxu0 %v501
      %620 = vmatprep.subr.mxu0 0.0
      %621 = vmatpush2.msra.mxu0 0.0
      %622 = vmatprep.subr.mxu0 0.0
      %623 = vmatpush2.msra.mxu0 0.0
      %624 = vmatprep.subr.mxu0 0.0
      %625 = vmatpush2.msra.mxu0 0.0
      %626 = vmatprep.subr.mxu0 0.0
      %627 = vmatpush2.msra.mxu0 0.0
      %628 = vmatprep.subr.mxu0 0.0
      %629 = vmatpush2.msra.mxu0 0.0
      %630 = vmatprep.subr.mxu0 0.0
      %631 = vmatpush2.msra.mxu0 0.0
      %632 = vmatprep.subr.mxu0 0.0
      %633 = vmatpush2.msra.mxu0 0.0
      %634 = vmatprep.subr.mxu0 0.0
      %635 = vmatpush2.msra.mxu0 0.0
      %636 = vmatprep.subr.mxu0 0.0
      %637 = vmatpush2.msra.mxu0 0.0
      %638 = vmatprep.subr.mxu0 0.0
      %639 = vmatpush2.msra.mxu0 0.0
      %640 = vmatprep.subr.mxu0 0.0
      %641 = vmatpush2.msra.mxu0 0.0
      %642 = vmatprep.subr.mxu0 0.0
      %643 = vmatpush2.msra.mxu0 0.0
      %644 = vmatprep.subr.mxu0 0.0
      %645 = vmatpush2.msra.mxu0 0.0
      %646 = vmatprep.subr.mxu0 0.0
      %647 = vmatpush2.msra.mxu0 0.0
      %648 = vmatprep.subr.mxu0 0.0
      %649 = vmatpush2.msra.mxu0 0.0
      %650 = vmatprep.subr.mxu0 0.0
      %651 = vmatpush2.msra.mxu0 0.0
      %652 = vmatprep.mubr.f32.mxu0 0.0
      %653 = vmatmul.mubr.f32.gmra.mxu0 %v587
      %v654 = vpop.f32.mrf.mxu0
      %v655 = vadd.f32 0.0, %v654
      %v656 = vpop.f32.mrf.mxu0
      %657 = vdwg.mxu0
      %v658 = vrot.slane %v584, 4
      %v659 = vadd.f32 %v584, %v658
      %v660 = vrot.slane %v659, 2
      %v661 = vadd.f32 %v659, %v660
      %v662 = vrot.slane %v661, 1
      %v663 = vadd.f32 %v661, %v662
      %v664 = vrot.slane %v655, 4
      %v665 = vadd.f32 %v655, %v664
      %v666 = vrot.slane %v665, 2
      %v667 = vadd.f32 %v665, %v666
      %v668 = vrot.slane %v667, 1
      %v669 = vadd.f32 %v667, %v668
      %v670 = vmul.f32 %v663, %v663
      %v671 = vsub.f32 %v669, %v670
      %v672 = vsub.f32 %v500, %v663
      %v673 = vadd.f32 %v671, 1e-05
      %v674 = vrsqrt.pop %v673
      %v675 = vmul.f32 %v672, %v674
      %v676 = vmax.f32 %v675, 0.0
      %677 = vst [vmem:[%s195] sm:$0xff] %v676
      %p678 = scmp.lt.s32.totalorder %s15, 1
      %s679 = scalar_select %p678, %s15, 1
      %s680 = smul.addr %s679, 8
      %s681 = scalar_lea.vmem %s4, %s680
      // Predicated region
      $region37: #{resnet_discriminator_forward.10} parent=35 // pred_check
        %p682 = pneg %p122
      $region38: #{resnet_discriminator_forward.10} parent=35 // pred_check_branch
        %684 = sbr.rel (%p682) target = $region40
      $region39: #{resnet_discriminator_forward.10} parent=35 // pred_region
        _
      $region40: #{resnet_discriminator_forward.10} parent=35 // pred_fallthru
        _
    $region36: #{resnet_discriminator_forward.10} parent=5 // pred_fallthru
      _
    %p685 = scmp.le.s32.totalorder 2, %s10
    // Predicated region
    $region41: #{resnet_discriminator_forward.10} parent=5 // pred_check
      %p686 = pneg %p685
    $region42: #{resnet_discriminator_forward.10} parent=5 // pred_check_branch
      %688 = sbr.rel (%p686) target = $region44
    $region43: #{resnet_discriminator_forward.10} parent=5 // pred_region
      %s689 = ssub.s32 %s10, 2
      // Predicated region
      $region45: #{resnet_discriminator_forward.10} parent=43 // pred_check
        %p690 = pneg %p128
      $region46: #{resnet_discriminator_forward.10} parent=43 // pred_check_branch
        %692 = sbr.rel (%p690) target = $region48
      $region47: #{resnet_discriminator_forward.10} parent=43 // pred_region
        %p693 = scmp.lt.s32.totalorder %s16, 1
        %s694 = scalar_select %p693, %s16, 1
        %s695 = smul.addr %s694, 8
        %s696 = scalar_lea.vmem %s4, %s695
      $region48: #{resnet_discriminator_forward.10} parent=43 // pred_fallthru
        _
    $region44: #{resnet_discriminator_forward.10} parent=5 // pred_fallthru
      _
  $region6: #{resnet_discriminator_forward.10} parent=0 // loop_footer
    %s14 = sadd.s32 1, %s10
  $region7: #{resnet_discriminator_forward.10} parent=0 // loop_footer_branch
    %9 = sbr.rel target = $region3
  $region8: #{resnet_discriminator_forward.10} parent=0 // loop_exit
    _

// kernel: tile.113
$region0: #{tile.113}
  #allocation0 [shape = 's32[1]{0}', space=sflag, size = 0x4, scoped, tag = 'scoped memory for tile.113']
  %s0 = inlined_call_operand.vmem [shape: f32[32], index: 0, kind: input, shape index: {}]
  %s1 = inlined_call_operand.vmem [shape: f32[4,32], index: 1, kind: output, shape index: {}]
  // Predicated region
  $region2: #{tile.113} parent=0 // pred_check
    _
  $region3: #{tile.113} parent=0 // pred_check_branch
    %3 = sbr.rel (0) target = $region5
  $region4: #{tile.113} parent=0 // pred_region
    _
  $region5: #{tile.113} parent=0 // pred_fallthru
    _
  %v4 = vld [vmem:[%s0] ss:$0 sm:$0xff]
  %5 = vst [vmem:[%s1] sm:$0xf] %v4

// kernel: tile.114
$region0: #{tile.114}
  %s0 = inlined_call_operand.vmem [shape: f32[4,32], index: 0, kind: input, shape index: {}]
  %s1 = inlined_call_operand.vmem [shape: f32[1,128], index: 1, kind: output, shape index: {}]
  $region1: #{tile.114} parent=0
    #allocation0 [shape = 'u8[4096]{0}', space=vmem, size = 0x1000, scoped, tag = 'scoped mem for output reshape']
    #allocation1 [shape = 'u8[4096]{0}', space=vmem, size = 0x1000, scoped, tag = 'scoped mem for input reshape']
    %s3 = sshll.u32 1, 4
    %s4 = ssub.s32 %s3, 1
    %v5 = vld [vmem:[%s0] sm:%s4]
    %6 = vst [vmem:[#allocation1] sm:%s4] %v5
    %v7 = vld [vmem:[#allocation1] sm:$0x1]
    %vm8 = vcmask 261120
    %9 = vst.msk [vmem:[#allocation0] sm:$0x1] %vm8, %v7
    %s10 = scalar_lea.vmem [#allocation1], 3
    %v11 = vld [vmem:[%s10] sm:$0x1]
    %12 = vrot.lane.b32.xlu0 %v11, 96
    %v13 = vpop.permute.xlu0 %12
    %vm14 = vcmask 1048320
    %15 = vst.msk [vmem:[#allocation0] sm:$0x1] %vm14, %v13
    %s16 = scalar_lea.vmem [#allocation1], 2
    %v17 = vld [vmem:[%s16] sm:$0x1]
    %18 = vrot.lane.b32.xlu0 %v17, 64
    %v19 = vpop.permute.xlu0 %18
    %vm20 = vcmask 785920
    %21 = vst.msk [vmem:[#allocation0] sm:$0x1] %vm20, %v19
    %s22 = scalar_lea.vmem [#allocation1], 1
    %v23 = vld [vmem:[%s22] sm:$0x1]
    %24 = vrot.lane.b32.xlu0 %v23, 32
    %v25 = vpop.permute.xlu0 %24
    %vm26 = vcmask 523520
    %27 = vst.msk [vmem:[#allocation0] sm:$0x1] %vm26, %v25
    %s29 = sshll.u32 1, 1
    %s30 = ssub.s32 %s29, 1
    %v32 = vld [vmem:[#allocation0] sm:%s30]
    %s33 = sshll.u32 1, 1
    %s34 = ssub.s32 %s33, 1
    %35 = vst [vmem:[%s1] sm:%s34] %v32

// kernel: resnet_discriminator_forward.11
$region0: #{resnet_discriminator_forward.11}
  #allocation0 [shape = 'u32[]', space=smem, size = 0x4, offset = 0x4, fixed_abs, tag = 'smem constant byte address 0x4 - core index']
  #allocation1 [shape = 'u32[144,128]{1,0:T(1,128)}', space=vmem, size = 0x12000, scoped, tag = 'internal scratch']
  %s0 = inlined_call_operand.vmem [shape: f32[2,2,5,160], index: 0, kind: input, shape index: {}]
  %s1 = inlined_call_operand.vmem [shape: f32[3,160,128], index: 1, kind: input, shape index: {}]
  %s2 = inlined_call_operand.vmem [shape: f32[1,128], index: 2, kind: input, shape index: {}]
  %s3 = inlined_call_operand.vmem [shape: f32[128,128], index: 3, kind: input, shape index: {}]
  %s4 = inlined_call_operand.vmem [shape: f32[2,4,128], index: 4, kind: output, shape index: {}]
  %s5 = sld [smem:[#allocation0]]
  $region49: #{resnet_discriminator_forward.11} parent=0
    _
  %s7 = ssub.s32 1, %s5
  %s8 = scalar_select 0, %s7, %s5
  loop: start=0, step=1, limit=4
  $region2: #{resnet_discriminator_forward.11} parent=0 // loop_pre_header
    _
  $region3: #{resnet_discriminator_forward.11} parent=0 // loop_header
    %s10 = sphi 0, %s14
    %p11 = scmp.ge.s32.totalorder %s10, 4
    %s20 = sphi 0, %s22
    %s23 = sphi 0, %s20
    %s24 = sphi 0, %s23
    %s40 = sphi 0, %s24
    %s44 = sphi 0, %s44
    %s46 = sphi 0, %s44
    %s47 = sphi 0, %s46
    %s61 = sphi 0, %s47
    %s65 = sphi 0, %s65
    %s67 = sphi 0, %s65
    %s68 = sphi 0, %s67
    %s82 = sphi 0, %s68
    %s86 = sphi 0, %s86
    %s88 = sphi 0, %s86
    %s89 = sphi 0, %s88
    %s103 = sphi 0, %s89
    %s109 = sphi 0, %s111
    %s112 = sphi 0, %s109
    %s113 = sphi 0, %s112
    %s129 = sphi 0, %s113
  $region4: #{resnet_discriminator_forward.11} parent=0 // loop_header_branch
    %13 = sbr.rel (%p11) target = $region8
  $region5: #{resnet_discriminator_forward.11} parent=0 // loop_body
    %s15 = ssub.s32 %s10, 1
    %s16 = ssub.s32 %s10, 2
    %s17 = sadd.s32 %s10, 1
    %s18 = ssub.s32 %s10, %s17
    %p19 = scmp.eq.s32.totalorder %s18, 0
    %s21 = sadd.s32 %s20, 1
    %s22 = scalar_select %p19, %s20, %s21
    %p25 = pneg %p19
    %p26 = scmp.eq.s32.totalorder %s10, 1
    %p27 = por %p25, %p26
    %p28 = scmp.ne.s32.totalorder %s20, %s23
    %p29 = scmp.eq.s32.totalorder %s10, 0
    %p30 = por %p28, %p29
    %p31 = scmp.ne.s32.totalorder %s20, %s23
    %p32 = scmp.eq.s32.totalorder %s15, 1
    %p33 = por %p31, %p32
    %p34 = scmp.ne.s32.totalorder %s23, %s24
    %p35 = scmp.eq.s32.totalorder %s15, 0
    %p36 = por %p34, %p35
    %p37 = scmp.ne.s32.totalorder %s23, %s24
    %p38 = scmp.eq.s32.totalorder %s16, 1
    %p39 = por %p37, %p38
    %p41 = scmp.ne.s32.totalorder %s24, %s40
    %p42 = scmp.eq.s32.totalorder %s16, 0
    %p43 = por %p41, %p42
    %s45 = sadd.s32 %s44, 1
    %p48 = scmp.eq.s32.totalorder %s10, 1
    %p49 = scmp.ne.s32.totalorder %s44, %s46
    %p50 = scmp.eq.s32.totalorder %s10, 0
    %p51 = por %p49, %p50
    %p52 = scmp.ne.s32.totalorder %s44, %s46
    %p53 = scmp.eq.s32.totalorder %s15, 1
    %p54 = por %p52, %p53
    %p55 = scmp.ne.s32.totalorder %s46, %s47
    %p56 = scmp.eq.s32.totalorder %s15, 0
    %p57 = por %p55, %p56
    %p58 = scmp.ne.s32.totalorder %s46, %s47
    %p59 = scmp.eq.s32.totalorder %s16, 1
    %p60 = por %p58, %p59
    %p62 = scmp.ne.s32.totalorder %s47, %s61
    %p63 = scmp.eq.s32.totalorder %s16, 0
    %p64 = por %p62, %p63
    %s66 = sadd.s32 %s65, 1
    %p69 = scmp.eq.s32.totalorder %s10, 1
    %p70 = scmp.ne.s32.totalorder %s65, %s67
    %p71 = scmp.eq.s32.totalorder %s10, 0
    %p72 = por %p70, %p71
    %p73 = scmp.ne.s32.totalorder %s65, %s67
    %p74 = scmp.eq.s32.totalorder %s15, 1
    %p75 = por %p73, %p74
    %p76 = scmp.ne.s32.totalorder %s67, %s68
    %p77 = scmp.eq.s32.totalorder %s15, 0
    %p78 = por %p76, %p77
    %p79 = scmp.ne.s32.totalorder %s67, %s68
    %p80 = scmp.eq.s32.totalorder %s16, 1
    %p81 = por %p79, %p80
    %p83 = scmp.ne.s32.totalorder %s68, %s82
    %p84 = scmp.eq.s32.totalorder %s16, 0
    %p85 = por %p83, %p84
    %s87 = sadd.s32 %s86, 1
    %p90 = scmp.eq.s32.totalorder %s10, 1
    %p91 = scmp.ne.s32.totalorder %s86, %s88
    %p92 = scmp.eq.s32.totalorder %s10, 0
    %p93 = por %p91, %p92
    %p94 = scmp.ne.s32.totalorder %s86, %s88
    %p95 = scmp.eq.s32.totalorder %s15, 1
    %p96 = por %p94, %p95
    %p97 = scmp.ne.s32.totalorder %s88, %s89
    %p98 = scmp.eq.s32.totalorder %s15, 0
    %p99 = por %p97, %p98
    %p100 = scmp.ne.s32.totalorder %s88, %s89
    %p101 = scmp.eq.s32.totalorder %s16, 1
    %p102 = por %p100, %p101
    %p104 = scmp.ne.s32.totalorder %s89, %s103
    %p105 = scmp.eq.s32.totalorder %s16, 0
    %p106 = por %p104, %p105
    %s107 = ssub.s32 %s10, %s17
    %p108 = scmp.eq.s32.totalorder %s107, 0
    %s110 = sadd.s32 %s109, 1
    %s111 = scalar_select %p108, %s109, %s110
    %p114 = pneg %p108
    %p115 = scmp.eq.s32.totalorder %s10, 1
    %p116 = por %p114, %p115
    %p117 = scmp.ne.s32.totalorder %s109, %s112
    %p118 = scmp.eq.s32.totalorder %s10, 0
    %p119 = por %p117, %p118
    %p120 = scmp.ne.s32.totalorder %s109, %s112
    %p121 = scmp.eq.s32.totalorder %s15, 1
    %p122 = por %p120, %p121
    %p123 = scmp.ne.s32.totalorder %s112, %s113
    %p124 = scmp.eq.s32.totalorder %s15, 0
    %p125 = por %p123, %p124
    %p126 = scmp.ne.s32.totalorder %s112, %s113
    %p127 = scmp.eq.s32.totalorder %s16, 1
    %p128 = por %p126, %p127
    %p130 = scmp.ne.s32.totalorder %s113, %s129
    %p131 = scmp.eq.s32.totalorder %s16, 0
    %p132 = por %p130, %p131
    %p133 = scmp.le.s32.totalorder 1, %s10
    %p134 = scmp.lt.s32.totalorder %s10, 3
    %p135 = pnand %p133, %p134
    %p136 = pneg %p135
    // Predicated region
    $region9: #{resnet_discriminator_forward.11} parent=5 // pred_check
      _
    $region10: #{resnet_discriminator_forward.11} parent=5 // pred_check_branch
      %138 = sbr.rel (%p135) target = $region12
    $region11: #{resnet_discriminator_forward.11} parent=5 // pred_region
      %s139 = ssub.s32 %s10, 1
      // Predicated region
      $region13: #{resnet_discriminator_forward.11} parent=11 // pred_check
        %p140 = pneg %p57
      $region14: #{resnet_discriminator_forward.11} parent=11 // pred_check_branch
        %142 = sbr.rel (%p140) target = $region16
      $region15: #{resnet_discriminator_forward.11} parent=11 // pred_region
        _
      $region16: #{resnet_discriminator_forward.11} parent=11 // pred_fallthru
        _
      // Predicated region
      $region17: #{resnet_discriminator_forward.11} parent=11 // pred_check
        %p143 = pneg %p78
      $region18: #{resnet_discriminator_forward.11} parent=11 // pred_check_branch
        %145 = sbr.rel (%p143) target = $region20
      $region19: #{resnet_discriminator_forward.11} parent=11 // pred_region
        _
      $region20: #{resnet_discriminator_forward.11} parent=11 // pred_fallthru
        _
      // Predicated region
      $region21: #{resnet_discriminator_forward.11} parent=11 // pred_check
        %p146 = pneg %p99
      $region22: #{resnet_discriminator_forward.11} parent=11 // pred_check_branch
        %148 = sbr.rel (%p146) target = $region24
      $region23: #{resnet_discriminator_forward.11} parent=11 // pred_region
        _
      $region24: #{resnet_discriminator_forward.11} parent=11 // pred_fallthru
        _
    $region12: #{resnet_discriminator_forward.11} parent=5 // pred_fallthru
      _
    %p149 = scmp.lt.s32.totalorder %s10, 2
    // Predicated region
    $region25: #{resnet_discriminator_forward.11} parent=5 // pred_check
      %p150 = pneg %p149
    $region26: #{resnet_discriminator_forward.11} parent=5 // pred_check_branch
      %152 = sbr.rel (%p150) target = $region28
    $region27: #{resnet_discriminator_forward.11} parent=5 // pred_region
      // Predicated region
      $region29: #{resnet_discriminator_forward.11} parent=27 // pred_check
        %p153 = pneg %p30
      $region30: #{resnet_discriminator_forward.11} parent=27 // pred_check_branch
        %155 = sbr.rel (%p153) target = $region32
      $region31: #{resnet_discriminator_forward.11} parent=27 // pred_region
        %p156 = scmp.lt.s32.totalorder %s10, 1
        %s157 = scalar_select %p156, %s10, 1
        %s158 = smul.addr %s157, 4
        %s159 = smul.addr %s158, 8
        %s160 = scalar_lea.vmem %s0, %s159
      $region32: #{resnet_discriminator_forward.11} parent=27 // pred_fallthru
        _
    $region28: #{resnet_discriminator_forward.11} parent=5 // pred_fallthru
      _
    %p161 = scmp.le.s32.totalorder 1, %s10
    %p162 = scmp.lt.s32.totalorder %s10, 3
    %p163 = pnand %p161, %p162
    %p164 = pneg %p163
    // Predicated region
    $region33: #{resnet_discriminator_forward.11} parent=5 // pred_check
      _
    $region34: #{resnet_discriminator_forward.11} parent=5 // pred_check_branch
      %166 = sbr.rel (%p163) target = $region36
    $region35: #{resnet_discriminator_forward.11} parent=5 // pred_region
      %s167 = ssub.s32 %s10, 1
      %p168 = scmp.lt.s32.totalorder %s15, 1
      %s169 = scalar_select %p168, %s15, 1
      %s170 = smul.addr %s169, 4
      %s171 = smul.addr %s170, 8
      %s172 = scalar_lea.vmem %s0, %s171
      %p173 = pneg %p36
      %p174 = pneg %p33
      %p175 = pneg %p57
      %p176 = pneg %p54
      %p177 = pneg %p78
      %p178 = pneg %p75
      %p179 = pneg %p99
      %p180 = pneg %p96
      %p181 = pneg %p125
      %p182 = pneg %p122
      %p183 = scmp.lt.s32.totalorder %s15, 1
      %s184 = scalar_select %p183, %s15, 1
      %s185 = smul.addr %s184, 4
      %s186 = scalar_lea.vmem %s4, %s185
      %p187 = scmp.lt.s32.totalorder %s15, 1
      %s188 = scalar_select %p187, %s15, 1
      %s189 = smul.addr %s188, 4
      %s190 = smul.addr %s189, 8
      %s191 = scalar_lea.vmem %s0, %s190
      %p192 = scmp.lt.s32.totalorder %s15, 1
      %s193 = scalar_select %p192, %s15, 1
      %s194 = smul.addr %s193, 4
      %s195 = scalar_lea.vmem %s4, %s194
      %v196 = vld [vmem:[%s191] sm:$0xf]
      %v197 = vld [vmem:[%s191 + $0x8] sm:$0xf]
      %v198 = vld [vmem:[%s1] sm:$0xff]
      %v199 = vld [vmem:[%s1 + $0x8] sm:$0xff]
      %v200 = vld [vmem:[%s1 + $0x10] sm:$0xff]
      %v201 = vld [vmem:[%s1 + $0x18] sm:$0xff]
      %v202 = vld [vmem:[%s1 + $0x20] sm:$0xff]
      %v203 = vld [vmem:[%s1 + $0x28] sm:$0xff]
      %v204 = vld [vmem:[%s1 + $0x30] sm:$0xff]
      %v205 = vld [vmem:[%s1 + $0x38] sm:$0xff]
      %v206 = vld [vmem:[%s1 + $0x40] sm:$0xff]
      %v207 = vld [vmem:[%s1 + $0x48] sm:$0xff]
      %v208 = vld [vmem:[%s1 + $0x50] sm:$0xff]
      %v209 = vld [vmem:[%s1 + $0x58] sm:$0xff]
      %v210 = vld [vmem:[%s1 + $0x60] sm:$0xff]
      %v211 = vld [vmem:[%s1 + $0x68] sm:$0xff]
      %v212 = vld [vmem:[%s1 + $0x70] sm:$0xff]
      %v213 = vld [vmem:[%s1 + $0x78] sm:$0xff]
      %v214 = vld [vmem:[%s1 + $0x80] sm:$0xff]
      %v215 = vld [vmem:[%s1 + $0x88] sm:$0xff]
      %v216 = vld [vmem:[%s1 + $0x90] sm:$0xff]
      %v217 = vld [vmem:[%s1 + $0x98] sm:$0xff]
      %s218 = scalar_lea.vmem %s191, 16
      %v219 = vld [vmem:[%s218] sm:$0xf]
      %v220 = vld [vmem:[%s218 + $0x8] sm:$0xf]
      %s221 = scalar_lea.vmem %s1, 160
      %v222 = vld [vmem:[%s221] sm:$0xff]
      %v223 = vld [vmem:[%s221 + $0x8] sm:$0xff]
      %v224 = vld [vmem:[%s221 + $0x10] sm:$0xff]
      %v225 = vld [vmem:[%s221 + $0x18] sm:$0xff]
      %v226 = vld [vmem:[%s221 + $0x20] sm:$0xff]
      %v227 = vld [vmem:[%s221 + $0x28] sm:$0xff]
      %v228 = vld [vmem:[%s221 + $0x30] sm:$0xff]
      %v229 = vld [vmem:[%s221 + $0x38] sm:$0xff]
      %v230 = vld [vmem:[%s221 + $0x40] sm:$0xff]
      %v231 = vld [vmem:[%s221 + $0x48] sm:$0xff]
      %v232 = vld [vmem:[%s221 + $0x50] sm:$0xff]
      %v233 = vld [vmem:[%s221 + $0x58] sm:$0xff]
      %v234 = vld [vmem:[%s221 + $0x60] sm:$0xff]
      %v235 = vld [vmem:[%s221 + $0x68] sm:$0xff]
      %v236 = vld [vmem:[%s221 + $0x70] sm:$0xff]
      %v237 = vld [vmem:[%s221 + $0x78] sm:$0xff]
      %v238 = vld [vmem:[%s221 + $0x80] sm:$0xff]
      %v239 = vld [vmem:[%s221 + $0x88] sm:$0xff]
      %v240 = vld [vmem:[%s221 + $0x90] sm:$0xff]
      %v241 = vld [vmem:[%s221 + $0x98] sm:$0xff]
      %vm242 = vcmask 261120
      %v244 = vsel %vm242, %v220, 0
      %246 = vmatprep.subr.mxu0 0.0
      %247 = vmatpush1.msra.mxu0 %v237
      %248 = vmatprep.subr.mxu0 0.0
      %249 = vmatpush1.msra.mxu0 %v236
      %250 = vmatprep.subr.mxu0 0.0
      %251 = vmatpush1.msra.mxu0 %v235
      %252 = vmatprep.subr.mxu0 0.0
      %253 = vmatpush1.msra.mxu0 %v234
      %254 = vmatprep.subr.mxu0 0.0
      %255 = vmatpush1.msra.mxu0 %v233
      %256 = vmatprep.subr.mxu0 0.0
      %257 = vmatpush1.msra.mxu0 %v232
      %258 = vmatprep.subr.mxu0 0.0
      %259 = vmatpush1.msra.mxu0 %v231
      %260 = vmatprep.subr.mxu0 0.0
      %261 = vmatpush1.msra.mxu0 %v230
      %262 = vmatprep.subr.mxu0 0.0
      %263 = vmatpush1.msra.mxu0 %v229
      %264 = vmatprep.subr.mxu0 0.0
      %265 = vmatpush1.msra.mxu0 %v228
      %266 = vmatprep.subr.mxu0 0.0
      %267 = vmatpush1.msra.mxu0 %v227
      %268 = vmatprep.subr.mxu0 0.0
      %269 = vmatpush1.msra.mxu0 %v226
      %270 = vmatprep.subr.mxu0 0.0
      %271 = vmatpush1.msra.mxu0 %v225
      %272 = vmatprep.subr.mxu0 0.0
      %273 = vmatpush1.msra.mxu0 %v224
      %274 = vmatprep.subr.mxu0 0.0
      %275 = vmatpush1.msra.mxu0 %v223
      %276 = vmatprep.subr.mxu0 0.0
      %277 = vmatpush1.msra.mxu0 %v222
      %278 = vmatprep.subr.mxu0 0.0
      %279 = vmatpush2.msra.mxu0 0.0
      %280 = vmatprep.subr.mxu0 0.0
      %281 = vmatpush2.msra.mxu0 0.0
      %282 = vmatprep.subr.mxu0 0.0
      %283 = vmatpush2.msra.mxu0 0.0
      %284 = vmatprep.subr.mxu0 0.0
      %285 = vmatpush2.msra.mxu0 0.0
      %286 = vmatprep.subr.mxu0 0.0
      %287 = vmatpush2.msra.mxu0 0.0
      %288 = vmatprep.subr.mxu0 0.0
      %289 = vmatpush2.msra.mxu0 0.0
      %290 = vmatprep.subr.mxu0 0.0
      %291 = vmatpush2.msra.mxu0 0.0
      %292 = vmatprep.subr.mxu0 0.0
      %293 = vmatpush2.msra.mxu0 0.0
      %294 = vmatprep.subr.mxu0 0.0
      %295 = vmatpush2.msra.mxu0 0.0
      %296 = vmatprep.subr.mxu0 0.0
      %297 = vmatpush2.msra.mxu0 0.0
      %298 = vmatprep.subr.mxu0 0.0
      %299 = vmatpush2.msra.mxu0 0.0
      %300 = vmatprep.subr.mxu0 0.0
      %301 = vmatpush2.msra.mxu0 0.0
      %302 = vmatprep.subr.mxu0 0.0
      %303 = vmatpush2.msra.mxu0 %v241
      %304 = vmatprep.subr.mxu0 0.0
      %305 = vmatpush2.msra.mxu0 %v240
      %306 = vmatprep.subr.mxu0 0.0
      %307 = vmatpush2.msra.mxu0 %v239
      %308 = vmatprep.subr.mxu0 0.0
      %309 = vmatpush2.msra.mxu0 %v238
      %310 = vmatprep.mubr.f32.mxu0 %v244
      %311 = vmatmul.mubr.f32.gmra.mxu0 %v219
      %v312 = vpop.f32.mrf.mxu0
      %v313 = vadd.f32 0.0, %v312
      %v314 = vpop.f32.mrf.mxu0
      %315 = vdwg.mxu0
      %v317 = vsel %vm242, %v197, 0
      %319 = vmatprep.subr.mxu0 0.0
      %320 = vmatpush1.msra.mxu0 %v213
      %321 = vmatprep.subr.mxu0 0.0
      %322 = vmatpush1.msra.mxu0 %v212
      %323 = vmatprep.subr.mxu0 0.0
      %324 = vmatpush1.msra.mxu0 %v211
      %325 = vmatprep.subr.mxu0 0.0
      %326 = vmatpush1.msra.mxu0 %v210
      %327 = vmatprep.subr.mxu0 0.0
      %328 = vmatpush1.msra.mxu0 %v209
      %329 = vmatprep.subr.mxu0 0.0
      %330 = vmatpush1.msra.mxu0 %v208
      %331 = vmatprep.subr.mxu0 0.0
      %332 = vmatpush1.msra.mxu0 %v207
      %333 = vmatprep.subr.mxu0 0.0
      %334 = vmatpush1.msra.mxu0 %v206
      %335 = vmatprep.subr.mxu0 0.0
      %336 = vmatpush1.msra.mxu0 %v205
      %337 = vmatprep.subr.mxu0 0.0
      %338 = vmatpush1.msra.mxu0 %v204
      %339 = vmatprep.subr.mxu0 0.0
      %340 = vmatpush1.msra.mxu0 %v203
      %341 = vmatprep.subr.mxu0 0.0
      %342 = vmatpush1.msra.mxu0 %v202
      %343 = vmatprep.subr.mxu0 0.0
      %344 = vmatpush1.msra.mxu0 %v201
      %345 = vmatprep.subr.mxu0 0.0
      %346 = vmatpush1.msra.mxu0 %v200
      %347 = vmatprep.subr.mxu0 0.0
      %348 = vmatpush1.msra.mxu0 %v199
      %349 = vmatprep.subr.mxu0 0.0
      %350 = vmatpush1.msra.mxu0 %v198
      %351 = vmatprep.subr.mxu0 0.0
      %352 = vmatpush2.msra.mxu0 0.0
      %353 = vmatprep.subr.mxu0 0.0
      %354 = vmatpush2.msra.mxu0 0.0
      %355 = vmatprep.subr.mxu0 0.0
      %356 = vmatpush2.msra.mxu0 0.0
      %357 = vmatprep.subr.mxu0 0.0
      %358 = vmatpush2.msra.mxu0 0.0
      %359 = vmatprep.subr.mxu0 0.0
      %360 = vmatpush2.msra.mxu0 0.0
      %361 = vmatprep.subr.mxu0 0.0
      %362 = vmatpush2.msra.mxu0 0.0
      %363 = vmatprep.subr.mxu0 0.0
      %364 = vmatpush2.msra.mxu0 0.0
      %365 = vmatprep.subr.mxu0 0.0
      %366 = vmatpush2.msra.mxu0 0.0
      %367 = vmatprep.subr.mxu0 0.0
      %368 = vmatpush2.msra.mxu0 0.0
      %369 = vmatprep.subr.mxu0 0.0
      %370 = vmatpush2.msra.mxu0 0.0
      %371 = vmatprep.subr.mxu0 0.0
      %372 = vmatpush2.msra.mxu0 0.0
      %373 = vmatprep.subr.mxu0 0.0
      %374 = vmatpush2.msra.mxu0 0.0
      %375 = vmatprep.subr.mxu0 0.0
      %376 = vmatpush2.msra.mxu0 %v217
      %377 = vmatprep.subr.mxu0 0.0
      %378 = vmatpush2.msra.mxu0 %v216
      %379 = vmatprep.subr.mxu0 0.0
      %380 = vmatpush2.msra.mxu0 %v215
      %381 = vmatprep.subr.mxu0 0.0
      %382 = vmatpush2.msra.mxu0 %v214
      %383 = vmatprep.mubr.f32.mxu0 %v317
      %384 = vmatmul.mubr.f32.gmra.mxu0 %v196
      %v385 = vpop.f32.mrf.mxu0
      %v386 = vadd.f32 %v313, %v385
      %v387 = vpop.f32.mrf.mxu0
      %388 = vdwg.mxu0
      %v389 = vld [vmem:[%s191] sm:$0x1e]
      %v390 = vld [vmem:[%s191 + $0x8] sm:$0x1e]
      %s391 = scalar_lea.vmem %s1, 320
      %v392 = vld [vmem:[%s391] sm:$0xff]
      %v393 = vld [vmem:[%s391 + $0x8] sm:$0xff]
      %v394 = vld [vmem:[%s391 + $0x10] sm:$0xff]
      %v395 = vld [vmem:[%s391 + $0x18] sm:$0xff]
      %v396 = vld [vmem:[%s391 + $0x20] sm:$0xff]
      %v397 = vld [vmem:[%s391 + $0x28] sm:$0xff]
      %v398 = vld [vmem:[%s391 + $0x30] sm:$0xff]
      %v399 = vld [vmem:[%s391 + $0x38] sm:$0xff]
      %v400 = vld [vmem:[%s391 + $0x40] sm:$0xff]
      %v401 = vld [vmem:[%s391 + $0x48] sm:$0xff]
      %v402 = vld [vmem:[%s391 + $0x50] sm:$0xff]
      %v403 = vld [vmem:[%s391 + $0x58] sm:$0xff]
      %v404 = vld [vmem:[%s391 + $0x60] sm:$0xff]
      %v405 = vld [vmem:[%s391 + $0x68] sm:$0xff]
      %v406 = vld [vmem:[%s391 + $0x70] sm:$0xff]
      %v407 = vld [vmem:[%s391 + $0x78] sm:$0xff]
      %v408 = vld [vmem:[%s391 + $0x80] sm:$0xff]
      %v409 = vld [vmem:[%s391 + $0x88] sm:$0xff]
      %v410 = vld [vmem:[%s391 + $0x90] sm:$0xff]
      %v411 = vld [vmem:[%s391 + $0x98] sm:$0xff]
      %v414 = vrot.slane %v389, 1
      %v415 = vrot.slane %v390, 1
      %v417 = vsel %vm242, %v415, 0
      %419 = vmatprep.subr.mxu0 0.0
      %420 = vmatpush1.msra.mxu0 %v407
      %421 = vmatprep.subr.mxu0 0.0
      %422 = vmatpush1.msra.mxu0 %v406
      %423 = vmatprep.subr.mxu0 0.0
      %424 = vmatpush1.msra.mxu0 %v405
      %425 = vmatprep.subr.mxu0 0.0
      %426 = vmatpush1.msra.mxu0 %v404
      %427 = vmatprep.subr.mxu0 0.0
      %428 = vmatpush1.msra.mxu0 %v403
      %429 = vmatprep.subr.mxu0 0.0
      %430 = vmatpush1.msra.mxu0 %v402
      %431 = vmatprep.subr.mxu0 0.0
      %432 = vmatpush1.msra.mxu0 %v401
      %433 = vmatprep.subr.mxu0 0.0
      %434 = vmatpush1.msra.mxu0 %v400
      %435 = vmatprep.subr.mxu0 0.0
      %436 = vmatpush1.msra.mxu0 %v399
      %437 = vmatprep.subr.mxu0 0.0
      %438 = vmatpush1.msra.mxu0 %v398
      %439 = vmatprep.subr.mxu0 0.0
      %440 = vmatpush1.msra.mxu0 %v397
      %441 = vmatprep.subr.mxu0 0.0
      %442 = vmatpush1.msra.mxu0 %v396
      %443 = vmatprep.subr.mxu0 0.0
      %444 = vmatpush1.msra.mxu0 %v395
      %445 = vmatprep.subr.mxu0 0.0
      %446 = vmatpush1.msra.mxu0 %v394
      %447 = vmatprep.subr.mxu0 0.0
      %448 = vmatpush1.msra.mxu0 %v393
      %449 = vmatprep.subr.mxu0 0.0
      %450 = vmatpush1.msra.mxu0 %v392
      %451 = vmatprep.subr.mxu0 0.0
      %452 = vmatpush2.msra.mxu0 0.0
      %453 = vmatprep.subr.mxu0 0.0
      %454 = vmatpush2.msra.mxu0 0.0
      %455 = vmatprep.subr.mxu0 0.0
      %456 = vmatpush2.msra.mxu0 0.0
      %457 = vmatprep.subr.mxu0 0.0
      %458 = vmatpush2.msra.mxu0 0.0
      %459 = vmatprep.subr.mxu0 0.0
      %460 = vmatpush2.msra.mxu0 0.0
      %461 = vmatprep.subr.mxu0 0.0
      %462 = vmatpush2.msra.mxu0 0.0
      %463 = vmatprep.subr.mxu0 0.0
      %464 = vmatpush2.msra.mxu0 0.0
      %465 = vmatprep.subr.mxu0 0.0
      %466 = vmatpush2.msra.mxu0 0.0
      %467 = vmatprep.subr.mxu0 0.0
      %468 = vmatpush2.msra.mxu0 0.0
      %469 = vmatprep.subr.mxu0 0.0
      %470 = vmatpush2.msra.mxu0 0.0
      %471 = vmatprep.subr.mxu0 0.0
      %472 = vmatpush2.msra.mxu0 0.0
      %473 = vmatprep.subr.mxu0 0.0
      %474 = vmatpush2.msra.mxu0 0.0
      %475 = vmatprep.subr.mxu0 0.0
      %476 = vmatpush2.msra.mxu0 %v411
      %477 = vmatprep.subr.mxu0 0.0
      %478 = vmatpush2.msra.mxu0 %v410
      %479 = vmatprep.subr.mxu0 0.0
      %480 = vmatpush2.msra.mxu0 %v409
      %481 = vmatprep.subr.mxu0 0.0
      %482 = vmatpush2.msra.mxu0 %v408
      %483 = vmatprep.mubr.f32.mxu0 %v417
      %484 = vmatmul.mubr.f32.gmra.mxu0 %v414
      %v485 = vpop.f32.mrf.mxu0
      %v486 = vadd.f32 0.0, %v485
      %v487 = vpop.f32.mrf.mxu0
      %488 = vdwg.mxu0
      %v489 = vadd.f32 %v386, %v486
      %v490 = vld [vmem:[%s2] sm:$0x1]
      %v492 = vlaneseq
      %v493 = vshrl.u32 %v492, 7
      %v494 = vsub.s32 0, %v493
      %v495 = vrot.slane %v490, %v494
      %v497 = vadd.f32 %v489, %v495
      %v498 = vld [vmem:[%s3] sm:$0xff]
      %v499 = vld [vmem:[%s3 + $0x8] sm:$0xff]
      %v500 = vld [vmem:[%s3 + $0x10] sm:$0xff]
      %v501 = vld [vmem:[%s3 + $0x18] sm:$0xff]
      %v502 = vld [vmem:[%s3 + $0x20] sm:$0xff]
      %v503 = vld [vmem:[%s3 + $0x28] sm:$0xff]
      %v504 = vld [vmem:[%s3 + $0x30] sm:$0xff]
      %v505 = vld [vmem:[%s3 + $0x38] sm:$0xff]
      %v506 = vld [vmem:[%s3 + $0x40] sm:$0xff]
      %v507 = vld [vmem:[%s3 + $0x48] sm:$0xff]
      %v508 = vld [vmem:[%s3 + $0x50] sm:$0xff]
      %v509 = vld [vmem:[%s3 + $0x58] sm:$0xff]
      %v510 = vld [vmem:[%s3 + $0x60] sm:$0xff]
      %v511 = vld [vmem:[%s3 + $0x68] sm:$0xff]
      %v512 = vld [vmem:[%s3 + $0x70] sm:$0xff]
      %v513 = vld [vmem:[%s3 + $0x78] sm:$0xff]
      %514 = vmatprep.subr.mxu0 0.0
      %515 = vmatpush1.msra.mxu0 %v513
      %516 = vmatprep.subr.mxu0 0.0
      %517 = vmatpush1.msra.mxu0 %v512
      %518 = vmatprep.subr.mxu0 0.0
      %519 = vmatpush1.msra.mxu0 %v511
      %520 = vmatprep.subr.mxu0 0.0
      %521 = vmatpush1.msra.mxu0 %v510
      %522 = vmatprep.subr.mxu0 0.0
      %523 = vmatpush1.msra.mxu0 %v509
      %524 = vmatprep.subr.mxu0 0.0
      %525 = vmatpush1.msra.mxu0 %v508
      %526 = vmatprep.subr.mxu0 0.0
      %527 = vmatpush1.msra.mxu0 %v507
      %528 = vmatprep.subr.mxu0 0.0
      %529 = vmatpush1.msra.mxu0 %v506
      %530 = vmatprep.subr.mxu0 0.0
      %531 = vmatpush1.msra.mxu0 %v505
      %532 = vmatprep.subr.mxu0 0.0
      %533 = vmatpush1.msra.mxu0 %v504
      %534 = vmatprep.subr.mxu0 0.0
      %535 = vmatpush1.msra.mxu0 %v503
      %536 = vmatprep.subr.mxu0 0.0
      %537 = vmatpush1.msra.mxu0 %v502
      %538 = vmatprep.subr.mxu0 0.0
      %539 = vmatpush1.msra.mxu0 %v501
      %540 = vmatprep.subr.mxu0 0.0
      %541 = vmatpush1.msra.mxu0 %v500
      %542 = vmatprep.subr.mxu0 0.0
      %543 = vmatpush1.msra.mxu0 %v499
      %544 = vmatprep.subr.mxu0 0.0
      %545 = vmatpush1.msra.mxu0 %v498
      %546 = vmatprep.subr.mxu0 0.0
      %547 = vmatpush2.msra.mxu0 0.0
      %548 = vmatprep.subr.mxu0 0.0
      %549 = vmatpush2.msra.mxu0 0.0
      %550 = vmatprep.subr.mxu0 0.0
      %551 = vmatpush2.msra.mxu0 0.0
      %552 = vmatprep.subr.mxu0 0.0
      %553 = vmatpush2.msra.mxu0 0.0
      %554 = vmatprep.subr.mxu0 0.0
      %555 = vmatpush2.msra.mxu0 0.0
      %556 = vmatprep.subr.mxu0 0.0
      %557 = vmatpush2.msra.mxu0 0.0
      %558 = vmatprep.subr.mxu0 0.0
      %559 = vmatpush2.msra.mxu0 0.0
      %560 = vmatprep.subr.mxu0 0.0
      %561 = vmatpush2.msra.mxu0 0.0
      %562 = vmatprep.subr.mxu0 0.0
      %563 = vmatpush2.msra.mxu0 0.0
      %564 = vmatprep.subr.mxu0 0.0
      %565 = vmatpush2.msra.mxu0 0.0
      %566 = vmatprep.subr.mxu0 0.0
      %567 = vmatpush2.msra.mxu0 0.0
      %568 = vmatprep.subr.mxu0 0.0
      %569 = vmatpush2.msra.mxu0 0.0
      %570 = vmatprep.subr.mxu0 0.0
      %571 = vmatpush2.msra.mxu0 0.0
      %572 = vmatprep.subr.mxu0 0.0
      %573 = vmatpush2.msra.mxu0 0.0
      %574 = vmatprep.subr.mxu0 0.0
      %575 = vmatpush2.msra.mxu0 0.0
      %576 = vmatprep.subr.mxu0 0.0
      %577 = vmatpush2.msra.mxu0 0.0
      %578 = vmatprep.mubr.f32.mxu0 0.0
      %579 = vmatmul.mubr.f32.gmra.mxu0 %v497
      %v580 = vpop.f32.mrf.mxu0
      %v581 = vadd.f32 0.0, %v580
      %v582 = vpop.f32.mrf.mxu0
      %583 = vdwg.mxu0
      %v584 = vmul.f32 %v497, %v497
      %585 = vmatprep.subr.mxu0 0.0
      %586 = vmatpush1.msra.mxu0 %v513
      %587 = vmatprep.subr.mxu0 0.0
      %588 = vmatpush1.msra.mxu0 %v512
      %589 = vmatprep.subr.mxu0 0.0
      %590 = vmatpush1.msra.mxu0 %v511
      %591 = vmatprep.subr.mxu0 0.0
      %592 = vmatpush1.msra.mxu0 %v510
      %593 = vmatprep.subr.mxu0 0.0
      %594 = vmatpush1.msra.mxu0 %v509
      %595 = vmatprep.subr.mxu0 0.0
      %596 = vmatpush1.msra.mxu0 %v508
      %597 = vmatprep.subr.mxu0 0.0
      %598 = vmatpush1.msra.mxu0 %v507
      %599 = vmatprep.subr.mxu0 0.0
      %600 = vmatpush1.msra.mxu0 %v506
      %601 = vmatprep.subr.mxu0 0.0
      %602 = vmatpush1.msra.mxu0 %v505
      %603 = vmatprep.subr.mxu0 0.0
      %604 = vmatpush1.msra.mxu0 %v504
      %605 = vmatprep.subr.mxu0 0.0
      %606 = vmatpush1.msra.mxu0 %v503
      %607 = vmatprep.subr.mxu0 0.0
      %608 = vmatpush1.msra.mxu0 %v502
      %609 = vmatprep.subr.mxu0 0.0
      %610 = vmatpush1.msra.mxu0 %v501
      %611 = vmatprep.subr.mxu0 0.0
      %612 = vmatpush1.msra.mxu0 %v500
      %613 = vmatprep.subr.mxu0 0.0
      %614 = vmatpush1.msra.mxu0 %v499
      %615 = vmatprep.subr.mxu0 0.0
      %616 = vmatpush1.msra.mxu0 %v498
      %617 = vmatprep.subr.mxu0 0.0
      %618 = vmatpush2.msra.mxu0 0.0
      %619 = vmatprep.subr.mxu0 0.0
      %620 = vmatpush2.msra.mxu0 0.0
      %621 = vmatprep.subr.mxu0 0.0
      %622 = vmatpush2.msra.mxu0 0.0
      %623 = vmatprep.subr.mxu0 0.0
      %624 = vmatpush2.msra.mxu0 0.0
      %625 = vmatprep.subr.mxu0 0.0
      %626 = vmatpush2.msra.mxu0 0.0
      %627 = vmatprep.subr.mxu0 0.0
      %628 = vmatpush2.msra.mxu0 0.0
      %629 = vmatprep.subr.mxu0 0.0
      %630 = vmatpush2.msra.mxu0 0.0
      %631 = vmatprep.subr.mxu0 0.0
      %632 = vmatpush2.msra.mxu0 0.0
      %633 = vmatprep.subr.mxu0 0.0
      %634 = vmatpush2.msra.mxu0 0.0
      %635 = vmatprep.subr.mxu0 0.0
      %636 = vmatpush2.msra.mxu0 0.0
      %637 = vmatprep.subr.mxu0 0.0
      %638 = vmatpush2.msra.mxu0 0.0
      %639 = vmatprep.subr.mxu0 0.0
      %640 = vmatpush2.msra.mxu0 0.0
      %641 = vmatprep.subr.mxu0 0.0
      %642 = vmatpush2.msra.mxu0 0.0
      %643 = vmatprep.subr.mxu0 0.0
      %644 = vmatpush2.msra.mxu0 0.0
      %645 = vmatprep.subr.mxu0 0.0
      %646 = vmatpush2.msra.mxu0 0.0
      %647 = vmatprep.subr.mxu0 0.0
      %648 = vmatpush2.msra.mxu0 0.0
      %649 = vmatprep.mubr.f32.mxu0 0.0
      %650 = vmatmul.mubr.f32.gmra.mxu0 %v584
      %v651 = vpop.f32.mrf.mxu0
      %v652 = vadd.f32 0.0, %v651
      %v653 = vpop.f32.mrf.mxu0
      %654 = vdwg.mxu0
      %vm655 = vcmask 1043456
      %v656 = vsel %vm655, %v581, 0.0
      %v657 = vrot.slane %v656, 4
      %v658 = vadd.f32 %v656, %v657
      %v659 = vrot.slane %v658, 2
      %v660 = vadd.f32 %v658, %v659
      %v661 = vrot.slane %v660, 1
      %v662 = vadd.f32 %v660, %v661
      %v663 = vsel %vm655, %v652, 0.0
      %v664 = vrot.slane %v663, 4
      %v665 = vadd.f32 %v663, %v664
      %v666 = vrot.slane %v665, 2
      %v667 = vadd.f32 %v665, %v666
      %v668 = vrot.slane %v667, 1
      %v669 = vadd.f32 %v667, %v668
      %v670 = vmul.f32 %v662, %v662
      %v671 = vsub.f32 %v669, %v670
      %v672 = vsub.f32 %v497, %v662
      %v673 = vadd.f32 %v671, 1e-05
      %v674 = vrsqrt.pop %v673
      %v675 = vmul.f32 %v672, %v674
      %v676 = vmax.f32 %v675, 0.0
      %677 = vst [vmem:[%s195] sm:$0xf] %v676
      %p678 = scmp.lt.s32.totalorder %s15, 1
      %s679 = scalar_select %p678, %s15, 1
      %s680 = smul.addr %s679, 4
      %s681 = scalar_lea.vmem %s4, %s680
      // Predicated region
      $region37: #{resnet_discriminator_forward.11} parent=35 // pred_check
        %p682 = pneg %p122
      $region38: #{resnet_discriminator_forward.11} parent=35 // pred_check_branch
        %684 = sbr.rel (%p682) target = $region40
      $region39: #{resnet_discriminator_forward.11} parent=35 // pred_region
        _
      $region40: #{resnet_discriminator_forward.11} parent=35 // pred_fallthru
        _
    $region36: #{resnet_discriminator_forward.11} parent=5 // pred_fallthru
      _
    %p685 = scmp.le.s32.totalorder 2, %s10
    // Predicated region
    $region41: #{resnet_discriminator_forward.11} parent=5 // pred_check
      %p686 = pneg %p685
    $region42: #{resnet_discriminator_forward.11} parent=5 // pred_check_branch
      %688 = sbr.rel (%p686) target = $region44
    $region43: #{resnet_discriminator_forward.11} parent=5 // pred_region
      %s689 = ssub.s32 %s10, 2
      // Predicated region
      $region45: #{resnet_discriminator_forward.11} parent=43 // pred_check
        %p690 = pneg %p128
      $region46: #{resnet_discriminator_forward.11} parent=43 // pred_check_branch
        %692 = sbr.rel (%p690) target = $region48
      $region47: #{resnet_discriminator_forward.11} parent=43 // pred_region
        %p693 = scmp.lt.s32.totalorder %s16, 1
        %s694 = scalar_select %p693, %s16, 1
        %s695 = smul.addr %s694, 4
        %s696 = scalar_lea.vmem %s4, %s695
      $region48: #{resnet_discriminator_forward.11} parent=43 // pred_fallthru
        _
    $region44: #{resnet_discriminator_forward.11} parent=5 // pred_fallthru
      _
  $region6: #{resnet_discriminator_forward.11} parent=0 // loop_footer
    %s14 = sadd.s32 1, %s10
  $region7: #{resnet_discriminator_forward.11} parent=0 // loop_footer_branch
    %9 = sbr.rel target = $region3
  $region8: #{resnet_discriminator_forward.11} parent=0 // loop_exit
    _

// kernel: resnet_discriminator_forward.12
$region0: #{resnet_discriminator_forward.12}
  #allocation0 [shape = 'u32[]', space=smem, size = 0x4, offset = 0x4, fixed_abs, tag = 'smem constant byte address 0x4 - core index']
  #allocation1 [shape = 'u32[144,128]{1,0:T(1,128)}', space=vmem, size = 0x12000, scoped, tag = 'internal scratch']
  %s0 = inlined_call_operand.vmem [shape: f32[2,6,192], index: 0, kind: input, shape index: {}]
  %s1 = inlined_call_operand.vmem [shape: f32[3,192,128], index: 1, kind: input, shape index: {}]
  %s2 = inlined_call_operand.vmem [shape: f32[1,128], index: 2, kind: input, shape index: {}]
  %s3 = inlined_call_operand.vmem [shape: f32[128,128], index: 3, kind: input, shape index: {}]
  %s4 = inlined_call_operand.vmem [shape: f32[2,4,128], index: 4, kind: output, shape index: {}]
  %s5 = sld [smem:[#allocation0]]
  $region49: #{resnet_discriminator_forward.12} parent=0
    _
  %s7 = ssub.s32 1, %s5
  %s8 = scalar_select 0, %s7, %s5
  loop: start=0, step=1, limit=4
  $region2: #{resnet_discriminator_forward.12} parent=0 // loop_pre_header
    _
  $region3: #{resnet_discriminator_forward.12} parent=0 // loop_header
    %s10 = sphi 0, %s14
    %p11 = scmp.ge.s32.totalorder %s10, 4
    %s20 = sphi 0, %s22
    %s23 = sphi 0, %s20
    %s24 = sphi 0, %s23
    %s40 = sphi 0, %s24
    %s44 = sphi 0, %s44
    %s46 = sphi 0, %s44
    %s47 = sphi 0, %s46
    %s61 = sphi 0, %s47
    %s65 = sphi 0, %s65
    %s67 = sphi 0, %s65
    %s68 = sphi 0, %s67
    %s82 = sphi 0, %s68
    %s86 = sphi 0, %s86
    %s88 = sphi 0, %s86
    %s89 = sphi 0, %s88
    %s103 = sphi 0, %s89
    %s109 = sphi 0, %s111
    %s112 = sphi 0, %s109
    %s113 = sphi 0, %s112
    %s129 = sphi 0, %s113
  $region4: #{resnet_discriminator_forward.12} parent=0 // loop_header_branch
    %13 = sbr.rel (%p11) target = $region8
  $region5: #{resnet_discriminator_forward.12} parent=0 // loop_body
    %s15 = ssub.s32 %s10, 1
    %s16 = ssub.s32 %s10, 2
    %s17 = sadd.s32 %s10, 1
    %s18 = ssub.s32 %s10, %s17
    %p19 = scmp.eq.s32.totalorder %s18, 0
    %s21 = sadd.s32 %s20, 1
    %s22 = scalar_select %p19, %s20, %s21
    %p25 = pneg %p19
    %p26 = scmp.eq.s32.totalorder %s10, 1
    %p27 = por %p25, %p26
    %p28 = scmp.ne.s32.totalorder %s20, %s23
    %p29 = scmp.eq.s32.totalorder %s10, 0
    %p30 = por %p28, %p29
    %p31 = scmp.ne.s32.totalorder %s20, %s23
    %p32 = scmp.eq.s32.totalorder %s15, 1
    %p33 = por %p31, %p32
    %p34 = scmp.ne.s32.totalorder %s23, %s24
    %p35 = scmp.eq.s32.totalorder %s15, 0
    %p36 = por %p34, %p35
    %p37 = scmp.ne.s32.totalorder %s23, %s24
    %p38 = scmp.eq.s32.totalorder %s16, 1
    %p39 = por %p37, %p38
    %p41 = scmp.ne.s32.totalorder %s24, %s40
    %p42 = scmp.eq.s32.totalorder %s16, 0
    %p43 = por %p41, %p42
    %s45 = sadd.s32 %s44, 1
    %p48 = scmp.eq.s32.totalorder %s10, 1
    %p49 = scmp.ne.s32.totalorder %s44, %s46
    %p50 = scmp.eq.s32.totalorder %s10, 0
    %p51 = por %p49, %p50
    %p52 = scmp.ne.s32.totalorder %s44, %s46
    %p53 = scmp.eq.s32.totalorder %s15, 1
    %p54 = por %p52, %p53
    %p55 = scmp.ne.s32.totalorder %s46, %s47
    %p56 = scmp.eq.s32.totalorder %s15, 0
    %p57 = por %p55, %p56
    %p58 = scmp.ne.s32.totalorder %s46, %s47
    %p59 = scmp.eq.s32.totalorder %s16, 1
    %p60 = por %p58, %p59
    %p62 = scmp.ne.s32.totalorder %s47, %s61
    %p63 = scmp.eq.s32.totalorder %s16, 0
    %p64 = por %p62, %p63
    %s66 = sadd.s32 %s65, 1
    %p69 = scmp.eq.s32.totalorder %s10, 1
    %p70 = scmp.ne.s32.totalorder %s65, %s67
    %p71 = scmp.eq.s32.totalorder %s10, 0
    %p72 = por %p70, %p71
    %p73 = scmp.ne.s32.totalorder %s65, %s67
    %p74 = scmp.eq.s32.totalorder %s15, 1
    %p75 = por %p73, %p74
    %p76 = scmp.ne.s32.totalorder %s67, %s68
    %p77 = scmp.eq.s32.totalorder %s15, 0
    %p78 = por %p76, %p77
    %p79 = scmp.ne.s32.totalorder %s67, %s68
    %p80 = scmp.eq.s32.totalorder %s16, 1
    %p81 = por %p79, %p80
    %p83 = scmp.ne.s32.totalorder %s68, %s82
    %p84 = scmp.eq.s32.totalorder %s16, 0
    %p85 = por %p83, %p84
    %s87 = sadd.s32 %s86, 1
    %p90 = scmp.eq.s32.totalorder %s10, 1
    %p91 = scmp.ne.s32.totalorder %s86, %s88
    %p92 = scmp.eq.s32.totalorder %s10, 0
    %p93 = por %p91, %p92
    %p94 = scmp.ne.s32.totalorder %s86, %s88
    %p95 = scmp.eq.s32.totalorder %s15, 1
    %p96 = por %p94, %p95
    %p97 = scmp.ne.s32.totalorder %s88, %s89
    %p98 = scmp.eq.s32.totalorder %s15, 0
    %p99 = por %p97, %p98
    %p100 = scmp.ne.s32.totalorder %s88, %s89
    %p101 = scmp.eq.s32.totalorder %s16, 1
    %p102 = por %p100, %p101
    %p104 = scmp.ne.s32.totalorder %s89, %s103
    %p105 = scmp.eq.s32.totalorder %s16, 0
    %p106 = por %p104, %p105
    %s107 = ssub.s32 %s10, %s17
    %p108 = scmp.eq.s32.totalorder %s107, 0
    %s110 = sadd.s32 %s109, 1
    %s111 = scalar_select %p108, %s109, %s110
    %p114 = pneg %p108
    %p115 = scmp.eq.s32.totalorder %s10, 1
    %p116 = por %p114, %p115
    %p117 = scmp.ne.s32.totalorder %s109, %s112
    %p118 = scmp.eq.s32.totalorder %s10, 0
    %p119 = por %p117, %p118
    %p120 = scmp.ne.s32.totalorder %s109, %s112
    %p121 = scmp.eq.s32.totalorder %s15, 1
    %p122 = por %p120, %p121
    %p123 = scmp.ne.s32.totalorder %s112, %s113
    %p124 = scmp.eq.s32.totalorder %s15, 0
    %p125 = por %p123, %p124
    %p126 = scmp.ne.s32.totalorder %s112, %s113
    %p127 = scmp.eq.s32.totalorder %s16, 1
    %p128 = por %p126, %p127
    %p130 = scmp.ne.s32.totalorder %s113, %s129
    %p131 = scmp.eq.s32.totalorder %s16, 0
    %p132 = por %p130, %p131
    %p133 = scmp.le.s32.totalorder 1, %s10
    %p134 = scmp.lt.s32.totalorder %s10, 3
    %p135 = pnand %p133, %p134
    %p136 = pneg %p135
    // Predicated region
    $region9: #{resnet_discriminator_forward.12} parent=5 // pred_check
      _
    $region10: #{resnet_discriminator_forward.12} parent=5 // pred_check_branch
      %138 = sbr.rel (%p135) target = $region12
    $region11: #{resnet_discriminator_forward.12} parent=5 // pred_region
      %s139 = ssub.s32 %s10, 1
      // Predicated region
      $region13: #{resnet_discriminator_forward.12} parent=11 // pred_check
        %p140 = pneg %p57
      $region14: #{resnet_discriminator_forward.12} parent=11 // pred_check_branch
        %142 = sbr.rel (%p140) target = $region16
      $region15: #{resnet_discriminator_forward.12} parent=11 // pred_region
        _
      $region16: #{resnet_discriminator_forward.12} parent=11 // pred_fallthru
        _
      // Predicated region
      $region17: #{resnet_discriminator_forward.12} parent=11 // pred_check
        %p143 = pneg %p78
      $region18: #{resnet_discriminator_forward.12} parent=11 // pred_check_branch
        %145 = sbr.rel (%p143) target = $region20
      $region19: #{resnet_discriminator_forward.12} parent=11 // pred_region
        _
      $region20: #{resnet_discriminator_forward.12} parent=11 // pred_fallthru
        _
      // Predicated region
      $region21: #{resnet_discriminator_forward.12} parent=11 // pred_check
        %p146 = pneg %p99
      $region22: #{resnet_discriminator_forward.12} parent=11 // pred_check_branch
        %148 = sbr.rel (%p146) target = $region24
      $region23: #{resnet_discriminator_forward.12} parent=11 // pred_region
        _
      $region24: #{resnet_discriminator_forward.12} parent=11 // pred_fallthru
        _
    $region12: #{resnet_discriminator_forward.12} parent=5 // pred_fallthru
      _
    %p149 = scmp.lt.s32.totalorder %s10, 2
    // Predicated region
    $region25: #{resnet_discriminator_forward.12} parent=5 // pred_check
      %p150 = pneg %p149
    $region26: #{resnet_discriminator_forward.12} parent=5 // pred_check_branch
      %152 = sbr.rel (%p150) target = $region28
    $region27: #{resnet_discriminator_forward.12} parent=5 // pred_region
      // Predicated region
      $region29: #{resnet_discriminator_forward.12} parent=27 // pred_check
        %p153 = pneg %p30
      $region30: #{resnet_discriminator_forward.12} parent=27 // pred_check_branch
        %155 = sbr.rel (%p153) target = $region32
      $region31: #{resnet_discriminator_forward.12} parent=27 // pred_region
        %p156 = scmp.lt.s32.totalorder %s10, 1
        %s157 = scalar_select %p156, %s10, 1
        %s158 = smul.addr %s157, 2
        %s159 = smul.addr %s158, 8
        %s160 = scalar_lea.vmem %s0, %s159
      $region32: #{resnet_discriminator_forward.12} parent=27 // pred_fallthru
        _
    $region28: #{resnet_discriminator_forward.12} parent=5 // pred_fallthru
      _
    %p161 = scmp.le.s32.totalorder 1, %s10
    %p162 = scmp.lt.s32.totalorder %s10, 3
    %p163 = pnand %p161, %p162
    %p164 = pneg %p163
    // Predicated region
    $region33: #{resnet_discriminator_forward.12} parent=5 // pred_check
      _
    $region34: #{resnet_discriminator_forward.12} parent=5 // pred_check_branch
      %166 = sbr.rel (%p163) target = $region36
    $region35: #{resnet_discriminator_forward.12} parent=5 // pred_region
      %s167 = ssub.s32 %s10, 1
      %p168 = scmp.lt.s32.totalorder %s15, 1
      %s169 = scalar_select %p168, %s15, 1
      %s170 = smul.addr %s169, 2
      %s171 = smul.addr %s170, 8
      %s172 = scalar_lea.vmem %s0, %s171
      %p173 = pneg %p36
      %p174 = pneg %p33
      %p175 = pneg %p57
      %p176 = pneg %p54
      %p177 = pneg %p78
      %p178 = pneg %p75
      %p179 = pneg %p99
      %p180 = pneg %p96
      %p181 = pneg %p125
      %p182 = pneg %p122
      %p183 = scmp.lt.s32.totalorder %s15, 1
      %s184 = scalar_select %p183, %s15, 1
      %s185 = smul.addr %s184, 4
      %s186 = scalar_lea.vmem %s4, %s185
      %p187 = scmp.lt.s32.totalorder %s15, 1
      %s188 = scalar_select %p187, %s15, 1
      %s189 = smul.addr %s188, 2
      %s190 = smul.addr %s189, 8
      %s191 = scalar_lea.vmem %s0, %s190
      %p192 = scmp.lt.s32.totalorder %s15, 1
      %s193 = scalar_select %p192, %s15, 1
      %s194 = smul.addr %s193, 4
      %s195 = scalar_lea.vmem %s4, %s194
      %v196 = vld [vmem:[%s191] sm:$0xf]
      %v197 = vld [vmem:[%s191 + $0x8] sm:$0xf]
      %v198 = vld [vmem:[%s1] sm:$0xff]
      %v199 = vld [vmem:[%s1 + $0x8] sm:$0xff]
      %v200 = vld [vmem:[%s1 + $0x10] sm:$0xff]
      %v201 = vld [vmem:[%s1 + $0x18] sm:$0xff]
      %v202 = vld [vmem:[%s1 + $0x20] sm:$0xff]
      %v203 = vld [vmem:[%s1 + $0x28] sm:$0xff]
      %v204 = vld [vmem:[%s1 + $0x30] sm:$0xff]
      %v205 = vld [vmem:[%s1 + $0x38] sm:$0xff]
      %v206 = vld [vmem:[%s1 + $0x40] sm:$0xff]
      %v207 = vld [vmem:[%s1 + $0x48] sm:$0xff]
      %v208 = vld [vmem:[%s1 + $0x50] sm:$0xff]
      %v209 = vld [vmem:[%s1 + $0x58] sm:$0xff]
      %v210 = vld [vmem:[%s1 + $0x60] sm:$0xff]
      %v211 = vld [vmem:[%s1 + $0x68] sm:$0xff]
      %v212 = vld [vmem:[%s1 + $0x70] sm:$0xff]
      %v213 = vld [vmem:[%s1 + $0x78] sm:$0xff]
      %v214 = vld [vmem:[%s1 + $0x80] sm:$0xff]
      %v215 = vld [vmem:[%s1 + $0x88] sm:$0xff]
      %v216 = vld [vmem:[%s1 + $0x90] sm:$0xff]
      %v217 = vld [vmem:[%s1 + $0x98] sm:$0xff]
      %v218 = vld [vmem:[%s1 + $0xa0] sm:$0xff]
      %v219 = vld [vmem:[%s1 + $0xa8] sm:$0xff]
      %v220 = vld [vmem:[%s1 + $0xb0] sm:$0xff]
      %v221 = vld [vmem:[%s1 + $0xb8] sm:$0xff]
      %v222 = vld [vmem:[%s191] sm:$0x1e]
      %v223 = vld [vmem:[%s191 + $0x8] sm:$0x1e]
      %s224 = scalar_lea.vmem %s1, 192
      %v225 = vld [vmem:[%s224] sm:$0xff]
      %v226 = vld [vmem:[%s224 + $0x8] sm:$0xff]
      %v227 = vld [vmem:[%s224 + $0x10] sm:$0xff]
      %v228 = vld [vmem:[%s224 + $0x18] sm:$0xff]
      %v229 = vld [vmem:[%s224 + $0x20] sm:$0xff]
      %v230 = vld [vmem:[%s224 + $0x28] sm:$0xff]
      %v231 = vld [vmem:[%s224 + $0x30] sm:$0xff]
      %v232 = vld [vmem:[%s224 + $0x38] sm:$0xff]
      %v233 = vld [vmem:[%s224 + $0x40] sm:$0xff]
      %v234 = vld [vmem:[%s224 + $0x48] sm:$0xff]
      %v235 = vld [vmem:[%s224 + $0x50] sm:$0xff]
      %v236 = vld [vmem:[%s224 + $0x58] sm:$0xff]
      %v237 = vld [vmem:[%s224 + $0x60] sm:$0xff]
      %v238 = vld [vmem:[%s224 + $0x68] sm:$0xff]
      %v239 = vld [vmem:[%s224 + $0x70] sm:$0xff]
      %v240 = vld [vmem:[%s224 + $0x78] sm:$0xff]
      %v241 = vld [vmem:[%s224 + $0x80] sm:$0xff]
      %v242 = vld [vmem:[%s224 + $0x88] sm:$0xff]
      %v243 = vld [vmem:[%s224 + $0x90] sm:$0xff]
      %v244 = vld [vmem:[%s224 + $0x98] sm:$0xff]
      %v245 = vld [vmem:[%s224 + $0xa0] sm:$0xff]
      %v246 = vld [vmem:[%s224 + $0xa8] sm:$0xff]
      %v247 = vld [vmem:[%s224 + $0xb0] sm:$0xff]
      %v248 = vld [vmem:[%s224 + $0xb8] sm:$0xff]
      %v251 = vrot.slane %v222, 1
      %v252 = vrot.slane %v223, 1
      %vm254 = vcmask 523264
      %v255 = vsel %vm254, %v252, 0
      %257 = vmatprep.subr.mxu0 0.0
      %258 = vmatpush1.msra.mxu0 %v240
      %259 = vmatprep.subr.mxu0 0.0
      %260 = vmatpush1.msra.mxu0 %v239
      %261 = vmatprep.subr.mxu0 0.0
      %262 = vmatpush1.msra.mxu0 %v238
      %263 = vmatprep.subr.mxu0 0.0
      %264 = vmatpush1.msra.mxu0 %v237
      %265 = vmatprep.subr.mxu0 0.0
      %266 = vmatpush1.msra.mxu0 %v236
      %267 = vmatprep.subr.mxu0 0.0
      %268 = vmatpush1.msra.mxu0 %v235
      %269 = vmatprep.subr.mxu0 0.0
      %270 = vmatpush1.msra.mxu0 %v234
      %271 = vmatprep.subr.mxu0 0.0
      %272 = vmatpush1.msra.mxu0 %v233
      %273 = vmatprep.subr.mxu0 0.0
      %274 = vmatpush1.msra.mxu0 %v232
      %275 = vmatprep.subr.mxu0 0.0
      %276 = vmatpush1.msra.mxu0 %v231
      %277 = vmatprep.subr.mxu0 0.0
      %278 = vmatpush1.msra.mxu0 %v230
      %279 = vmatprep.subr.mxu0 0.0
      %280 = vmatpush1.msra.mxu0 %v229
      %281 = vmatprep.subr.mxu0 0.0
      %282 = vmatpush1.msra.mxu0 %v228
      %283 = vmatprep.subr.mxu0 0.0
      %284 = vmatpush1.msra.mxu0 %v227
      %285 = vmatprep.subr.mxu0 0.0
      %286 = vmatpush1.msra.mxu0 %v226
      %287 = vmatprep.subr.mxu0 0.0
      %288 = vmatpush1.msra.mxu0 %v225
      %289 = vmatprep.subr.mxu0 0.0
      %290 = vmatpush2.msra.mxu0 0.0
      %291 = vmatprep.subr.mxu0 0.0
      %292 = vmatpush2.msra.mxu0 0.0
      %293 = vmatprep.subr.mxu0 0.0
      %294 = vmatpush2.msra.mxu0 0.0
      %295 = vmatprep.subr.mxu0 0.0
      %296 = vmatpush2.msra.mxu0 0.0
      %297 = vmatprep.subr.mxu0 0.0
      %298 = vmatpush2.msra.mxu0 0.0
      %299 = vmatprep.subr.mxu0 0.0
      %300 = vmatpush2.msra.mxu0 0.0
      %301 = vmatprep.subr.mxu0 0.0
      %302 = vmatpush2.msra.mxu0 0.0
      %303 = vmatprep.subr.mxu0 0.0
      %304 = vmatpush2.msra.mxu0 0.0
      %305 = vmatprep.subr.mxu0 0.0
      %306 = vmatpush2.msra.mxu0 %v248
      %307 = vmatprep.subr.mxu0 0.0
      %308 = vmatpush2.msra.mxu0 %v247
      %309 = vmatprep.subr.mxu0 0.0
      %310 = vmatpush2.msra.mxu0 %v246
      %311 = vmatprep.subr.mxu0 0.0
      %312 = vmatpush2.msra.mxu0 %v245
      %313 = vmatprep.subr.mxu0 0.0
      %314 = vmatpush2.msra.mxu0 %v244
      %315 = vmatprep.subr.mxu0 0.0
      %316 = vmatpush2.msra.mxu0 %v243
      %317 = vmatprep.subr.mxu0 0.0
      %318 = vmatpush2.msra.mxu0 %v242
      %319 = vmatprep.subr.mxu0 0.0
      %320 = vmatpush2.msra.mxu0 %v241
      %321 = vmatprep.mubr.f32.mxu0 %v255
      %322 = vmatmul.mubr.f32.gmra.mxu0 %v251
      %v323 = vpop.f32.mrf.mxu0
      %v324 = vadd.f32 0.0, %v323
      %v325 = vpop.f32.mrf.mxu0
      %326 = vdwg.mxu0
      %v328 = vsel %vm254, %v197, 0
      %330 = vmatprep.subr.mxu0 0.0
      %331 = vmatpush1.msra.mxu0 %v213
      %332 = vmatprep.subr.mxu0 0.0
      %333 = vmatpush1.msra.mxu0 %v212
      %334 = vmatprep.subr.mxu0 0.0
      %335 = vmatpush1.msra.mxu0 %v211
      %336 = vmatprep.subr.mxu0 0.0
      %337 = vmatpush1.msra.mxu0 %v210
      %338 = vmatprep.subr.mxu0 0.0
      %339 = vmatpush1.msra.mxu0 %v209
      %340 = vmatprep.subr.mxu0 0.0
      %341 = vmatpush1.msra.mxu0 %v208
      %342 = vmatprep.subr.mxu0 0.0
      %343 = vmatpush1.msra.mxu0 %v207
      %344 = vmatprep.subr.mxu0 0.0
      %345 = vmatpush1.msra.mxu0 %v206
      %346 = vmatprep.subr.mxu0 0.0
      %347 = vmatpush1.msra.mxu0 %v205
      %348 = vmatprep.subr.mxu0 0.0
      %349 = vmatpush1.msra.mxu0 %v204
      %350 = vmatprep.subr.mxu0 0.0
      %351 = vmatpush1.msra.mxu0 %v203
      %352 = vmatprep.subr.mxu0 0.0
      %353 = vmatpush1.msra.mxu0 %v202
      %354 = vmatprep.subr.mxu0 0.0
      %355 = vmatpush1.msra.mxu0 %v201
      %356 = vmatprep.subr.mxu0 0.0
      %357 = vmatpush1.msra.mxu0 %v200
      %358 = vmatprep.subr.mxu0 0.0
      %359 = vmatpush1.msra.mxu0 %v199
      %360 = vmatprep.subr.mxu0 0.0
      %361 = vmatpush1.msra.mxu0 %v198
      %362 = vmatprep.subr.mxu0 0.0
      %363 = vmatpush2.msra.mxu0 0.0
      %364 = vmatprep.subr.mxu0 0.0
      %365 = vmatpush2.msra.mxu0 0.0
      %366 = vmatprep.subr.mxu0 0.0
      %367 = vmatpush2.msra.mxu0 0.0
      %368 = vmatprep.subr.mxu0 0.0
      %369 = vmatpush2.msra.mxu0 0.0
      %370 = vmatprep.subr.mxu0 0.0
      %371 = vmatpush2.msra.mxu0 0.0
      %372 = vmatprep.subr.mxu0 0.0
      %373 = vmatpush2.msra.mxu0 0.0
      %374 = vmatprep.subr.mxu0 0.0
      %375 = vmatpush2.msra.mxu0 0.0
      %376 = vmatprep.subr.mxu0 0.0
      %377 = vmatpush2.msra.mxu0 0.0
      %378 = vmatprep.subr.mxu0 0.0
      %379 = vmatpush2.msra.mxu0 %v221
      %380 = vmatprep.subr.mxu0 0.0
      %381 = vmatpush2.msra.mxu0 %v220
      %382 = vmatprep.subr.mxu0 0.0
      %383 = vmatpush2.msra.mxu0 %v219
      %384 = vmatprep.subr.mxu0 0.0
      %385 = vmatpush2.msra.mxu0 %v218
      %386 = vmatprep.subr.mxu0 0.0
      %387 = vmatpush2.msra.mxu0 %v217
      %388 = vmatprep.subr.mxu0 0.0
      %389 = vmatpush2.msra.mxu0 %v216
      %390 = vmatprep.subr.mxu0 0.0
      %391 = vmatpush2.msra.mxu0 %v215
      %392 = vmatprep.subr.mxu0 0.0
      %393 = vmatpush2.msra.mxu0 %v214
      %394 = vmatprep.mubr.f32.mxu0 %v328
      %395 = vmatmul.mubr.f32.gmra.mxu0 %v196
      %v396 = vpop.f32.mrf.mxu0
      %v397 = vadd.f32 %v324, %v396
      %v398 = vpop.f32.mrf.mxu0
      %399 = vdwg.mxu0
      %v400 = vld [vmem:[%s191] sm:$0x3c]
      %v401 = vld [vmem:[%s191 + $0x8] sm:$0x3c]
      %s402 = scalar_lea.vmem %s1, 384
      %v403 = vld [vmem:[%s402] sm:$0xff]
      %v404 = vld [vmem:[%s402 + $0x8] sm:$0xff]
      %v405 = vld [vmem:[%s402 + $0x10] sm:$0xff]
      %v406 = vld [vmem:[%s402 + $0x18] sm:$0xff]
      %v407 = vld [vmem:[%s402 + $0x20] sm:$0xff]
      %v408 = vld [vmem:[%s402 + $0x28] sm:$0xff]
      %v409 = vld [vmem:[%s402 + $0x30] sm:$0xff]
      %v410 = vld [vmem:[%s402 + $0x38] sm:$0xff]
      %v411 = vld [vmem:[%s402 + $0x40] sm:$0xff]
      %v412 = vld [vmem:[%s402 + $0x48] sm:$0xff]
      %v413 = vld [vmem:[%s402 + $0x50] sm:$0xff]
      %v414 = vld [vmem:[%s402 + $0x58] sm:$0xff]
      %v415 = vld [vmem:[%s402 + $0x60] sm:$0xff]
      %v416 = vld [vmem:[%s402 + $0x68] sm:$0xff]
      %v417 = vld [vmem:[%s402 + $0x70] sm:$0xff]
      %v418 = vld [vmem:[%s402 + $0x78] sm:$0xff]
      %v419 = vld [vmem:[%s402 + $0x80] sm:$0xff]
      %v420 = vld [vmem:[%s402 + $0x88] sm:$0xff]
      %v421 = vld [vmem:[%s402 + $0x90] sm:$0xff]
      %v422 = vld [vmem:[%s402 + $0x98] sm:$0xff]
      %v423 = vld [vmem:[%s402 + $0xa0] sm:$0xff]
      %v424 = vld [vmem:[%s402 + $0xa8] sm:$0xff]
      %v425 = vld [vmem:[%s402 + $0xb0] sm:$0xff]
      %v426 = vld [vmem:[%s402 + $0xb8] sm:$0xff]
      %v429 = vrot.slane %v400, 2
      %v430 = vrot.slane %v401, 2
      %v432 = vsel %vm254, %v430, 0
      %434 = vmatprep.subr.mxu0 0.0
      %435 = vmatpush1.msra.mxu0 %v418
      %436 = vmatprep.subr.mxu0 0.0
      %437 = vmatpush1.msra.mxu0 %v417
      %438 = vmatprep.subr.mxu0 0.0
      %439 = vmatpush1.msra.mxu0 %v416
      %440 = vmatprep.subr.mxu0 0.0
      %441 = vmatpush1.msra.mxu0 %v415
      %442 = vmatprep.subr.mxu0 0.0
      %443 = vmatpush1.msra.mxu0 %v414
      %444 = vmatprep.subr.mxu0 0.0
      %445 = vmatpush1.msra.mxu0 %v413
      %446 = vmatprep.subr.mxu0 0.0
      %447 = vmatpush1.msra.mxu0 %v412
      %448 = vmatprep.subr.mxu0 0.0
      %449 = vmatpush1.msra.mxu0 %v411
      %450 = vmatprep.subr.mxu0 0.0
      %451 = vmatpush1.msra.mxu0 %v410
      %452 = vmatprep.subr.mxu0 0.0
      %453 = vmatpush1.msra.mxu0 %v409
      %454 = vmatprep.subr.mxu0 0.0
      %455 = vmatpush1.msra.mxu0 %v408
      %456 = vmatprep.subr.mxu0 0.0
      %457 = vmatpush1.msra.mxu0 %v407
      %458 = vmatprep.subr.mxu0 0.0
      %459 = vmatpush1.msra.mxu0 %v406
      %460 = vmatprep.subr.mxu0 0.0
      %461 = vmatpush1.msra.mxu0 %v405
      %462 = vmatprep.subr.mxu0 0.0
      %463 = vmatpush1.msra.mxu0 %v404
      %464 = vmatprep.subr.mxu0 0.0
      %465 = vmatpush1.msra.mxu0 %v403
      %466 = vmatprep.subr.mxu0 0.0
      %467 = vmatpush2.msra.mxu0 0.0
      %468 = vmatprep.subr.mxu0 0.0
      %469 = vmatpush2.msra.mxu0 0.0
      %470 = vmatprep.subr.mxu0 0.0
      %471 = vmatpush2.msra.mxu0 0.0
      %472 = vmatprep.subr.mxu0 0.0
      %473 = vmatpush2.msra.mxu0 0.0
      %474 = vmatprep.subr.mxu0 0.0
      %475 = vmatpush2.msra.mxu0 0.0
      %476 = vmatprep.subr.mxu0 0.0
      %477 = vmatpush2.msra.mxu0 0.0
      %478 = vmatprep.subr.mxu0 0.0
      %479 = vmatpush2.msra.mxu0 0.0
      %480 = vmatprep.subr.mxu0 0.0
      %481 = vmatpush2.msra.mxu0 0.0
      %482 = vmatprep.subr.mxu0 0.0
      %483 = vmatpush2.msra.mxu0 %v426
      %484 = vmatprep.subr.mxu0 0.0
      %485 = vmatpush2.msra.mxu0 %v425
      %486 = vmatprep.subr.mxu0 0.0
      %487 = vmatpush2.msra.mxu0 %v424
      %488 = vmatprep.subr.mxu0 0.0
      %489 = vmatpush2.msra.mxu0 %v423
      %490 = vmatprep.subr.mxu0 0.0
      %491 = vmatpush2.msra.mxu0 %v422
      %492 = vmatprep.subr.mxu0 0.0
      %493 = vmatpush2.msra.mxu0 %v421
      %494 = vmatprep.subr.mxu0 0.0
      %495 = vmatpush2.msra.mxu0 %v420
      %496 = vmatprep.subr.mxu0 0.0
      %497 = vmatpush2.msra.mxu0 %v419
      %498 = vmatprep.mubr.f32.mxu0 %v432
      %499 = vmatmul.mubr.f32.gmra.mxu0 %v429
      %v500 = vpop.f32.mrf.mxu0
      %v501 = vadd.f32 0.0, %v500
      %v502 = vpop.f32.mrf.mxu0
      %503 = vdwg.mxu0
      %v504 = vadd.f32 %v397, %v501
      %v505 = vld [vmem:[%s2] sm:$0x1]
      %v507 = vlaneseq
      %v508 = vshrl.u32 %v507, 7
      %v509 = vsub.s32 0, %v508
      %v510 = vrot.slane %v505, %v509
      %v512 = vadd.f32 %v504, %v510
      %v513 = vld [vmem:[%s3] sm:$0xff]
      %v514 = vld [vmem:[%s3 + $0x8] sm:$0xff]
      %v515 = vld [vmem:[%s3 + $0x10] sm:$0xff]
      %v516 = vld [vmem:[%s3 + $0x18] sm:$0xff]
      %v517 = vld [vmem:[%s3 + $0x20] sm:$0xff]
      %v518 = vld [vmem:[%s3 + $0x28] sm:$0xff]
      %v519 = vld [vmem:[%s3 + $0x30] sm:$0xff]
      %v520 = vld [vmem:[%s3 + $0x38] sm:$0xff]
      %v521 = vld [vmem:[%s3 + $0x40] sm:$0xff]
      %v522 = vld [vmem:[%s3 + $0x48] sm:$0xff]
      %v523 = vld [vmem:[%s3 + $0x50] sm:$0xff]
      %v524 = vld [vmem:[%s3 + $0x58] sm:$0xff]
      %v525 = vld [vmem:[%s3 + $0x60] sm:$0xff]
      %v526 = vld [vmem:[%s3 + $0x68] sm:$0xff]
      %v527 = vld [vmem:[%s3 + $0x70] sm:$0xff]
      %v528 = vld [vmem:[%s3 + $0x78] sm:$0xff]
      %529 = vmatprep.subr.mxu0 0.0
      %530 = vmatpush1.msra.mxu0 %v528
      %531 = vmatprep.subr.mxu0 0.0
      %532 = vmatpush1.msra.mxu0 %v527
      %533 = vmatprep.subr.mxu0 0.0
      %534 = vmatpush1.msra.mxu0 %v526
      %535 = vmatprep.subr.mxu0 0.0
      %536 = vmatpush1.msra.mxu0 %v525
      %537 = vmatprep.subr.mxu0 0.0
      %538 = vmatpush1.msra.mxu0 %v524
      %539 = vmatprep.subr.mxu0 0.0
      %540 = vmatpush1.msra.mxu0 %v523
      %541 = vmatprep.subr.mxu0 0.0
      %542 = vmatpush1.msra.mxu0 %v522
      %543 = vmatprep.subr.mxu0 0.0
      %544 = vmatpush1.msra.mxu0 %v521
      %545 = vmatprep.subr.mxu0 0.0
      %546 = vmatpush1.msra.mxu0 %v520
      %547 = vmatprep.subr.mxu0 0.0
      %548 = vmatpush1.msra.mxu0 %v519
      %549 = vmatprep.subr.mxu0 0.0
      %550 = vmatpush1.msra.mxu0 %v518
      %551 = vmatprep.subr.mxu0 0.0
      %552 = vmatpush1.msra.mxu0 %v517
      %553 = vmatprep.subr.mxu0 0.0
      %554 = vmatpush1.msra.mxu0 %v516
      %555 = vmatprep.subr.mxu0 0.0
      %556 = vmatpush1.msra.mxu0 %v515
      %557 = vmatprep.subr.mxu0 0.0
      %558 = vmatpush1.msra.mxu0 %v514
      %559 = vmatprep.subr.mxu0 0.0
      %560 = vmatpush1.msra.mxu0 %v513
      %561 = vmatprep.subr.mxu0 0.0
      %562 = vmatpush2.msra.mxu0 0.0
      %563 = vmatprep.subr.mxu0 0.0
      %564 = vmatpush2.msra.mxu0 0.0
      %565 = vmatprep.subr.mxu0 0.0
      %566 = vmatpush2.msra.mxu0 0.0
      %567 = vmatprep.subr.mxu0 0.0
      %568 = vmatpush2.msra.mxu0 0.0
      %569 = vmatprep.subr.mxu0 0.0
      %570 = vmatpush2.msra.mxu0 0.0
      %571 = vmatprep.subr.mxu0 0.0
      %572 = vmatpush2.msra.mxu0 0.0
      %573 = vmatprep.subr.mxu0 0.0
      %574 = vmatpush2.msra.mxu0 0.0
      %575 = vmatprep.subr.mxu0 0.0
      %576 = vmatpush2.msra.mxu0 0.0
      %577 = vmatprep.subr.mxu0 0.0
      %578 = vmatpush2.msra.mxu0 0.0
      %579 = vmatprep.subr.mxu0 0.0
      %580 = vmatpush2.msra.mxu0 0.0
      %581 = vmatprep.subr.mxu0 0.0
      %582 = vmatpush2.msra.mxu0 0.0
      %583 = vmatprep.subr.mxu0 0.0
      %584 = vmatpush2.msra.mxu0 0.0
      %585 = vmatprep.subr.mxu0 0.0
      %586 = vmatpush2.msra.mxu0 0.0
      %587 = vmatprep.subr.mxu0 0.0
      %588 = vmatpush2.msra.mxu0 0.0
      %589 = vmatprep.subr.mxu0 0.0
      %590 = vmatpush2.msra.mxu0 0.0
      %591 = vmatprep.subr.mxu0 0.0
      %592 = vmatpush2.msra.mxu0 0.0
      %593 = vmatprep.mubr.f32.mxu0 0.0
      %594 = vmatmul.mubr.f32.gmra.mxu0 %v512
      %v595 = vpop.f32.mrf.mxu0
      %v596 = vadd.f32 0.0, %v595
      %v597 = vpop.f32.mrf.mxu0
      %598 = vdwg.mxu0
      %v599 = vmul.f32 %v512, %v512
      %600 = vmatprep.subr.mxu0 0.0
      %601 = vmatpush1.msra.mxu0 %v528
      %602 = vmatprep.subr.mxu0 0.0
      %603 = vmatpush1.msra.mxu0 %v527
      %604 = vmatprep.subr.mxu0 0.0
      %605 = vmatpush1.msra.mxu0 %v526
      %606 = vmatprep.subr.mxu0 0.0
      %607 = vmatpush1.msra.mxu0 %v525
      %608 = vmatprep.subr.mxu0 0.0
      %609 = vmatpush1.msra.mxu0 %v524
      %610 = vmatprep.subr.mxu0 0.0
      %611 = vmatpush1.msra.mxu0 %v523
      %612 = vmatprep.subr.mxu0 0.0
      %613 = vmatpush1.msra.mxu0 %v522
      %614 = vmatprep.subr.mxu0 0.0
      %615 = vmatpush1.msra.mxu0 %v521
      %616 = vmatprep.subr.mxu0 0.0
      %617 = vmatpush1.msra.mxu0 %v520
      %618 = vmatprep.subr.mxu0 0.0
      %619 = vmatpush1.msra.mxu0 %v519
      %620 = vmatprep.subr.mxu0 0.0
      %621 = vmatpush1.msra.mxu0 %v518
      %622 = vmatprep.subr.mxu0 0.0
      %623 = vmatpush1.msra.mxu0 %v517
      %624 = vmatprep.subr.mxu0 0.0
      %625 = vmatpush1.msra.mxu0 %v516
      %626 = vmatprep.subr.mxu0 0.0
      %627 = vmatpush1.msra.mxu0 %v515
      %628 = vmatprep.subr.mxu0 0.0
      %629 = vmatpush1.msra.mxu0 %v514
      %630 = vmatprep.subr.mxu0 0.0
      %631 = vmatpush1.msra.mxu0 %v513
      %632 = vmatprep.subr.mxu0 0.0
      %633 = vmatpush2.msra.mxu0 0.0
      %634 = vmatprep.subr.mxu0 0.0
      %635 = vmatpush2.msra.mxu0 0.0
      %636 = vmatprep.subr.mxu0 0.0
      %637 = vmatpush2.msra.mxu0 0.0
      %638 = vmatprep.subr.mxu0 0.0
      %639 = vmatpush2.msra.mxu0 0.0
      %640 = vmatprep.subr.mxu0 0.0
      %641 = vmatpush2.msra.mxu0 0.0
      %642 = vmatprep.subr.mxu0 0.0
      %643 = vmatpush2.msra.mxu0 0.0
      %644 = vmatprep.subr.mxu0 0.0
      %645 = vmatpush2.msra.mxu0 0.0
      %646 = vmatprep.subr.mxu0 0.0
      %647 = vmatpush2.msra.mxu0 0.0
      %648 = vmatprep.subr.mxu0 0.0
      %649 = vmatpush2.msra.mxu0 0.0
      %650 = vmatprep.subr.mxu0 0.0
      %651 = vmatpush2.msra.mxu0 0.0
      %652 = vmatprep.subr.mxu0 0.0
      %653 = vmatpush2.msra.mxu0 0.0
      %654 = vmatprep.subr.mxu0 0.0
      %655 = vmatpush2.msra.mxu0 0.0
      %656 = vmatprep.subr.mxu0 0.0
      %657 = vmatpush2.msra.mxu0 0.0
      %658 = vmatprep.subr.mxu0 0.0
      %659 = vmatpush2.msra.mxu0 0.0
      %660 = vmatprep.subr.mxu0 0.0
      %661 = vmatpush2.msra.mxu0 0.0
      %662 = vmatprep.subr.mxu0 0.0
      %663 = vmatpush2.msra.mxu0 0.0
      %664 = vmatprep.mubr.f32.mxu0 0.0
      %665 = vmatmul.mubr.f32.gmra.mxu0 %v599
      %v666 = vpop.f32.mrf.mxu0
      %v667 = vadd.f32 0.0, %v666
      %v668 = vpop.f32.mrf.mxu0
      %669 = vdwg.mxu0
      %vm670 = vcmask 1043456
      %v671 = vsel %vm670, %v596, 0.0
      %v672 = vrot.slane %v671, 4
      %v673 = vadd.f32 %v671, %v672
      %v674 = vrot.slane %v673, 2
      %v675 = vadd.f32 %v673, %v674
      %v676 = vrot.slane %v675, 1
      %v677 = vadd.f32 %v675, %v676
      %v678 = vsel %vm670, %v667, 0.0
      %v679 = vrot.slane %v678, 4
      %v680 = vadd.f32 %v678, %v679
      %v681 = vrot.slane %v680, 2
      %v682 = vadd.f32 %v680, %v681
      %v683 = vrot.slane %v682, 1
      %v684 = vadd.f32 %v682, %v683
      %v685 = vmul.f32 %v677, %v677
      %v686 = vsub.f32 %v684, %v685
      %v687 = vsub.f32 %v512, %v677
      %v688 = vadd.f32 %v686, 1e-05
      %v689 = vrsqrt.pop %v688
      %v690 = vmul.f32 %v687, %v689
      %v691 = vmax.f32 %v690, 0.0
      %692 = vst [vmem:[%s195] sm:$0xf] %v691
      %p693 = scmp.lt.s32.totalorder %s15, 1
      %s694 = scalar_select %p693, %s15, 1
      %s695 = smul.addr %s694, 4
      %s696 = scalar_lea.vmem %s4, %s695
      // Predicated region
      $region37: #{resnet_discriminator_forward.12} parent=35 // pred_check
        %p697 = pneg %p122
      $region38: #{resnet_discriminator_forward.12} parent=35 // pred_check_branch
        %699 = sbr.rel (%p697) target = $region40
      $region39: #{resnet_discriminator_forward.12} parent=35 // pred_region
        _
      $region40: #{resnet_discriminator_forward.12} parent=35 // pred_fallthru
        _
    $region36: #{resnet_discriminator_forward.12} parent=5 // pred_fallthru
      _
    %p700 = scmp.le.s32.totalorder 2, %s10
    // Predicated region
    $region41: #{resnet_discriminator_forward.12} parent=5 // pred_check
      %p701 = pneg %p700
    $region42: #{resnet_discriminator_forward.12} parent=5 // pred_check_branch
      %703 = sbr.rel (%p701) target = $region44
    $region43: #{resnet_discriminator_forward.12} parent=5 // pred_region
      %s704 = ssub.s32 %s10, 2
      // Predicated region
      $region45: #{resnet_discriminator_forward.12} parent=43 // pred_check
        %p705 = pneg %p128
      $region46: #{resnet_discriminator_forward.12} parent=43 // pred_check_branch
        %707 = sbr.rel (%p705) target = $region48
      $region47: #{resnet_discriminator_forward.12} parent=43 // pred_region
        %p708 = scmp.lt.s32.totalorder %s16, 1
        %s709 = scalar_select %p708, %s16, 1
        %s710 = smul.addr %s709, 4
        %s711 = scalar_lea.vmem %s4, %s710
      $region48: #{resnet_discriminator_forward.12} parent=43 // pred_fallthru
        _
    $region44: #{resnet_discriminator_forward.12} parent=5 // pred_fallthru
      _
  $region6: #{resnet_discriminator_forward.12} parent=0 // loop_footer
    %s14 = sadd.s32 1, %s10
  $region7: #{resnet_discriminator_forward.12} parent=0 // loop_footer_branch
    %9 = sbr.rel target = $region3
  $region8: #{resnet_discriminator_forward.12} parent=0 // loop_exit
    _

// kernel: resnet_discriminator_forward.13
$region0: #{resnet_discriminator_forward.13}
  #allocation0 [shape = 'u32[]', space=smem, size = 0x4, offset = 0x4, fixed_abs, tag = 'smem constant byte address 0x4 - core index']
  #allocation1 [shape = 'u32[144,128]{1,0:T(1,128)}', space=vmem, size = 0x12000, scoped, tag = 'internal scratch']
  %s0 = inlined_call_operand.vmem [shape: f32[2,6,192], index: 0, kind: input, shape index: {}]
  %s1 = inlined_call_operand.vmem [shape: f32[3,192,128], index: 1, kind: input, shape index: {}]
  %s2 = inlined_call_operand.vmem [shape: f32[1,128], index: 2, kind: input, shape index: {}]
  %s3 = inlined_call_operand.vmem [shape: f32[128,128], index: 3, kind: input, shape index: {}]
  %s4 = inlined_call_operand.vmem [shape: f32[2,4,128], index: 4, kind: input, shape index: {}]
  %s5 = inlined_call_operand.vmem [shape: f32[2,4,128], index: 5, kind: output, shape index: {}]
  %s6 = sld [smem:[#allocation0]]
  $region53: #{resnet_discriminator_forward.13} parent=0
    _
  %s8 = ssub.s32 1, %s6
  %s9 = scalar_select 0, %s8, %s6
  loop: start=0, step=1, limit=4
  $region2: #{resnet_discriminator_forward.13} parent=0 // loop_pre_header
    _
  $region3: #{resnet_discriminator_forward.13} parent=0 // loop_header
    %s11 = sphi 0, %s15
    %p12 = scmp.ge.s32.totalorder %s11, 4
    %s21 = sphi 0, %s23
    %s24 = sphi 0, %s21
    %s25 = sphi 0, %s24
    %s41 = sphi 0, %s25
    %s45 = sphi 0, %s45
    %s47 = sphi 0, %s45
    %s48 = sphi 0, %s47
    %s62 = sphi 0, %s48
    %s66 = sphi 0, %s66
    %s68 = sphi 0, %s66
    %s69 = sphi 0, %s68
    %s83 = sphi 0, %s69
    %s87 = sphi 0, %s87
    %s89 = sphi 0, %s87
    %s90 = sphi 0, %s89
    %s104 = sphi 0, %s90
    %s110 = sphi 0, %s112
    %s113 = sphi 0, %s110
    %s114 = sphi 0, %s113
    %s130 = sphi 0, %s114
    %s136 = sphi 0, %s138
    %s139 = sphi 0, %s136
    %s140 = sphi 0, %s139
    %s156 = sphi 0, %s140
  $region4: #{resnet_discriminator_forward.13} parent=0 // loop_header_branch
    %14 = sbr.rel (%p12) target = $region8
  $region5: #{resnet_discriminator_forward.13} parent=0 // loop_body
    %s16 = ssub.s32 %s11, 1
    %s17 = ssub.s32 %s11, 2
    %s18 = sadd.s32 %s11, 1
    %s19 = ssub.s32 %s11, %s18
    %p20 = scmp.eq.s32.totalorder %s19, 0
    %s22 = sadd.s32 %s21, 1
    %s23 = scalar_select %p20, %s21, %s22
    %p26 = pneg %p20
    %p27 = scmp.eq.s32.totalorder %s11, 1
    %p28 = por %p26, %p27
    %p29 = scmp.ne.s32.totalorder %s21, %s24
    %p30 = scmp.eq.s32.totalorder %s11, 0
    %p31 = por %p29, %p30
    %p32 = scmp.ne.s32.totalorder %s21, %s24
    %p33 = scmp.eq.s32.totalorder %s16, 1
    %p34 = por %p32, %p33
    %p35 = scmp.ne.s32.totalorder %s24, %s25
    %p36 = scmp.eq.s32.totalorder %s16, 0
    %p37 = por %p35, %p36
    %p38 = scmp.ne.s32.totalorder %s24, %s25
    %p39 = scmp.eq.s32.totalorder %s17, 1
    %p40 = por %p38, %p39
    %p42 = scmp.ne.s32.totalorder %s25, %s41
    %p43 = scmp.eq.s32.totalorder %s17, 0
    %p44 = por %p42, %p43
    %s46 = sadd.s32 %s45, 1
    %p49 = scmp.eq.s32.totalorder %s11, 1
    %p50 = scmp.ne.s32.totalorder %s45, %s47
    %p51 = scmp.eq.s32.totalorder %s11, 0
    %p52 = por %p50, %p51
    %p53 = scmp.ne.s32.totalorder %s45, %s47
    %p54 = scmp.eq.s32.totalorder %s16, 1
    %p55 = por %p53, %p54
    %p56 = scmp.ne.s32.totalorder %s47, %s48
    %p57 = scmp.eq.s32.totalorder %s16, 0
    %p58 = por %p56, %p57
    %p59 = scmp.ne.s32.totalorder %s47, %s48
    %p60 = scmp.eq.s32.totalorder %s17, 1
    %p61 = por %p59, %p60
    %p63 = scmp.ne.s32.totalorder %s48, %s62
    %p64 = scmp.eq.s32.totalorder %s17, 0
    %p65 = por %p63, %p64
    %s67 = sadd.s32 %s66, 1
    %p70 = scmp.eq.s32.totalorder %s11, 1
    %p71 = scmp.ne.s32.totalorder %s66, %s68
    %p72 = scmp.eq.s32.totalorder %s11, 0
    %p73 = por %p71, %p72
    %p74 = scmp.ne.s32.totalorder %s66, %s68
    %p75 = scmp.eq.s32.totalorder %s16, 1
    %p76 = por %p74, %p75
    %p77 = scmp.ne.s32.totalorder %s68, %s69
    %p78 = scmp.eq.s32.totalorder %s16, 0
    %p79 = por %p77, %p78
    %p80 = scmp.ne.s32.totalorder %s68, %s69
    %p81 = scmp.eq.s32.totalorder %s17, 1
    %p82 = por %p80, %p81
    %p84 = scmp.ne.s32.totalorder %s69, %s83
    %p85 = scmp.eq.s32.totalorder %s17, 0
    %p86 = por %p84, %p85
    %s88 = sadd.s32 %s87, 1
    %p91 = scmp.eq.s32.totalorder %s11, 1
    %p92 = scmp.ne.s32.totalorder %s87, %s89
    %p93 = scmp.eq.s32.totalorder %s11, 0
    %p94 = por %p92, %p93
    %p95 = scmp.ne.s32.totalorder %s87, %s89
    %p96 = scmp.eq.s32.totalorder %s16, 1
    %p97 = por %p95, %p96
    %p98 = scmp.ne.s32.totalorder %s89, %s90
    %p99 = scmp.eq.s32.totalorder %s16, 0
    %p100 = por %p98, %p99
    %p101 = scmp.ne.s32.totalorder %s89, %s90
    %p102 = scmp.eq.s32.totalorder %s17, 1
    %p103 = por %p101, %p102
    %p105 = scmp.ne.s32.totalorder %s90, %s104
    %p106 = scmp.eq.s32.totalorder %s17, 0
    %p107 = por %p105, %p106
    %s108 = ssub.s32 %s11, %s18
    %p109 = scmp.eq.s32.totalorder %s108, 0
    %s111 = sadd.s32 %s110, 1
    %s112 = scalar_select %p109, %s110, %s111
    %p115 = pneg %p109
    %p116 = scmp.eq.s32.totalorder %s11, 1
    %p117 = por %p115, %p116
    %p118 = scmp.ne.s32.totalorder %s110, %s113
    %p119 = scmp.eq.s32.totalorder %s11, 0
    %p120 = por %p118, %p119
    %p121 = scmp.ne.s32.totalorder %s110, %s113
    %p122 = scmp.eq.s32.totalorder %s16, 1
    %p123 = por %p121, %p122
    %p124 = scmp.ne.s32.totalorder %s113, %s114
    %p125 = scmp.eq.s32.totalorder %s16, 0
    %p126 = por %p124, %p125
    %p127 = scmp.ne.s32.totalorder %s113, %s114
    %p128 = scmp.eq.s32.totalorder %s17, 1
    %p129 = por %p127, %p128
    %p131 = scmp.ne.s32.totalorder %s114, %s130
    %p132 = scmp.eq.s32.totalorder %s17, 0
    %p133 = por %p131, %p132
    %s134 = ssub.s32 %s11, %s18
    %p135 = scmp.eq.s32.totalorder %s134, 0
    %s137 = sadd.s32 %s136, 1
    %s138 = scalar_select %p135, %s136, %s137
    %p141 = pneg %p135
    %p142 = scmp.eq.s32.totalorder %s11, 1
    %p143 = por %p141, %p142
    %p144 = scmp.ne.s32.totalorder %s136, %s139
    %p145 = scmp.eq.s32.totalorder %s11, 0
    %p146 = por %p144, %p145
    %p147 = scmp.ne.s32.totalorder %s136, %s139
    %p148 = scmp.eq.s32.totalorder %s16, 1
    %p149 = por %p147, %p148
    %p150 = scmp.ne.s32.totalorder %s139, %s140
    %p151 = scmp.eq.s32.totalorder %s16, 0
    %p152 = por %p150, %p151
    %p153 = scmp.ne.s32.totalorder %s139, %s140
    %p154 = scmp.eq.s32.totalorder %s17, 1
    %p155 = por %p153, %p154
    %p157 = scmp.ne.s32.totalorder %s140, %s156
    %p158 = scmp.eq.s32.totalorder %s17, 0
    %p159 = por %p157, %p158
    %p160 = scmp.le.s32.totalorder 1, %s11
    %p161 = scmp.lt.s32.totalorder %s11, 3
    %p162 = pnand %p160, %p161
    %p163 = pneg %p162
    // Predicated region
    $region9: #{resnet_discriminator_forward.13} parent=5 // pred_check
      _
    $region10: #{resnet_discriminator_forward.13} parent=5 // pred_check_branch
      %165 = sbr.rel (%p162) target = $region12
    $region11: #{resnet_discriminator_forward.13} parent=5 // pred_region
      %s166 = ssub.s32 %s11, 1
      // Predicated region
      $region13: #{resnet_discriminator_forward.13} parent=11 // pred_check
        %p167 = pneg %p58
      $region14: #{resnet_discriminator_forward.13} parent=11 // pred_check_branch
        %169 = sbr.rel (%p167) target = $region16
      $region15: #{resnet_discriminator_forward.13} parent=11 // pred_region
        _
      $region16: #{resnet_discriminator_forward.13} parent=11 // pred_fallthru
        _
      // Predicated region
      $region17: #{resnet_discriminator_forward.13} parent=11 // pred_check
        %p170 = pneg %p79
      $region18: #{resnet_discriminator_forward.13} parent=11 // pred_check_branch
        %172 = sbr.rel (%p170) target = $region20
      $region19: #{resnet_discriminator_forward.13} parent=11 // pred_region
        _
      $region20: #{resnet_discriminator_forward.13} parent=11 // pred_fallthru
        _
      // Predicated region
      $region21: #{resnet_discriminator_forward.13} parent=11 // pred_check
        %p173 = pneg %p100
      $region22: #{resnet_discriminator_forward.13} parent=11 // pred_check_branch
        %175 = sbr.rel (%p173) target = $region24
      $region23: #{resnet_discriminator_forward.13} parent=11 // pred_region
        _
      $region24: #{resnet_discriminator_forward.13} parent=11 // pred_fallthru
        _
    $region12: #{resnet_discriminator_forward.13} parent=5 // pred_fallthru
      _
    %p176 = scmp.lt.s32.totalorder %s11, 2
    // Predicated region
    $region25: #{resnet_discriminator_forward.13} parent=5 // pred_check
      %p177 = pneg %p176
    $region26: #{resnet_discriminator_forward.13} parent=5 // pred_check_branch
      %179 = sbr.rel (%p177) target = $region28
    $region27: #{resnet_discriminator_forward.13} parent=5 // pred_region
      // Predicated region
      $region29: #{resnet_discriminator_forward.13} parent=27 // pred_check
        %p180 = pneg %p31
      $region30: #{resnet_discriminator_forward.13} parent=27 // pred_check_branch
        %182 = sbr.rel (%p180) target = $region32
      $region31: #{resnet_discriminator_forward.13} parent=27 // pred_region
        %p183 = scmp.lt.s32.totalorder %s11, 1
        %s184 = scalar_select %p183, %s11, 1
        %s185 = smul.addr %s184, 2
        %s186 = smul.addr %s185, 8
        %s187 = scalar_lea.vmem %s0, %s186
      $region32: #{resnet_discriminator_forward.13} parent=27 // pred_fallthru
        _
      // Predicated region
      $region33: #{resnet_discriminator_forward.13} parent=27 // pred_check
        %p188 = pneg %p120
      $region34: #{resnet_discriminator_forward.13} parent=27 // pred_check_branch
        %190 = sbr.rel (%p188) target = $region36
      $region35: #{resnet_discriminator_forward.13} parent=27 // pred_region
        %p191 = scmp.lt.s32.totalorder %s11, 1
        %s192 = scalar_select %p191, %s11, 1
        %s193 = smul.addr %s192, 4
        %s194 = scalar_lea.vmem %s4, %s193
      $region36: #{resnet_discriminator_forward.13} parent=27 // pred_fallthru
        _
    $region28: #{resnet_discriminator_forward.13} parent=5 // pred_fallthru
      _
    %p195 = scmp.le.s32.totalorder 1, %s11
    %p196 = scmp.lt.s32.totalorder %s11, 3
    %p197 = pnand %p195, %p196
    %p198 = pneg %p197
    // Predicated region
    $region37: #{resnet_discriminator_forward.13} parent=5 // pred_check
      _
    $region38: #{resnet_discriminator_forward.13} parent=5 // pred_check_branch
      %200 = sbr.rel (%p197) target = $region40
    $region39: #{resnet_discriminator_forward.13} parent=5 // pred_region
      %s201 = ssub.s32 %s11, 1
      %p202 = scmp.lt.s32.totalorder %s16, 1
      %s203 = scalar_select %p202, %s16, 1
      %s204 = smul.addr %s203, 2
      %s205 = smul.addr %s204, 8
      %s206 = scalar_lea.vmem %s0, %s205
      %p207 = pneg %p37
      %p208 = pneg %p34
      %p209 = pneg %p58
      %p210 = pneg %p55
      %p211 = pneg %p79
      %p212 = pneg %p76
      %p213 = pneg %p100
      %p214 = pneg %p97
      %p215 = scmp.lt.s32.totalorder %s16, 1
      %s216 = scalar_select %p215, %s16, 1
      %s217 = smul.addr %s216, 4
      %s218 = scalar_lea.vmem %s4, %s217
      %p219 = pneg %p126
      %p220 = pneg %p123
      %p221 = pneg %p152
      %p222 = pneg %p149
      %p223 = scmp.lt.s32.totalorder %s16, 1
      %s224 = scalar_select %p223, %s16, 1
      %s225 = smul.addr %s224, 4
      %s226 = scalar_lea.vmem %s5, %s225
      %p227 = scmp.lt.s32.totalorder %s16, 1
      %s228 = scalar_select %p227, %s16, 1
      %s229 = smul.addr %s228, 2
      %s230 = smul.addr %s229, 8
      %s231 = scalar_lea.vmem %s0, %s230
      %p232 = scmp.lt.s32.totalorder %s16, 1
      %s233 = scalar_select %p232, %s16, 1
      %s234 = smul.addr %s233, 4
      %s235 = scalar_lea.vmem %s4, %s234
      %p236 = scmp.lt.s32.totalorder %s16, 1
      %s237 = scalar_select %p236, %s16, 1
      %s238 = smul.addr %s237, 4
      %s239 = scalar_lea.vmem %s5, %s238
      %v240 = vld [vmem:[%s231] sm:$0xf]
      %v241 = vld [vmem:[%s231 + $0x8] sm:$0xf]
      %v242 = vld [vmem:[%s1] sm:$0xff]
      %v243 = vld [vmem:[%s1 + $0x8] sm:$0xff]
      %v244 = vld [vmem:[%s1 + $0x10] sm:$0xff]
      %v245 = vld [vmem:[%s1 + $0x18] sm:$0xff]
      %v246 = vld [vmem:[%s1 + $0x20] sm:$0xff]
      %v247 = vld [vmem:[%s1 + $0x28] sm:$0xff]
      %v248 = vld [vmem:[%s1 + $0x30] sm:$0xff]
      %v249 = vld [vmem:[%s1 + $0x38] sm:$0xff]
      %v250 = vld [vmem:[%s1 + $0x40] sm:$0xff]
      %v251 = vld [vmem:[%s1 + $0x48] sm:$0xff]
      %v252 = vld [vmem:[%s1 + $0x50] sm:$0xff]
      %v253 = vld [vmem:[%s1 + $0x58] sm:$0xff]
      %v254 = vld [vmem:[%s1 + $0x60] sm:$0xff]
      %v255 = vld [vmem:[%s1 + $0x68] sm:$0xff]
      %v256 = vld [vmem:[%s1 + $0x70] sm:$0xff]
      %v257 = vld [vmem:[%s1 + $0x78] sm:$0xff]
      %v258 = vld [vmem:[%s1 + $0x80] sm:$0xff]
      %v259 = vld [vmem:[%s1 + $0x88] sm:$0xff]
      %v260 = vld [vmem:[%s1 + $0x90] sm:$0xff]
      %v261 = vld [vmem:[%s1 + $0x98] sm:$0xff]
      %v262 = vld [vmem:[%s1 + $0xa0] sm:$0xff]
      %v263 = vld [vmem:[%s1 + $0xa8] sm:$0xff]
      %v264 = vld [vmem:[%s1 + $0xb0] sm:$0xff]
      %v265 = vld [vmem:[%s1 + $0xb8] sm:$0xff]
      %v266 = vld [vmem:[%s231] sm:$0x1e]
      %v267 = vld [vmem:[%s231 + $0x8] sm:$0x1e]
      %s268 = scalar_lea.vmem %s1, 192
      %v269 = vld [vmem:[%s268] sm:$0xff]
      %v270 = vld [vmem:[%s268 + $0x8] sm:$0xff]
      %v271 = vld [vmem:[%s268 + $0x10] sm:$0xff]
      %v272 = vld [vmem:[%s268 + $0x18] sm:$0xff]
      %v273 = vld [vmem:[%s268 + $0x20] sm:$0xff]
      %v274 = vld [vmem:[%s268 + $0x28] sm:$0xff]
      %v275 = vld [vmem:[%s268 + $0x30] sm:$0xff]
      %v276 = vld [vmem:[%s268 + $0x38] sm:$0xff]
      %v277 = vld [vmem:[%s268 + $0x40] sm:$0xff]
      %v278 = vld [vmem:[%s268 + $0x48] sm:$0xff]
      %v279 = vld [vmem:[%s268 + $0x50] sm:$0xff]
      %v280 = vld [vmem:[%s268 + $0x58] sm:$0xff]
      %v281 = vld [vmem:[%s268 + $0x60] sm:$0xff]
      %v282 = vld [vmem:[%s268 + $0x68] sm:$0xff]
      %v283 = vld [vmem:[%s268 + $0x70] sm:$0xff]
      %v284 = vld [vmem:[%s268 + $0x78] sm:$0xff]
      %v285 = vld [vmem:[%s268 + $0x80] sm:$0xff]
      %v286 = vld [vmem:[%s268 + $0x88] sm:$0xff]
      %v287 = vld [vmem:[%s268 + $0x90] sm:$0xff]
      %v288 = vld [vmem:[%s268 + $0x98] sm:$0xff]
      %v289 = vld [vmem:[%s268 + $0xa0] sm:$0xff]
      %v290 = vld [vmem:[%s268 + $0xa8] sm:$0xff]
      %v291 = vld [vmem:[%s268 + $0xb0] sm:$0xff]
      %v292 = vld [vmem:[%s268 + $0xb8] sm:$0xff]
      %v295 = vrot.slane %v266, 1
      %v296 = vrot.slane %v267, 1
      %vm298 = vcmask 523264
      %v299 = vsel %vm298, %v296, 0
      %301 = vmatprep.subr.mxu0 0.0
      %302 = vmatpush1.msra.mxu0 %v284
      %303 = vmatprep.subr.mxu0 0.0
      %304 = vmatpush1.msra.mxu0 %v283
      %305 = vmatprep.subr.mxu0 0.0
      %306 = vmatpush1.msra.mxu0 %v282
      %307 = vmatprep.subr.mxu0 0.0
      %308 = vmatpush1.msra.mxu0 %v281
      %309 = vmatprep.subr.mxu0 0.0
      %310 = vmatpush1.msra.mxu0 %v280
      %311 = vmatprep.subr.mxu0 0.0
      %312 = vmatpush1.msra.mxu0 %v279
      %313 = vmatprep.subr.mxu0 0.0
      %314 = vmatpush1.msra.mxu0 %v278
      %315 = vmatprep.subr.mxu0 0.0
      %316 = vmatpush1.msra.mxu0 %v277
      %317 = vmatprep.subr.mxu0 0.0
      %318 = vmatpush1.msra.mxu0 %v276
      %319 = vmatprep.subr.mxu0 0.0
      %320 = vmatpush1.msra.mxu0 %v275
      %321 = vmatprep.subr.mxu0 0.0
      %322 = vmatpush1.msra.mxu0 %v274
      %323 = vmatprep.subr.mxu0 0.0
      %324 = vmatpush1.msra.mxu0 %v273
      %325 = vmatprep.subr.mxu0 0.0
      %326 = vmatpush1.msra.mxu0 %v272
      %327 = vmatprep.subr.mxu0 0.0
      %328 = vmatpush1.msra.mxu0 %v271
      %329 = vmatprep.subr.mxu0 0.0
      %330 = vmatpush1.msra.mxu0 %v270
      %331 = vmatprep.subr.mxu0 0.0
      %332 = vmatpush1.msra.mxu0 %v269
      %333 = vmatprep.subr.mxu0 0.0
      %334 = vmatpush2.msra.mxu0 0.0
      %335 = vmatprep.subr.mxu0 0.0
      %336 = vmatpush2.msra.mxu0 0.0
      %337 = vmatprep.subr.mxu0 0.0
      %338 = vmatpush2.msra.mxu0 0.0
      %339 = vmatprep.subr.mxu0 0.0
      %340 = vmatpush2.msra.mxu0 0.0
      %341 = vmatprep.subr.mxu0 0.0
      %342 = vmatpush2.msra.mxu0 0.0
      %343 = vmatprep.subr.mxu0 0.0
      %344 = vmatpush2.msra.mxu0 0.0
      %345 = vmatprep.subr.mxu0 0.0
      %346 = vmatpush2.msra.mxu0 0.0
      %347 = vmatprep.subr.mxu0 0.0
      %348 = vmatpush2.msra.mxu0 0.0
      %349 = vmatprep.subr.mxu0 0.0
      %350 = vmatpush2.msra.mxu0 %v292
      %351 = vmatprep.subr.mxu0 0.0
      %352 = vmatpush2.msra.mxu0 %v291
      %353 = vmatprep.subr.mxu0 0.0
      %354 = vmatpush2.msra.mxu0 %v290
      %355 = vmatprep.subr.mxu0 0.0
      %356 = vmatpush2.msra.mxu0 %v289
      %357 = vmatprep.subr.mxu0 0.0
      %358 = vmatpush2.msra.mxu0 %v288
      %359 = vmatprep.subr.mxu0 0.0
      %360 = vmatpush2.msra.mxu0 %v287
      %361 = vmatprep.subr.mxu0 0.0
      %362 = vmatpush2.msra.mxu0 %v286
      %363 = vmatprep.subr.mxu0 0.0
      %364 = vmatpush2.msra.mxu0 %v285
      %365 = vmatprep.mubr.f32.mxu0 %v299
      %366 = vmatmul.mubr.f32.gmra.mxu0 %v295
      %v367 = vpop.f32.mrf.mxu0
      %v368 = vadd.f32 0.0, %v367
      %v369 = vpop.f32.mrf.mxu0
      %370 = vdwg.mxu0
      %v372 = vsel %vm298, %v241, 0
      %374 = vmatprep.subr.mxu0 0.0
      %375 = vmatpush1.msra.mxu0 %v257
      %376 = vmatprep.subr.mxu0 0.0
      %377 = vmatpush1.msra.mxu0 %v256
      %378 = vmatprep.subr.mxu0 0.0
      %379 = vmatpush1.msra.mxu0 %v255
      %380 = vmatprep.subr.mxu0 0.0
      %381 = vmatpush1.msra.mxu0 %v254
      %382 = vmatprep.subr.mxu0 0.0
      %383 = vmatpush1.msra.mxu0 %v253
      %384 = vmatprep.subr.mxu0 0.0
      %385 = vmatpush1.msra.mxu0 %v252
      %386 = vmatprep.subr.mxu0 0.0
      %387 = vmatpush1.msra.mxu0 %v251
      %388 = vmatprep.subr.mxu0 0.0
      %389 = vmatpush1.msra.mxu0 %v250
      %390 = vmatprep.subr.mxu0 0.0
      %391 = vmatpush1.msra.mxu0 %v249
      %392 = vmatprep.subr.mxu0 0.0
      %393 = vmatpush1.msra.mxu0 %v248
      %394 = vmatprep.subr.mxu0 0.0
      %395 = vmatpush1.msra.mxu0 %v247
      %396 = vmatprep.subr.mxu0 0.0
      %397 = vmatpush1.msra.mxu0 %v246
      %398 = vmatprep.subr.mxu0 0.0
      %399 = vmatpush1.msra.mxu0 %v245
      %400 = vmatprep.subr.mxu0 0.0
      %401 = vmatpush1.msra.mxu0 %v244
      %402 = vmatprep.subr.mxu0 0.0
      %403 = vmatpush1.msra.mxu0 %v243
      %404 = vmatprep.subr.mxu0 0.0
      %405 = vmatpush1.msra.mxu0 %v242
      %406 = vmatprep.subr.mxu0 0.0
      %407 = vmatpush2.msra.mxu0 0.0
      %408 = vmatprep.subr.mxu0 0.0
      %409 = vmatpush2.msra.mxu0 0.0
      %410 = vmatprep.subr.mxu0 0.0
      %411 = vmatpush2.msra.mxu0 0.0
      %412 = vmatprep.subr.mxu0 0.0
      %413 = vmatpush2.msra.mxu0 0.0
      %414 = vmatprep.subr.mxu0 0.0
      %415 = vmatpush2.msra.mxu0 0.0
      %416 = vmatprep.subr.mxu0 0.0
      %417 = vmatpush2.msra.mxu0 0.0
      %418 = vmatprep.subr.mxu0 0.0
      %419 = vmatpush2.msra.mxu0 0.0
      %420 = vmatprep.subr.mxu0 0.0
      %421 = vmatpush2.msra.mxu0 0.0
      %422 = vmatprep.subr.mxu0 0.0
      %423 = vmatpush2.msra.mxu0 %v265
      %424 = vmatprep.subr.mxu0 0.0
      %425 = vmatpush2.msra.mxu0 %v264
      %426 = vmatprep.subr.mxu0 0.0
      %427 = vmatpush2.msra.mxu0 %v263
      %428 = vmatprep.subr.mxu0 0.0
      %429 = vmatpush2.msra.mxu0 %v262
      %430 = vmatprep.subr.mxu0 0.0
      %431 = vmatpush2.msra.mxu0 %v261
      %432 = vmatprep.subr.mxu0 0.0
      %433 = vmatpush2.msra.mxu0 %v260
      %434 = vmatprep.subr.mxu0 0.0
      %435 = vmatpush2.msra.mxu0 %v259
      %436 = vmatprep.subr.mxu0 0.0
      %437 = vmatpush2.msra.mxu0 %v258
      %438 = vmatprep.mubr.f32.mxu0 %v372
      %439 = vmatmul.mubr.f32.gmra.mxu0 %v240
      %v440 = vpop.f32.mrf.mxu0
      %v441 = vadd.f32 %v368, %v440
      %v442 = vpop.f32.mrf.mxu0
      %443 = vdwg.mxu0
      %v444 = vld [vmem:[%s231] sm:$0x3c]
      %v445 = vld [vmem:[%s231 + $0x8] sm:$0x3c]
      %s446 = scalar_lea.vmem %s1, 384
      %v447 = vld [vmem:[%s446] sm:$0xff]
      %v448 = vld [vmem:[%s446 + $0x8] sm:$0xff]
      %v449 = vld [vmem:[%s446 + $0x10] sm:$0xff]
      %v450 = vld [vmem:[%s446 + $0x18] sm:$0xff]
      %v451 = vld [vmem:[%s446 + $0x20] sm:$0xff]
      %v452 = vld [vmem:[%s446 + $0x28] sm:$0xff]
      %v453 = vld [vmem:[%s446 + $0x30] sm:$0xff]
      %v454 = vld [vmem:[%s446 + $0x38] sm:$0xff]
      %v455 = vld [vmem:[%s446 + $0x40] sm:$0xff]
      %v456 = vld [vmem:[%s446 + $0x48] sm:$0xff]
      %v457 = vld [vmem:[%s446 + $0x50] sm:$0xff]
      %v458 = vld [vmem:[%s446 + $0x58] sm:$0xff]
      %v459 = vld [vmem:[%s446 + $0x60] sm:$0xff]
      %v460 = vld [vmem:[%s446 + $0x68] sm:$0xff]
      %v461 = vld [vmem:[%s446 + $0x70] sm:$0xff]
      %v462 = vld [vmem:[%s446 + $0x78] sm:$0xff]
      %v463 = vld [vmem:[%s446 + $0x80] sm:$0xff]
      %v464 = vld [vmem:[%s446 + $0x88] sm:$0xff]
      %v465 = vld [vmem:[%s446 + $0x90] sm:$0xff]
      %v466 = vld [vmem:[%s446 + $0x98] sm:$0xff]
      %v467 = vld [vmem:[%s446 + $0xa0] sm:$0xff]
      %v468 = vld [vmem:[%s446 + $0xa8] sm:$0xff]
      %v469 = vld [vmem:[%s446 + $0xb0] sm:$0xff]
      %v470 = vld [vmem:[%s446 + $0xb8] sm:$0xff]
      %v473 = vrot.slane %v444, 2
      %v474 = vrot.slane %v445, 2
      %v476 = vsel %vm298, %v474, 0
      %478 = vmatprep.subr.mxu0 0.0
      %479 = vmatpush1.msra.mxu0 %v462
      %480 = vmatprep.subr.mxu0 0.0
      %481 = vmatpush1.msra.mxu0 %v461
      %482 = vmatprep.subr.mxu0 0.0
      %483 = vmatpush1.msra.mxu0 %v460
      %484 = vmatprep.subr.mxu0 0.0
      %485 = vmatpush1.msra.mxu0 %v459
      %486 = vmatprep.subr.mxu0 0.0
      %487 = vmatpush1.msra.mxu0 %v458
      %488 = vmatprep.subr.mxu0 0.0
      %489 = vmatpush1.msra.mxu0 %v457
      %490 = vmatprep.subr.mxu0 0.0
      %491 = vmatpush1.msra.mxu0 %v456
      %492 = vmatprep.subr.mxu0 0.0
      %493 = vmatpush1.msra.mxu0 %v455
      %494 = vmatprep.subr.mxu0 0.0
      %495 = vmatpush1.msra.mxu0 %v454
      %496 = vmatprep.subr.mxu0 0.0
      %497 = vmatpush1.msra.mxu0 %v453
      %498 = vmatprep.subr.mxu0 0.0
      %499 = vmatpush1.msra.mxu0 %v452
      %500 = vmatprep.subr.mxu0 0.0
      %501 = vmatpush1.msra.mxu0 %v451
      %502 = vmatprep.subr.mxu0 0.0
      %503 = vmatpush1.msra.mxu0 %v450
      %504 = vmatprep.subr.mxu0 0.0
      %505 = vmatpush1.msra.mxu0 %v449
      %506 = vmatprep.subr.mxu0 0.0
      %507 = vmatpush1.msra.mxu0 %v448
      %508 = vmatprep.subr.mxu0 0.0
      %509 = vmatpush1.msra.mxu0 %v447
      %510 = vmatprep.subr.mxu0 0.0
      %511 = vmatpush2.msra.mxu0 0.0
      %512 = vmatprep.subr.mxu0 0.0
      %513 = vmatpush2.msra.mxu0 0.0
      %514 = vmatprep.subr.mxu0 0.0
      %515 = vmatpush2.msra.mxu0 0.0
      %516 = vmatprep.subr.mxu0 0.0
      %517 = vmatpush2.msra.mxu0 0.0
      %518 = vmatprep.subr.mxu0 0.0
      %519 = vmatpush2.msra.mxu0 0.0
      %520 = vmatprep.subr.mxu0 0.0
      %521 = vmatpush2.msra.mxu0 0.0
      %522 = vmatprep.subr.mxu0 0.0
      %523 = vmatpush2.msra.mxu0 0.0
      %524 = vmatprep.subr.mxu0 0.0
      %525 = vmatpush2.msra.mxu0 0.0
      %526 = vmatprep.subr.mxu0 0.0
      %527 = vmatpush2.msra.mxu0 %v470
      %528 = vmatprep.subr.mxu0 0.0
      %529 = vmatpush2.msra.mxu0 %v469
      %530 = vmatprep.subr.mxu0 0.0
      %531 = vmatpush2.msra.mxu0 %v468
      %532 = vmatprep.subr.mxu0 0.0
      %533 = vmatpush2.msra.mxu0 %v467
      %534 = vmatprep.subr.mxu0 0.0
      %535 = vmatpush2.msra.mxu0 %v466
      %536 = vmatprep.subr.mxu0 0.0
      %537 = vmatpush2.msra.mxu0 %v465
      %538 = vmatprep.subr.mxu0 0.0
      %539 = vmatpush2.msra.mxu0 %v464
      %540 = vmatprep.subr.mxu0 0.0
      %541 = vmatpush2.msra.mxu0 %v463
      %542 = vmatprep.mubr.f32.mxu0 %v476
      %543 = vmatmul.mubr.f32.gmra.mxu0 %v473
      %v544 = vpop.f32.mrf.mxu0
      %v545 = vadd.f32 0.0, %v544
      %v546 = vpop.f32.mrf.mxu0
      %547 = vdwg.mxu0
      %v548 = vadd.f32 %v441, %v545
      %v549 = vld [vmem:[%s2] sm:$0x1]
      %v551 = vlaneseq
      %v552 = vshrl.u32 %v551, 7
      %v553 = vsub.s32 0, %v552
      %v554 = vrot.slane %v549, %v553
      %v556 = vadd.f32 %v548, %v554
      %v557 = vld [vmem:[%s3] sm:$0xff]
      %v558 = vld [vmem:[%s3 + $0x8] sm:$0xff]
      %v559 = vld [vmem:[%s3 + $0x10] sm:$0xff]
      %v560 = vld [vmem:[%s3 + $0x18] sm:$0xff]
      %v561 = vld [vmem:[%s3 + $0x20] sm:$0xff]
      %v562 = vld [vmem:[%s3 + $0x28] sm:$0xff]
      %v563 = vld [vmem:[%s3 + $0x30] sm:$0xff]
      %v564 = vld [vmem:[%s3 + $0x38] sm:$0xff]
      %v565 = vld [vmem:[%s3 + $0x40] sm:$0xff]
      %v566 = vld [vmem:[%s3 + $0x48] sm:$0xff]
      %v567 = vld [vmem:[%s3 + $0x50] sm:$0xff]
      %v568 = vld [vmem:[%s3 + $0x58] sm:$0xff]
      %v569 = vld [vmem:[%s3 + $0x60] sm:$0xff]
      %v570 = vld [vmem:[%s3 + $0x68] sm:$0xff]
      %v571 = vld [vmem:[%s3 + $0x70] sm:$0xff]
      %v572 = vld [vmem:[%s3 + $0x78] sm:$0xff]
      %573 = vmatprep.subr.mxu0 0.0
      %574 = vmatpush1.msra.mxu0 %v572
      %575 = vmatprep.subr.mxu0 0.0
      %576 = vmatpush1.msra.mxu0 %v571
      %577 = vmatprep.subr.mxu0 0.0
      %578 = vmatpush1.msra.mxu0 %v570
      %579 = vmatprep.subr.mxu0 0.0
      %580 = vmatpush1.msra.mxu0 %v569
      %581 = vmatprep.subr.mxu0 0.0
      %582 = vmatpush1.msra.mxu0 %v568
      %583 = vmatprep.subr.mxu0 0.0
      %584 = vmatpush1.msra.mxu0 %v567
      %585 = vmatprep.subr.mxu0 0.0
      %586 = vmatpush1.msra.mxu0 %v566
      %587 = vmatprep.subr.mxu0 0.0
      %588 = vmatpush1.msra.mxu0 %v565
      %589 = vmatprep.subr.mxu0 0.0
      %590 = vmatpush1.msra.mxu0 %v564
      %591 = vmatprep.subr.mxu0 0.0
      %592 = vmatpush1.msra.mxu0 %v563
      %593 = vmatprep.subr.mxu0 0.0
      %594 = vmatpush1.msra.mxu0 %v562
      %595 = vmatprep.subr.mxu0 0.0
      %596 = vmatpush1.msra.mxu0 %v561
      %597 = vmatprep.subr.mxu0 0.0
      %598 = vmatpush1.msra.mxu0 %v560
      %599 = vmatprep.subr.mxu0 0.0
      %600 = vmatpush1.msra.mxu0 %v559
      %601 = vmatprep.subr.mxu0 0.0
      %602 = vmatpush1.msra.mxu0 %v558
      %603 = vmatprep.subr.mxu0 0.0
      %604 = vmatpush1.msra.mxu0 %v557
      %605 = vmatprep.subr.mxu0 0.0
      %606 = vmatpush2.msra.mxu0 0.0
      %607 = vmatprep.subr.mxu0 0.0
      %608 = vmatpush2.msra.mxu0 0.0
      %609 = vmatprep.subr.mxu0 0.0
      %610 = vmatpush2.msra.mxu0 0.0
      %611 = vmatprep.subr.mxu0 0.0
      %612 = vmatpush2.msra.mxu0 0.0
      %613 = vmatprep.subr.mxu0 0.0
      %614 = vmatpush2.msra.mxu0 0.0
      %615 = vmatprep.subr.mxu0 0.0
      %616 = vmatpush2.msra.mxu0 0.0
      %617 = vmatprep.subr.mxu0 0.0
      %618 = vmatpush2.msra.mxu0 0.0
      %619 = vmatprep.subr.mxu0 0.0
      %620 = vmatpush2.msra.mxu0 0.0
      %621 = vmatprep.subr.mxu0 0.0
      %622 = vmatpush2.msra.mxu0 0.0
      %623 = vmatprep.subr.mxu0 0.0
      %624 = vmatpush2.msra.mxu0 0.0
      %625 = vmatprep.subr.mxu0 0.0
      %626 = vmatpush2.msra.mxu0 0.0
      %627 = vmatprep.subr.mxu0 0.0
      %628 = vmatpush2.msra.mxu0 0.0
      %629 = vmatprep.subr.mxu0 0.0
      %630 = vmatpush2.msra.mxu0 0.0
      %631 = vmatprep.subr.mxu0 0.0
      %632 = vmatpush2.msra.mxu0 0.0
      %633 = vmatprep.subr.mxu0 0.0
      %634 = vmatpush2.msra.mxu0 0.0
      %635 = vmatprep.subr.mxu0 0.0
      %636 = vmatpush2.msra.mxu0 0.0
      %637 = vmatprep.mubr.f32.mxu0 0.0
      %638 = vmatmul.mubr.f32.gmra.mxu0 %v556
      %v639 = vpop.f32.mrf.mxu0
      %v640 = vadd.f32 0.0, %v639
      %v641 = vpop.f32.mrf.mxu0
      %642 = vdwg.mxu0
      %v643 = vmul.f32 %v556, %v556
      %644 = vmatprep.subr.mxu0 0.0
      %645 = vmatpush1.msra.mxu0 %v572
      %646 = vmatprep.subr.mxu0 0.0
      %647 = vmatpush1.msra.mxu0 %v571
      %648 = vmatprep.subr.mxu0 0.0
      %649 = vmatpush1.msra.mxu0 %v570
      %650 = vmatprep.subr.mxu0 0.0
      %651 = vmatpush1.msra.mxu0 %v569
      %652 = vmatprep.subr.mxu0 0.0
      %653 = vmatpush1.msra.mxu0 %v568
      %654 = vmatprep.subr.mxu0 0.0
      %655 = vmatpush1.msra.mxu0 %v567
      %656 = vmatprep.subr.mxu0 0.0
      %657 = vmatpush1.msra.mxu0 %v566
      %658 = vmatprep.subr.mxu0 0.0
      %659 = vmatpush1.msra.mxu0 %v565
      %660 = vmatprep.subr.mxu0 0.0
      %661 = vmatpush1.msra.mxu0 %v564
      %662 = vmatprep.subr.mxu0 0.0
      %663 = vmatpush1.msra.mxu0 %v563
      %664 = vmatprep.subr.mxu0 0.0
      %665 = vmatpush1.msra.mxu0 %v562
      %666 = vmatprep.subr.mxu0 0.0
      %667 = vmatpush1.msra.mxu0 %v561
      %668 = vmatprep.subr.mxu0 0.0
      %669 = vmatpush1.msra.mxu0 %v560
      %670 = vmatprep.subr.mxu0 0.0
      %671 = vmatpush1.msra.mxu0 %v559
      %672 = vmatprep.subr.mxu0 0.0
      %673 = vmatpush1.msra.mxu0 %v558
      %674 = vmatprep.subr.mxu0 0.0
      %675 = vmatpush1.msra.mxu0 %v557
      %676 = vmatprep.subr.mxu0 0.0
      %677 = vmatpush2.msra.mxu0 0.0
      %678 = vmatprep.subr.mxu0 0.0
      %679 = vmatpush2.msra.mxu0 0.0
      %680 = vmatprep.subr.mxu0 0.0
      %681 = vmatpush2.msra.mxu0 0.0
      %682 = vmatprep.subr.mxu0 0.0
      %683 = vmatpush2.msra.mxu0 0.0
      %684 = vmatprep.subr.mxu0 0.0
      %685 = vmatpush2.msra.mxu0 0.0
      %686 = vmatprep.subr.mxu0 0.0
      %687 = vmatpush2.msra.mxu0 0.0
      %688 = vmatprep.subr.mxu0 0.0
      %689 = vmatpush2.msra.mxu0 0.0
      %690 = vmatprep.subr.mxu0 0.0
      %691 = vmatpush2.msra.mxu0 0.0
      %692 = vmatprep.subr.mxu0 0.0
      %693 = vmatpush2.msra.mxu0 0.0
      %694 = vmatprep.subr.mxu0 0.0
      %695 = vmatpush2.msra.mxu0 0.0
      %696 = vmatprep.subr.mxu0 0.0
      %697 = vmatpush2.msra.mxu0 0.0
      %698 = vmatprep.subr.mxu0 0.0
      %699 = vmatpush2.msra.mxu0 0.0
      %700 = vmatprep.subr.mxu0 0.0
      %701 = vmatpush2.msra.mxu0 0.0
      %702 = vmatprep.subr.mxu0 0.0
      %703 = vmatpush2.msra.mxu0 0.0
      %704 = vmatprep.subr.mxu0 0.0
      %705 = vmatpush2.msra.mxu0 0.0
      %706 = vmatprep.subr.mxu0 0.0
      %707 = vmatpush2.msra.mxu0 0.0
      %708 = vmatprep.mubr.f32.mxu0 0.0
      %709 = vmatmul.mubr.f32.gmra.mxu0 %v643
      %v710 = vpop.f32.mrf.mxu0
      %v711 = vadd.f32 0.0, %v710
      %v712 = vpop.f32.mrf.mxu0
      %713 = vdwg.mxu0
      %vm714 = vcmask 1043456
      %v715 = vsel %vm714, %v640, 0.0
      %v716 = vrot.slane %v715, 4
      %v717 = vadd.f32 %v715, %v716
      %v718 = vrot.slane %v717, 2
      %v719 = vadd.f32 %v717, %v718
      %v720 = vrot.slane %v719, 1
      %v721 = vadd.f32 %v719, %v720
      %v722 = vsel %vm714, %v711, 0.0
      %v723 = vrot.slane %v722, 4
      %v724 = vadd.f32 %v722, %v723
      %v725 = vrot.slane %v724, 2
      %v726 = vadd.f32 %v724, %v725
      %v727 = vrot.slane %v726, 1
      %v728 = vadd.f32 %v726, %v727
      %v729 = vmul.f32 %v721, %v721
      %v730 = vsub.f32 %v728, %v729
      %v731 = vsub.f32 %v556, %v721
      %v732 = vadd.f32 %v730, 1e-05
      %v733 = vrsqrt.pop %v732
      %v734 = vmul.f32 %v731, %v733
      %v735 = vld [vmem:[%s235] sm:$0xf]
      %v736 = vadd.f32 %v734, %v735
      %737 = vst [vmem:[%s239] sm:$0xf] %v736
      %p738 = scmp.lt.s32.totalorder %s16, 1
      %s739 = scalar_select %p738, %s16, 1
      %s740 = smul.addr %s739, 4
      %s741 = scalar_lea.vmem %s5, %s740
      // Predicated region
      $region41: #{resnet_discriminator_forward.13} parent=39 // pred_check
        %p742 = pneg %p149
      $region42: #{resnet_discriminator_forward.13} parent=39 // pred_check_branch
        %744 = sbr.rel (%p742) target = $region44
      $region43: #{resnet_discriminator_forward.13} parent=39 // pred_region
        _
      $region44: #{resnet_discriminator_forward.13} parent=39 // pred_fallthru
        _
    $region40: #{resnet_discriminator_forward.13} parent=5 // pred_fallthru
      _
    %p745 = scmp.le.s32.totalorder 2, %s11
    // Predicated region
    $region45: #{resnet_discriminator_forward.13} parent=5 // pred_check
      %p746 = pneg %p745
    $region46: #{resnet_discriminator_forward.13} parent=5 // pred_check_branch
      %748 = sbr.rel (%p746) target = $region48
    $region47: #{resnet_discriminator_forward.13} parent=5 // pred_region
      %s749 = ssub.s32 %s11, 2
      // Predicated region
      $region49: #{resnet_discriminator_forward.13} parent=47 // pred_check
        %p750 = pneg %p155
      $region50: #{resnet_discriminator_forward.13} parent=47 // pred_check_branch
        %752 = sbr.rel (%p750) target = $region52
      $region51: #{resnet_discriminator_forward.13} parent=47 // pred_region
        %p753 = scmp.lt.s32.totalorder %s17, 1
        %s754 = scalar_select %p753, %s17, 1
        %s755 = smul.addr %s754, 4
        %s756 = scalar_lea.vmem %s5, %s755
      $region52: #{resnet_discriminator_forward.13} parent=47 // pred_fallthru
        _
    $region48: #{resnet_discriminator_forward.13} parent=5 // pred_fallthru
      _
  $region6: #{resnet_discriminator_forward.13} parent=0 // loop_footer
    %s15 = sadd.s32 1, %s11
  $region7: #{resnet_discriminator_forward.13} parent=0 // loop_footer_branch
    %10 = sbr.rel target = $region3
  $region8: #{resnet_discriminator_forward.13} parent=0 // loop_exit
    _

// kernel: resnet_discriminator_forward.17
$region0: #{resnet_discriminator_forward.17}
  #allocation0 [shape = 'u32[]', space=smem, size = 0x4, offset = 0x4, fixed_abs, tag = 'smem constant byte address 0x4 - core index']
  #allocation1 [shape = 'u32[144,128]{1,0:T(1,128)}', space=vmem, size = 0x12000, scoped, tag = 'internal scratch']
  %s0 = inlined_call_operand.vmem [shape: f32[2,6,192], index: 0, kind: input, shape index: {}]
  %s1 = inlined_call_operand.vmem [shape: f32[3,192,128], index: 1, kind: input, shape index: {}]
  %s2 = inlined_call_operand.vmem [shape: f32[1,128], index: 2, kind: input, shape index: {}]
  %s3 = inlined_call_operand.vmem [shape: f32[128,128], index: 3, kind: input, shape index: {}]
  %s4 = inlined_call_operand.vmem [shape: f32[2,4,128], index: 4, kind: input, shape index: {}]
  %s5 = inlined_call_operand.vmem [shape: f32[2,4,128], index: 5, kind: output, shape index: {}]
  %s6 = sld [smem:[#allocation0]]
  $region53: #{resnet_discriminator_forward.17} parent=0
    _
  %s8 = ssub.s32 1, %s6
  %s9 = scalar_select 0, %s8, %s6
  loop: start=0, step=1, limit=4
  $region2: #{resnet_discriminator_forward.17} parent=0 // loop_pre_header
    _
  $region3: #{resnet_discriminator_forward.17} parent=0 // loop_header
    %s11 = sphi 0, %s15
    %p12 = scmp.ge.s32.totalorder %s11, 4
    %s21 = sphi 0, %s23
    %s24 = sphi 0, %s21
    %s25 = sphi 0, %s24
    %s41 = sphi 0, %s25
    %s45 = sphi 0, %s45
    %s47 = sphi 0, %s45
    %s48 = sphi 0, %s47
    %s62 = sphi 0, %s48
    %s66 = sphi 0, %s66
    %s68 = sphi 0, %s66
    %s69 = sphi 0, %s68
    %s83 = sphi 0, %s69
    %s87 = sphi 0, %s87
    %s89 = sphi 0, %s87
    %s90 = sphi 0, %s89
    %s104 = sphi 0, %s90
    %s110 = sphi 0, %s112
    %s113 = sphi 0, %s110
    %s114 = sphi 0, %s113
    %s130 = sphi 0, %s114
    %s136 = sphi 0, %s138
    %s139 = sphi 0, %s136
    %s140 = sphi 0, %s139
    %s156 = sphi 0, %s140
  $region4: #{resnet_discriminator_forward.17} parent=0 // loop_header_branch
    %14 = sbr.rel (%p12) target = $region8
  $region5: #{resnet_discriminator_forward.17} parent=0 // loop_body
    %s16 = ssub.s32 %s11, 1
    %s17 = ssub.s32 %s11, 2
    %s18 = sadd.s32 %s11, 1
    %s19 = ssub.s32 %s11, %s18
    %p20 = scmp.eq.s32.totalorder %s19, 0
    %s22 = sadd.s32 %s21, 1
    %s23 = scalar_select %p20, %s21, %s22
    %p26 = pneg %p20
    %p27 = scmp.eq.s32.totalorder %s11, 1
    %p28 = por %p26, %p27
    %p29 = scmp.ne.s32.totalorder %s21, %s24
    %p30 = scmp.eq.s32.totalorder %s11, 0
    %p31 = por %p29, %p30
    %p32 = scmp.ne.s32.totalorder %s21, %s24
    %p33 = scmp.eq.s32.totalorder %s16, 1
    %p34 = por %p32, %p33
    %p35 = scmp.ne.s32.totalorder %s24, %s25
    %p36 = scmp.eq.s32.totalorder %s16, 0
    %p37 = por %p35, %p36
    %p38 = scmp.ne.s32.totalorder %s24, %s25
    %p39 = scmp.eq.s32.totalorder %s17, 1
    %p40 = por %p38, %p39
    %p42 = scmp.ne.s32.totalorder %s25, %s41
    %p43 = scmp.eq.s32.totalorder %s17, 0
    %p44 = por %p42, %p43
    %s46 = sadd.s32 %s45, 1
    %p49 = scmp.eq.s32.totalorder %s11, 1
    %p50 = scmp.ne.s32.totalorder %s45, %s47
    %p51 = scmp.eq.s32.totalorder %s11, 0
    %p52 = por %p50, %p51
    %p53 = scmp.ne.s32.totalorder %s45, %s47
    %p54 = scmp.eq.s32.totalorder %s16, 1
    %p55 = por %p53, %p54
    %p56 = scmp.ne.s32.totalorder %s47, %s48
    %p57 = scmp.eq.s32.totalorder %s16, 0
    %p58 = por %p56, %p57
    %p59 = scmp.ne.s32.totalorder %s47, %s48
    %p60 = scmp.eq.s32.totalorder %s17, 1
    %p61 = por %p59, %p60
    %p63 = scmp.ne.s32.totalorder %s48, %s62
    %p64 = scmp.eq.s32.totalorder %s17, 0
    %p65 = por %p63, %p64
    %s67 = sadd.s32 %s66, 1
    %p70 = scmp.eq.s32.totalorder %s11, 1
    %p71 = scmp.ne.s32.totalorder %s66, %s68
    %p72 = scmp.eq.s32.totalorder %s11, 0
    %p73 = por %p71, %p72
    %p74 = scmp.ne.s32.totalorder %s66, %s68
    %p75 = scmp.eq.s32.totalorder %s16, 1
    %p76 = por %p74, %p75
    %p77 = scmp.ne.s32.totalorder %s68, %s69
    %p78 = scmp.eq.s32.totalorder %s16, 0
    %p79 = por %p77, %p78
    %p80 = scmp.ne.s32.totalorder %s68, %s69
    %p81 = scmp.eq.s32.totalorder %s17, 1
    %p82 = por %p80, %p81
    %p84 = scmp.ne.s32.totalorder %s69, %s83
    %p85 = scmp.eq.s32.totalorder %s17, 0
    %p86 = por %p84, %p85
    %s88 = sadd.s32 %s87, 1
    %p91 = scmp.eq.s32.totalorder %s11, 1
    %p92 = scmp.ne.s32.totalorder %s87, %s89
    %p93 = scmp.eq.s32.totalorder %s11, 0
    %p94 = por %p92, %p93
    %p95 = scmp.ne.s32.totalorder %s87, %s89
    %p96 = scmp.eq.s32.totalorder %s16, 1
    %p97 = por %p95, %p96
    %p98 = scmp.ne.s32.totalorder %s89, %s90
    %p99 = scmp.eq.s32.totalorder %s16, 0
    %p100 = por %p98, %p99
    %p101 = scmp.ne.s32.totalorder %s89, %s90
    %p102 = scmp.eq.s32.totalorder %s17, 1
    %p103 = por %p101, %p102
    %p105 = scmp.ne.s32.totalorder %s90, %s104
    %p106 = scmp.eq.s32.totalorder %s17, 0
    %p107 = por %p105, %p106
    %s108 = ssub.s32 %s11, %s18
    %p109 = scmp.eq.s32.totalorder %s108, 0
    %s111 = sadd.s32 %s110, 1
    %s112 = scalar_select %p109, %s110, %s111
    %p115 = pneg %p109
    %p116 = scmp.eq.s32.totalorder %s11, 1
    %p117 = por %p115, %p116
    %p118 = scmp.ne.s32.totalorder %s110, %s113
    %p119 = scmp.eq.s32.totalorder %s11, 0
    %p120 = por %p118, %p119
    %p121 = scmp.ne.s32.totalorder %s110, %s113
    %p122 = scmp.eq.s32.totalorder %s16, 1
    %p123 = por %p121, %p122
    %p124 = scmp.ne.s32.totalorder %s113, %s114
    %p125 = scmp.eq.s32.totalorder %s16, 0
    %p126 = por %p124, %p125
    %p127 = scmp.ne.s32.totalorder %s113, %s114
    %p128 = scmp.eq.s32.totalorder %s17, 1
    %p129 = por %p127, %p128
    %p131 = scmp.ne.s32.totalorder %s114, %s130
    %p132 = scmp.eq.s32.totalorder %s17, 0
    %p133 = por %p131, %p132
    %s134 = ssub.s32 %s11, %s18
    %p135 = scmp.eq.s32.totalorder %s134, 0
    %s137 = sadd.s32 %s136, 1
    %s138 = scalar_select %p135, %s136, %s137
    %p141 = pneg %p135
    %p142 = scmp.eq.s32.totalorder %s11, 1
    %p143 = por %p141, %p142
    %p144 = scmp.ne.s32.totalorder %s136, %s139
    %p145 = scmp.eq.s32.totalorder %s11, 0
    %p146 = por %p144, %p145
    %p147 = scmp.ne.s32.totalorder %s136, %s139
    %p148 = scmp.eq.s32.totalorder %s16, 1
    %p149 = por %p147, %p148
    %p150 = scmp.ne.s32.totalorder %s139, %s140
    %p151 = scmp.eq.s32.totalorder %s16, 0
    %p152 = por %p150, %p151
    %p153 = scmp.ne.s32.totalorder %s139, %s140
    %p154 = scmp.eq.s32.totalorder %s17, 1
    %p155 = por %p153, %p154
    %p157 = scmp.ne.s32.totalorder %s140, %s156
    %p158 = scmp.eq.s32.totalorder %s17, 0
    %p159 = por %p157, %p158
    %p160 = scmp.le.s32.totalorder 1, %s11
    %p161 = scmp.lt.s32.totalorder %s11, 3
    %p162 = pnand %p160, %p161
    %p163 = pneg %p162
    // Predicated region
    $region9: #{resnet_discriminator_forward.17} parent=5 // pred_check
      _
    $region10: #{resnet_discriminator_forward.17} parent=5 // pred_check_branch
      %165 = sbr.rel (%p162) target = $region12
    $region11: #{resnet_discriminator_forward.17} parent=5 // pred_region
      %s166 = ssub.s32 %s11, 1
      // Predicated region
      $region13: #{resnet_discriminator_forward.17} parent=11 // pred_check
        %p167 = pneg %p58
      $region14: #{resnet_discriminator_forward.17} parent=11 // pred_check_branch
        %169 = sbr.rel (%p167) target = $region16
      $region15: #{resnet_discriminator_forward.17} parent=11 // pred_region
        _
      $region16: #{resnet_discriminator_forward.17} parent=11 // pred_fallthru
        _
      // Predicated region
      $region17: #{resnet_discriminator_forward.17} parent=11 // pred_check
        %p170 = pneg %p79
      $region18: #{resnet_discriminator_forward.17} parent=11 // pred_check_branch
        %172 = sbr.rel (%p170) target = $region20
      $region19: #{resnet_discriminator_forward.17} parent=11 // pred_region
        _
      $region20: #{resnet_discriminator_forward.17} parent=11 // pred_fallthru
        _
      // Predicated region
      $region21: #{resnet_discriminator_forward.17} parent=11 // pred_check
        %p173 = pneg %p100
      $region22: #{resnet_discriminator_forward.17} parent=11 // pred_check_branch
        %175 = sbr.rel (%p173) target = $region24
      $region23: #{resnet_discriminator_forward.17} parent=11 // pred_region
        _
      $region24: #{resnet_discriminator_forward.17} parent=11 // pred_fallthru
        _
    $region12: #{resnet_discriminator_forward.17} parent=5 // pred_fallthru
      _
    %p176 = scmp.lt.s32.totalorder %s11, 2
    // Predicated region
    $region25: #{resnet_discriminator_forward.17} parent=5 // pred_check
      %p177 = pneg %p176
    $region26: #{resnet_discriminator_forward.17} parent=5 // pred_check_branch
      %179 = sbr.rel (%p177) target = $region28
    $region27: #{resnet_discriminator_forward.17} parent=5 // pred_region
      // Predicated region
      $region29: #{resnet_discriminator_forward.17} parent=27 // pred_check
        %p180 = pneg %p31
      $region30: #{resnet_discriminator_forward.17} parent=27 // pred_check_branch
        %182 = sbr.rel (%p180) target = $region32
      $region31: #{resnet_discriminator_forward.17} parent=27 // pred_region
        %p183 = scmp.lt.s32.totalorder %s11, 1
        %s184 = scalar_select %p183, %s11, 1
        %s185 = smul.addr %s184, 2
        %s186 = smul.addr %s185, 8
        %s187 = scalar_lea.vmem %s0, %s186
      $region32: #{resnet_discriminator_forward.17} parent=27 // pred_fallthru
        _
      // Predicated region
      $region33: #{resnet_discriminator_forward.17} parent=27 // pred_check
        %p188 = pneg %p120
      $region34: #{resnet_discriminator_forward.17} parent=27 // pred_check_branch
        %190 = sbr.rel (%p188) target = $region36
      $region35: #{resnet_discriminator_forward.17} parent=27 // pred_region
        %p191 = scmp.lt.s32.totalorder %s11, 1
        %s192 = scalar_select %p191, %s11, 1
        %s193 = smul.addr %s192, 4
        %s194 = scalar_lea.vmem %s4, %s193
      $region36: #{resnet_discriminator_forward.17} parent=27 // pred_fallthru
        _
    $region28: #{resnet_discriminator_forward.17} parent=5 // pred_fallthru
      _
    %p195 = scmp.le.s32.totalorder 1, %s11
    %p196 = scmp.lt.s32.totalorder %s11, 3
    %p197 = pnand %p195, %p196
    %p198 = pneg %p197
    // Predicated region
    $region37: #{resnet_discriminator_forward.17} parent=5 // pred_check
      _
    $region38: #{resnet_discriminator_forward.17} parent=5 // pred_check_branch
      %200 = sbr.rel (%p197) target = $region40
    $region39: #{resnet_discriminator_forward.17} parent=5 // pred_region
      %s201 = ssub.s32 %s11, 1
      %p202 = scmp.lt.s32.totalorder %s16, 1
      %s203 = scalar_select %p202, %s16, 1
      %s204 = smul.addr %s203, 2
      %s205 = smul.addr %s204, 8
      %s206 = scalar_lea.vmem %s0, %s205
      %p207 = pneg %p37
      %p208 = pneg %p34
      %p209 = pneg %p58
      %p210 = pneg %p55
      %p211 = pneg %p79
      %p212 = pneg %p76
      %p213 = pneg %p100
      %p214 = pneg %p97
      %p215 = scmp.lt.s32.totalorder %s16, 1
      %s216 = scalar_select %p215, %s16, 1
      %s217 = smul.addr %s216, 4
      %s218 = scalar_lea.vmem %s4, %s217
      %p219 = pneg %p126
      %p220 = pneg %p123
      %p221 = pneg %p152
      %p222 = pneg %p149
      %p223 = scmp.lt.s32.totalorder %s16, 1
      %s224 = scalar_select %p223, %s16, 1
      %s225 = smul.addr %s224, 4
      %s226 = scalar_lea.vmem %s5, %s225
      %p227 = scmp.lt.s32.totalorder %s16, 1
      %s228 = scalar_select %p227, %s16, 1
      %s229 = smul.addr %s228, 2
      %s230 = smul.addr %s229, 8
      %s231 = scalar_lea.vmem %s0, %s230
      %p232 = scmp.lt.s32.totalorder %s16, 1
      %s233 = scalar_select %p232, %s16, 1
      %s234 = smul.addr %s233, 4
      %s235 = scalar_lea.vmem %s4, %s234
      %p236 = scmp.lt.s32.totalorder %s16, 1
      %s237 = scalar_select %p236, %s16, 1
      %s238 = smul.addr %s237, 4
      %s239 = scalar_lea.vmem %s5, %s238
      %v240 = vld [vmem:[%s231] sm:$0xf]
      %v241 = vld [vmem:[%s231 + $0x8] sm:$0xf]
      %v242 = vld [vmem:[%s1] sm:$0xff]
      %v243 = vld [vmem:[%s1 + $0x8] sm:$0xff]
      %v244 = vld [vmem:[%s1 + $0x10] sm:$0xff]
      %v245 = vld [vmem:[%s1 + $0x18] sm:$0xff]
      %v246 = vld [vmem:[%s1 + $0x20] sm:$0xff]
      %v247 = vld [vmem:[%s1 + $0x28] sm:$0xff]
      %v248 = vld [vmem:[%s1 + $0x30] sm:$0xff]
      %v249 = vld [vmem:[%s1 + $0x38] sm:$0xff]
      %v250 = vld [vmem:[%s1 + $0x40] sm:$0xff]
      %v251 = vld [vmem:[%s1 + $0x48] sm:$0xff]
      %v252 = vld [vmem:[%s1 + $0x50] sm:$0xff]
      %v253 = vld [vmem:[%s1 + $0x58] sm:$0xff]
      %v254 = vld [vmem:[%s1 + $0x60] sm:$0xff]
      %v255 = vld [vmem:[%s1 + $0x68] sm:$0xff]
      %v256 = vld [vmem:[%s1 + $0x70] sm:$0xff]
      %v257 = vld [vmem:[%s1 + $0x78] sm:$0xff]
      %v258 = vld [vmem:[%s1 + $0x80] sm:$0xff]
      %v259 = vld [vmem:[%s1 + $0x88] sm:$0xff]
      %v260 = vld [vmem:[%s1 + $0x90] sm:$0xff]
      %v261 = vld [vmem:[%s1 + $0x98] sm:$0xff]
      %v262 = vld [vmem:[%s1 + $0xa0] sm:$0xff]
      %v263 = vld [vmem:[%s1 + $0xa8] sm:$0xff]
      %v264 = vld [vmem:[%s1 + $0xb0] sm:$0xff]
      %v265 = vld [vmem:[%s1 + $0xb8] sm:$0xff]
      %v266 = vld [vmem:[%s231] sm:$0x1e]
      %v267 = vld [vmem:[%s231 + $0x8] sm:$0x1e]
      %s268 = scalar_lea.vmem %s1, 192
      %v269 = vld [vmem:[%s268] sm:$0xff]
      %v270 = vld [vmem:[%s268 + $0x8] sm:$0xff]
      %v271 = vld [vmem:[%s268 + $0x10] sm:$0xff]
      %v272 = vld [vmem:[%s268 + $0x18] sm:$0xff]
      %v273 = vld [vmem:[%s268 + $0x20] sm:$0xff]
      %v274 = vld [vmem:[%s268 + $0x28] sm:$0xff]
      %v275 = vld [vmem:[%s268 + $0x30] sm:$0xff]
      %v276 = vld [vmem:[%s268 + $0x38] sm:$0xff]
      %v277 = vld [vmem:[%s268 + $0x40] sm:$0xff]
      %v278 = vld [vmem:[%s268 + $0x48] sm:$0xff]
      %v279 = vld [vmem:[%s268 + $0x50] sm:$0xff]
      %v280 = vld [vmem:[%s268 + $0x58] sm:$0xff]
      %v281 = vld [vmem:[%s268 + $0x60] sm:$0xff]
      %v282 = vld [vmem:[%s268 + $0x68] sm:$0xff]
      %v283 = vld [vmem:[%s268 + $0x70] sm:$0xff]
      %v284 = vld [vmem:[%s268 + $0x78] sm:$0xff]
      %v285 = vld [vmem:[%s268 + $0x80] sm:$0xff]
      %v286 = vld [vmem:[%s268 + $0x88] sm:$0xff]
      %v287 = vld [vmem:[%s268 + $0x90] sm:$0xff]
      %v288 = vld [vmem:[%s268 + $0x98] sm:$0xff]
      %v289 = vld [vmem:[%s268 + $0xa0] sm:$0xff]
      %v290 = vld [vmem:[%s268 + $0xa8] sm:$0xff]
      %v291 = vld [vmem:[%s268 + $0xb0] sm:$0xff]
      %v292 = vld [vmem:[%s268 + $0xb8] sm:$0xff]
      %v295 = vrot.slane %v266, 1
      %v296 = vrot.slane %v267, 1
      %vm298 = vcmask 523264
      %v299 = vsel %vm298, %v296, 0
      %301 = vmatprep.subr.mxu0 0.0
      %302 = vmatpush1.msra.mxu0 %v284
      %303 = vmatprep.subr.mxu0 0.0
      %304 = vmatpush1.msra.mxu0 %v283
      %305 = vmatprep.subr.mxu0 0.0
      %306 = vmatpush1.msra.mxu0 %v282
      %307 = vmatprep.subr.mxu0 0.0
      %308 = vmatpush1.msra.mxu0 %v281
      %309 = vmatprep.subr.mxu0 0.0
      %310 = vmatpush1.msra.mxu0 %v280
      %311 = vmatprep.subr.mxu0 0.0
      %312 = vmatpush1.msra.mxu0 %v279
      %313 = vmatprep.subr.mxu0 0.0
      %314 = vmatpush1.msra.mxu0 %v278
      %315 = vmatprep.subr.mxu0 0.0
      %316 = vmatpush1.msra.mxu0 %v277
      %317 = vmatprep.subr.mxu0 0.0
      %318 = vmatpush1.msra.mxu0 %v276
      %319 = vmatprep.subr.mxu0 0.0
      %320 = vmatpush1.msra.mxu0 %v275
      %321 = vmatprep.subr.mxu0 0.0
      %322 = vmatpush1.msra.mxu0 %v274
      %323 = vmatprep.subr.mxu0 0.0
      %324 = vmatpush1.msra.mxu0 %v273
      %325 = vmatprep.subr.mxu0 0.0
      %326 = vmatpush1.msra.mxu0 %v272
      %327 = vmatprep.subr.mxu0 0.0
      %328 = vmatpush1.msra.mxu0 %v271
      %329 = vmatprep.subr.mxu0 0.0
      %330 = vmatpush1.msra.mxu0 %v270
      %331 = vmatprep.subr.mxu0 0.0
      %332 = vmatpush1.msra.mxu0 %v269
      %333 = vmatprep.subr.mxu0 0.0
      %334 = vmatpush2.msra.mxu0 0.0
      %335 = vmatprep.subr.mxu0 0.0
      %336 = vmatpush2.msra.mxu0 0.0
      %337 = vmatprep.subr.mxu0 0.0
      %338 = vmatpush2.msra.mxu0 0.0
      %339 = vmatprep.subr.mxu0 0.0
      %340 = vmatpush2.msra.mxu0 0.0
      %341 = vmatprep.subr.mxu0 0.0
      %342 = vmatpush2.msra.mxu0 0.0
      %343 = vmatprep.subr.mxu0 0.0
      %344 = vmatpush2.msra.mxu0 0.0
      %345 = vmatprep.subr.mxu0 0.0
      %346 = vmatpush2.msra.mxu0 0.0
      %347 = vmatprep.subr.mxu0 0.0
      %348 = vmatpush2.msra.mxu0 0.0
      %349 = vmatprep.subr.mxu0 0.0
      %350 = vmatpush2.msra.mxu0 %v292
      %351 = vmatprep.subr.mxu0 0.0
      %352 = vmatpush2.msra.mxu0 %v291
      %353 = vmatprep.subr.mxu0 0.0
      %354 = vmatpush2.msra.mxu0 %v290
      %355 = vmatprep.subr.mxu0 0.0
      %356 = vmatpush2.msra.mxu0 %v289
      %357 = vmatprep.subr.mxu0 0.0
      %358 = vmatpush2.msra.mxu0 %v288
      %359 = vmatprep.subr.mxu0 0.0
      %360 = vmatpush2.msra.mxu0 %v287
      %361 = vmatprep.subr.mxu0 0.0
      %362 = vmatpush2.msra.mxu0 %v286
      %363 = vmatprep.subr.mxu0 0.0
      %364 = vmatpush2.msra.mxu0 %v285
      %365 = vmatprep.mubr.f32.mxu0 %v299
      %366 = vmatmul.mubr.f32.gmra.mxu0 %v295
      %v367 = vpop.f32.mrf.mxu0
      %v368 = vadd.f32 0.0, %v367
      %v369 = vpop.f32.mrf.mxu0
      %370 = vdwg.mxu0
      %v372 = vsel %vm298, %v241, 0
      %374 = vmatprep.subr.mxu0 0.0
      %375 = vmatpush1.msra.mxu0 %v257
      %376 = vmatprep.subr.mxu0 0.0
      %377 = vmatpush1.msra.mxu0 %v256
      %378 = vmatprep.subr.mxu0 0.0
      %379 = vmatpush1.msra.mxu0 %v255
      %380 = vmatprep.subr.mxu0 0.0
      %381 = vmatpush1.msra.mxu0 %v254
      %382 = vmatprep.subr.mxu0 0.0
      %383 = vmatpush1.msra.mxu0 %v253
      %384 = vmatprep.subr.mxu0 0.0
      %385 = vmatpush1.msra.mxu0 %v252
      %386 = vmatprep.subr.mxu0 0.0
      %387 = vmatpush1.msra.mxu0 %v251
      %388 = vmatprep.subr.mxu0 0.0
      %389 = vmatpush1.msra.mxu0 %v250
      %390 = vmatprep.subr.mxu0 0.0
      %391 = vmatpush1.msra.mxu0 %v249
      %392 = vmatprep.subr.mxu0 0.0
      %393 = vmatpush1.msra.mxu0 %v248
      %394 = vmatprep.subr.mxu0 0.0
      %395 = vmatpush1.msra.mxu0 %v247
      %396 = vmatprep.subr.mxu0 0.0
      %397 = vmatpush1.msra.mxu0 %v246
      %398 = vmatprep.subr.mxu0 0.0
      %399 = vmatpush1.msra.mxu0 %v245
      %400 = vmatprep.subr.mxu0 0.0
      %401 = vmatpush1.msra.mxu0 %v244
      %402 = vmatprep.subr.mxu0 0.0
      %403 = vmatpush1.msra.mxu0 %v243
      %404 = vmatprep.subr.mxu0 0.0
      %405 = vmatpush1.msra.mxu0 %v242
      %406 = vmatprep.subr.mxu0 0.0
      %407 = vmatpush2.msra.mxu0 0.0
      %408 = vmatprep.subr.mxu0 0.0
      %409 = vmatpush2.msra.mxu0 0.0
      %410 = vmatprep.subr.mxu0 0.0
      %411 = vmatpush2.msra.mxu0 0.0
      %412 = vmatprep.subr.mxu0 0.0
      %413 = vmatpush2.msra.mxu0 0.0
      %414 = vmatprep.subr.mxu0 0.0
      %415 = vmatpush2.msra.mxu0 0.0
      %416 = vmatprep.subr.mxu0 0.0
      %417 = vmatpush2.msra.mxu0 0.0
      %418 = vmatprep.subr.mxu0 0.0
      %419 = vmatpush2.msra.mxu0 0.0
      %420 = vmatprep.subr.mxu0 0.0
      %421 = vmatpush2.msra.mxu0 0.0
      %422 = vmatprep.subr.mxu0 0.0
      %423 = vmatpush2.msra.mxu0 %v265
      %424 = vmatprep.subr.mxu0 0.0
      %425 = vmatpush2.msra.mxu0 %v264
      %426 = vmatprep.subr.mxu0 0.0
      %427 = vmatpush2.msra.mxu0 %v263
      %428 = vmatprep.subr.mxu0 0.0
      %429 = vmatpush2.msra.mxu0 %v262
      %430 = vmatprep.subr.mxu0 0.0
      %431 = vmatpush2.msra.mxu0 %v261
      %432 = vmatprep.subr.mxu0 0.0
      %433 = vmatpush2.msra.mxu0 %v260
      %434 = vmatprep.subr.mxu0 0.0
      %435 = vmatpush2.msra.mxu0 %v259
      %436 = vmatprep.subr.mxu0 0.0
      %437 = vmatpush2.msra.mxu0 %v258
      %438 = vmatprep.mubr.f32.mxu0 %v372
      %439 = vmatmul.mubr.f32.gmra.mxu0 %v240
      %v440 = vpop.f32.mrf.mxu0
      %v441 = vadd.f32 %v368, %v440
      %v442 = vpop.f32.mrf.mxu0
      %443 = vdwg.mxu0
      %v444 = vld [vmem:[%s231] sm:$0x3c]
      %v445 = vld [vmem:[%s231 + $0x8] sm:$0x3c]
      %s446 = scalar_lea.vmem %s1, 384
      %v447 = vld [vmem:[%s446] sm:$0xff]
      %v448 = vld [vmem:[%s446 + $0x8] sm:$0xff]
      %v449 = vld [vmem:[%s446 + $0x10] sm:$0xff]
      %v450 = vld [vmem:[%s446 + $0x18] sm:$0xff]
      %v451 = vld [vmem:[%s446 + $0x20] sm:$0xff]
      %v452 = vld [vmem:[%s446 + $0x28] sm:$0xff]
      %v453 = vld [vmem:[%s446 + $0x30] sm:$0xff]
      %v454 = vld [vmem:[%s446 + $0x38] sm:$0xff]
      %v455 = vld [vmem:[%s446 + $0x40] sm:$0xff]
      %v456 = vld [vmem:[%s446 + $0x48] sm:$0xff]
      %v457 = vld [vmem:[%s446 + $0x50] sm:$0xff]
      %v458 = vld [vmem:[%s446 + $0x58] sm:$0xff]
      %v459 = vld [vmem:[%s446 + $0x60] sm:$0xff]
      %v460 = vld [vmem:[%s446 + $0x68] sm:$0xff]
      %v461 = vld [vmem:[%s446 + $0x70] sm:$0xff]
      %v462 = vld [vmem:[%s446 + $0x78] sm:$0xff]
      %v463 = vld [vmem:[%s446 + $0x80] sm:$0xff]
      %v464 = vld [vmem:[%s446 + $0x88] sm:$0xff]
      %v465 = vld [vmem:[%s446 + $0x90] sm:$0xff]
      %v466 = vld [vmem:[%s446 + $0x98] sm:$0xff]
      %v467 = vld [vmem:[%s446 + $0xa0] sm:$0xff]
      %v468 = vld [vmem:[%s446 + $0xa8] sm:$0xff]
      %v469 = vld [vmem:[%s446 + $0xb0] sm:$0xff]
      %v470 = vld [vmem:[%s446 + $0xb8] sm:$0xff]
      %v473 = vrot.slane %v444, 2
      %v474 = vrot.slane %v445, 2
      %v476 = vsel %vm298, %v474, 0
      %478 = vmatprep.subr.mxu0 0.0
      %479 = vmatpush1.msra.mxu0 %v462
      %480 = vmatprep.subr.mxu0 0.0
      %481 = vmatpush1.msra.mxu0 %v461
      %482 = vmatprep.subr.mxu0 0.0
      %483 = vmatpush1.msra.mxu0 %v460
      %484 = vmatprep.subr.mxu0 0.0
      %485 = vmatpush1.msra.mxu0 %v459
      %486 = vmatprep.subr.mxu0 0.0
      %487 = vmatpush1.msra.mxu0 %v458
      %488 = vmatprep.subr.mxu0 0.0
      %489 = vmatpush1.msra.mxu0 %v457
      %490 = vmatprep.subr.mxu0 0.0
      %491 = vmatpush1.msra.mxu0 %v456
      %492 = vmatprep.subr.mxu0 0.0
      %493 = vmatpush1.msra.mxu0 %v455
      %494 = vmatprep.subr.mxu0 0.0
      %495 = vmatpush1.msra.mxu0 %v454
      %496 = vmatprep.subr.mxu0 0.0
      %497 = vmatpush1.msra.mxu0 %v453
      %498 = vmatprep.subr.mxu0 0.0
      %499 = vmatpush1.msra.mxu0 %v452
      %500 = vmatprep.subr.mxu0 0.0
      %501 = vmatpush1.msra.mxu0 %v451
      %502 = vmatprep.subr.mxu0 0.0
      %503 = vmatpush1.msra.mxu0 %v450
      %504 = vmatprep.subr.mxu0 0.0
      %505 = vmatpush1.msra.mxu0 %v449
      %506 = vmatprep.subr.mxu0 0.0
      %507 = vmatpush1.msra.mxu0 %v448
      %508 = vmatprep.subr.mxu0 0.0
      %509 = vmatpush1.msra.mxu0 %v447
      %510 = vmatprep.subr.mxu0 0.0
      %511 = vmatpush2.msra.mxu0 0.0
      %512 = vmatprep.subr.mxu0 0.0
      %513 = vmatpush2.msra.mxu0 0.0
      %514 = vmatprep.subr.mxu0 0.0
      %515 = vmatpush2.msra.mxu0 0.0
      %516 = vmatprep.subr.mxu0 0.0
      %517 = vmatpush2.msra.mxu0 0.0
      %518 = vmatprep.subr.mxu0 0.0
      %519 = vmatpush2.msra.mxu0 0.0
      %520 = vmatprep.subr.mxu0 0.0
      %521 = vmatpush2.msra.mxu0 0.0
      %522 = vmatprep.subr.mxu0 0.0
      %523 = vmatpush2.msra.mxu0 0.0
      %524 = vmatprep.subr.mxu0 0.0
      %525 = vmatpush2.msra.mxu0 0.0
      %526 = vmatprep.subr.mxu0 0.0
      %527 = vmatpush2.msra.mxu0 %v470
      %528 = vmatprep.subr.mxu0 0.0
      %529 = vmatpush2.msra.mxu0 %v469
      %530 = vmatprep.subr.mxu0 0.0
      %531 = vmatpush2.msra.mxu0 %v468
      %532 = vmatprep.subr.mxu0 0.0
      %533 = vmatpush2.msra.mxu0 %v467
      %534 = vmatprep.subr.mxu0 0.0
      %535 = vmatpush2.msra.mxu0 %v466
      %536 = vmatprep.subr.mxu0 0.0
      %537 = vmatpush2.msra.mxu0 %v465
      %538 = vmatprep.subr.mxu0 0.0
      %539 = vmatpush2.msra.mxu0 %v464
      %540 = vmatprep.subr.mxu0 0.0
      %541 = vmatpush2.msra.mxu0 %v463
      %542 = vmatprep.mubr.f32.mxu0 %v476
      %543 = vmatmul.mubr.f32.gmra.mxu0 %v473
      %v544 = vpop.f32.mrf.mxu0
      %v545 = vadd.f32 0.0, %v544
      %v546 = vpop.f32.mrf.mxu0
      %547 = vdwg.mxu0
      %v548 = vadd.f32 %v441, %v545
      %v549 = vld [vmem:[%s2] sm:$0x1]
      %v551 = vlaneseq
      %v552 = vshrl.u32 %v551, 7
      %v553 = vsub.s32 0, %v552
      %v554 = vrot.slane %v549, %v553
      %v556 = vadd.f32 %v548, %v554
      %v557 = vld [vmem:[%s3] sm:$0xff]
      %v558 = vld [vmem:[%s3 + $0x8] sm:$0xff]
      %v559 = vld [vmem:[%s3 + $0x10] sm:$0xff]
      %v560 = vld [vmem:[%s3 + $0x18] sm:$0xff]
      %v561 = vld [vmem:[%s3 + $0x20] sm:$0xff]
      %v562 = vld [vmem:[%s3 + $0x28] sm:$0xff]
      %v563 = vld [vmem:[%s3 + $0x30] sm:$0xff]
      %v564 = vld [vmem:[%s3 + $0x38] sm:$0xff]
      %v565 = vld [vmem:[%s3 + $0x40] sm:$0xff]
      %v566 = vld [vmem:[%s3 + $0x48] sm:$0xff]
      %v567 = vld [vmem:[%s3 + $0x50] sm:$0xff]
      %v568 = vld [vmem:[%s3 + $0x58] sm:$0xff]
      %v569 = vld [vmem:[%s3 + $0x60] sm:$0xff]
      %v570 = vld [vmem:[%s3 + $0x68] sm:$0xff]
      %v571 = vld [vmem:[%s3 + $0x70] sm:$0xff]
      %v572 = vld [vmem:[%s3 + $0x78] sm:$0xff]
      %573 = vmatprep.subr.mxu0 0.0
      %574 = vmatpush1.msra.mxu0 %v572
      %575 = vmatprep.subr.mxu0 0.0
      %576 = vmatpush1.msra.mxu0 %v571
      %577 = vmatprep.subr.mxu0 0.0
      %578 = vmatpush1.msra.mxu0 %v570
      %579 = vmatprep.subr.mxu0 0.0
      %580 = vmatpush1.msra.mxu0 %v569
      %581 = vmatprep.subr.mxu0 0.0
      %582 = vmatpush1.msra.mxu0 %v568
      %583 = vmatprep.subr.mxu0 0.0
      %584 = vmatpush1.msra.mxu0 %v567
      %585 = vmatprep.subr.mxu0 0.0
      %586 = vmatpush1.msra.mxu0 %v566
      %587 = vmatprep.subr.mxu0 0.0
      %588 = vmatpush1.msra.mxu0 %v565
      %589 = vmatprep.subr.mxu0 0.0
      %590 = vmatpush1.msra.mxu0 %v564
      %591 = vmatprep.subr.mxu0 0.0
      %592 = vmatpush1.msra.mxu0 %v563
      %593 = vmatprep.subr.mxu0 0.0
      %594 = vmatpush1.msra.mxu0 %v562
      %595 = vmatprep.subr.mxu0 0.0
      %596 = vmatpush1.msra.mxu0 %v561
      %597 = vmatprep.subr.mxu0 0.0
      %598 = vmatpush1.msra.mxu0 %v560
      %599 = vmatprep.subr.mxu0 0.0
      %600 = vmatpush1.msra.mxu0 %v559
      %601 = vmatprep.subr.mxu0 0.0
      %602 = vmatpush1.msra.mxu0 %v558
      %603 = vmatprep.subr.mxu0 0.0
      %604 = vmatpush1.msra.mxu0 %v557
      %605 = vmatprep.subr.mxu0 0.0
      %606 = vmatpush2.msra.mxu0 0.0
      %607 = vmatprep.subr.mxu0 0.0
      %608 = vmatpush2.msra.mxu0 0.0
      %609 = vmatprep.subr.mxu0 0.0
      %610 = vmatpush2.msra.mxu0 0.0
      %611 = vmatprep.subr.mxu0 0.0
      %612 = vmatpush2.msra.mxu0 0.0
      %613 = vmatprep.subr.mxu0 0.0
      %614 = vmatpush2.msra.mxu0 0.0
      %615 = vmatprep.subr.mxu0 0.0
      %616 = vmatpush2.msra.mxu0 0.0
      %617 = vmatprep.subr.mxu0 0.0
      %618 = vmatpush2.msra.mxu0 0.0
      %619 = vmatprep.subr.mxu0 0.0
      %620 = vmatpush2.msra.mxu0 0.0
      %621 = vmatprep.subr.mxu0 0.0
      %622 = vmatpush2.msra.mxu0 0.0
      %623 = vmatprep.subr.mxu0 0.0
      %624 = vmatpush2.msra.mxu0 0.0
      %625 = vmatprep.subr.mxu0 0.0
      %626 = vmatpush2.msra.mxu0 0.0
      %627 = vmatprep.subr.mxu0 0.0
      %628 = vmatpush2.msra.mxu0 0.0
      %629 = vmatprep.subr.mxu0 0.0
      %630 = vmatpush2.msra.mxu0 0.0
      %631 = vmatprep.subr.mxu0 0.0
      %632 = vmatpush2.msra.mxu0 0.0
      %633 = vmatprep.subr.mxu0 0.0
      %634 = vmatpush2.msra.mxu0 0.0
      %635 = vmatprep.subr.mxu0 0.0
      %636 = vmatpush2.msra.mxu0 0.0
      %637 = vmatprep.mubr.f32.mxu0 0.0
      %638 = vmatmul.mubr.f32.gmra.mxu0 %v556
      %v639 = vpop.f32.mrf.mxu0
      %v640 = vadd.f32 0.0, %v639
      %v641 = vpop.f32.mrf.mxu0
      %642 = vdwg.mxu0
      %v643 = vmul.f32 %v556, %v556
      %644 = vmatprep.subr.mxu0 0.0
      %645 = vmatpush1.msra.mxu0 %v572
      %646 = vmatprep.subr.mxu0 0.0
      %647 = vmatpush1.msra.mxu0 %v571
      %648 = vmatprep.subr.mxu0 0.0
      %649 = vmatpush1.msra.mxu0 %v570
      %650 = vmatprep.subr.mxu0 0.0
      %651 = vmatpush1.msra.mxu0 %v569
      %652 = vmatprep.subr.mxu0 0.0
      %653 = vmatpush1.msra.mxu0 %v568
      %654 = vmatprep.subr.mxu0 0.0
      %655 = vmatpush1.msra.mxu0 %v567
      %656 = vmatprep.subr.mxu0 0.0
      %657 = vmatpush1.msra.mxu0 %v566
      %658 = vmatprep.subr.mxu0 0.0
      %659 = vmatpush1.msra.mxu0 %v565
      %660 = vmatprep.subr.mxu0 0.0
      %661 = vmatpush1.msra.mxu0 %v564
      %662 = vmatprep.subr.mxu0 0.0
      %663 = vmatpush1.msra.mxu0 %v563
      %664 = vmatprep.subr.mxu0 0.0
      %665 = vmatpush1.msra.mxu0 %v562
      %666 = vmatprep.subr.mxu0 0.0
      %667 = vmatpush1.msra.mxu0 %v561
      %668 = vmatprep.subr.mxu0 0.0
      %669 = vmatpush1.msra.mxu0 %v560
      %670 = vmatprep.subr.mxu0 0.0
      %671 = vmatpush1.msra.mxu0 %v559
      %672 = vmatprep.subr.mxu0 0.0
      %673 = vmatpush1.msra.mxu0 %v558
      %674 = vmatprep.subr.mxu0 0.0
      %675 = vmatpush1.msra.mxu0 %v557
      %676 = vmatprep.subr.mxu0 0.0
      %677 = vmatpush2.msra.mxu0 0.0
      %678 = vmatprep.subr.mxu0 0.0
      %679 = vmatpush2.msra.mxu0 0.0
      %680 = vmatprep.subr.mxu0 0.0
      %681 = vmatpush2.msra.mxu0 0.0
      %682 = vmatprep.subr.mxu0 0.0
      %683 = vmatpush2.msra.mxu0 0.0
      %684 = vmatprep.subr.mxu0 0.0
      %685 = vmatpush2.msra.mxu0 0.0
      %686 = vmatprep.subr.mxu0 0.0
      %687 = vmatpush2.msra.mxu0 0.0
      %688 = vmatprep.subr.mxu0 0.0
      %689 = vmatpush2.msra.mxu0 0.0
      %690 = vmatprep.subr.mxu0 0.0
      %691 = vmatpush2.msra.mxu0 0.0
      %692 = vmatprep.subr.mxu0 0.0
      %693 = vmatpush2.msra.mxu0 0.0
      %694 = vmatprep.subr.mxu0 0.0
      %695 = vmatpush2.msra.mxu0 0.0
      %696 = vmatprep.subr.mxu0 0.0
      %697 = vmatpush2.msra.mxu0 0.0
      %698 = vmatprep.subr.mxu0 0.0
      %699 = vmatpush2.msra.mxu0 0.0
      %700 = vmatprep.subr.mxu0 0.0
      %701 = vmatpush2.msra.mxu0 0.0
      %702 = vmatprep.subr.mxu0 0.0
      %703 = vmatpush2.msra.mxu0 0.0
      %704 = vmatprep.subr.mxu0 0.0
      %705 = vmatpush2.msra.mxu0 0.0
      %706 = vmatprep.subr.mxu0 0.0
      %707 = vmatpush2.msra.mxu0 0.0
      %708 = vmatprep.mubr.f32.mxu0 0.0
      %709 = vmatmul.mubr.f32.gmra.mxu0 %v643
      %v710 = vpop.f32.mrf.mxu0
      %v711 = vadd.f32 0.0, %v710
      %v712 = vpop.f32.mrf.mxu0
      %713 = vdwg.mxu0
      %vm714 = vcmask 1043456
      %v715 = vsel %vm714, %v640, 0.0
      %v716 = vrot.slane %v715, 4
      %v717 = vadd.f32 %v715, %v716
      %v718 = vrot.slane %v717, 2
      %v719 = vadd.f32 %v717, %v718
      %v720 = vrot.slane %v719, 1
      %v721 = vadd.f32 %v719, %v720
      %v722 = vsel %vm714, %v711, 0.0
      %v723 = vrot.slane %v722, 4
      %v724 = vadd.f32 %v722, %v723
      %v725 = vrot.slane %v724, 2
      %v726 = vadd.f32 %v724, %v725
      %v727 = vrot.slane %v726, 1
      %v728 = vadd.f32 %v726, %v727
      %v729 = vmul.f32 %v721, %v721
      %v730 = vsub.f32 %v728, %v729
      %v731 = vsub.f32 %v556, %v721
      %v732 = vadd.f32 %v730, 1e-05
      %v733 = vrsqrt.pop %v732
      %v734 = vmul.f32 %v731, %v733
      %v735 = vld [vmem:[%s235] sm:$0xf]
      %v736 = vadd.f32 %v734, %v735
      %v737 = vsub.f32 0.0, %v736
      %v738 = vmul.f32 %v737, 1.442695
      %v739 = vpow.pop %v738
      %v740 = vadd.f32 %v739, 1.0
      %v741 = vrcp.pop %v740
      %v742 = vmul.f32 1.0, %v741
      %743 = vst [vmem:[%s239] sm:$0xf] %v742
      %p744 = scmp.lt.s32.totalorder %s16, 1
      %s745 = scalar_select %p744, %s16, 1
      %s746 = smul.addr %s745, 4
      %s747 = scalar_lea.vmem %s5, %s746
      // Predicated region
      $region41: #{resnet_discriminator_forward.17} parent=39 // pred_check
        %p748 = pneg %p149
      $region42: #{resnet_discriminator_forward.17} parent=39 // pred_check_branch
        %750 = sbr.rel (%p748) target = $region44
      $region43: #{resnet_discriminator_forward.17} parent=39 // pred_region
        _
      $region44: #{resnet_discriminator_forward.17} parent=39 // pred_fallthru
        _
    $region40: #{resnet_discriminator_forward.17} parent=5 // pred_fallthru
      _
    %p751 = scmp.le.s32.totalorder 2, %s11
    // Predicated region
    $region45: #{resnet_discriminator_forward.17} parent=5 // pred_check
      %p752 = pneg %p751
    $region46: #{resnet_discriminator_forward.17} parent=5 // pred_check_branch
      %754 = sbr.rel (%p752) target = $region48
    $region47: #{resnet_discriminator_forward.17} parent=5 // pred_region
      %s755 = ssub.s32 %s11, 2
      // Predicated region
      $region49: #{resnet_discriminator_forward.17} parent=47 // pred_check
        %p756 = pneg %p155
      $region50: #{resnet_discriminator_forward.17} parent=47 // pred_check_branch
        %758 = sbr.rel (%p756) target = $region52
      $region51: #{resnet_discriminator_forward.17} parent=47 // pred_region
        %p759 = scmp.lt.s32.totalorder %s17, 1
        %s760 = scalar_select %p759, %s17, 1
        %s761 = smul.addr %s760, 4
        %s762 = scalar_lea.vmem %s5, %s761
      $region52: #{resnet_discriminator_forward.17} parent=47 // pred_fallthru
        _
    $region48: #{resnet_discriminator_forward.17} parent=5 // pred_fallthru
      _
  $region6: #{resnet_discriminator_forward.17} parent=0 // loop_footer
    %s15 = sadd.s32 1, %s11
  $region7: #{resnet_discriminator_forward.17} parent=0 // loop_footer_branch
    %10 = sbr.rel target = $region3
  $region8: #{resnet_discriminator_forward.17} parent=0 // loop_exit
    _

</llo_original>
